<compile_context>
chip_gen: v6e
topology: v6e:2x2x1
jax: 0.10.0
libtpu: 0.0.40
codegen_flags: <defaults>
</compile_context>

<pallas_src>
import functools

import jax
import jax.numpy as jnp
from jax.experimental import pallas as pl
from jax.experimental.pallas import tpu as pltpu

_LANE = 128
_SUBLANE = 8


def _softplus(x):
    # Matches torch.nn.functional.softplus (beta=1, threshold=20).
    return jnp.where(x > 20.0, x, jnp.log1p(jnp.exp(jnp.minimum(x, 20.0))))


def _alloc_kernel(num_outputs,
                  obs_ref,
                  w1_ref, b1_ref,
                  w2_ref, b2_ref,
                  wh_ref, bh_ref,
                  head_ref, x_ref):
    # Linear(obs, 512) -> ReLU   (bf16 operands, f32 accumulation on the MXU).
    h1 = jnp.dot(obs_ref[...], w1_ref[...],
                 preferred_element_type=jnp.float32) + b1_ref[...]
    h1 = jnp.maximum(h1, 0.0)

    # Linear(512, 512) -> ReLU.
    h2 = jnp.dot(h1.astype(w2_ref.dtype), w2_ref[...],
                 preferred_element_type=jnp.float32) + b2_ref[...]
    h2 = jnp.maximum(h2, 0.0)

    # Cast to bf16 exactly once; reuse for the x writeback and the head matmul.
    # This halves the dominant HBM store and removes a second f32 pack pass.
    h2_bf16 = h2.astype(jnp.bfloat16)
    x_ref[...] = h2_bf16                      # self._last_fc2_output (bf16)

    # Fused heads: [alpha | beta | value | zero-pad] in one 128-lane matmul.
    head_lin = jnp.dot(h2_bf16, wh_ref[...],
                       preferred_element_type=jnp.float32) + bh_ref[...]
    lane = jax.lax.broadcasted_iota(jnp.int32, head_lin.shape, dimension=1)
    is_ab = lane < (2 * num_outputs)
    # softplus(.) + 1 on the alpha/beta columns; raw linear on the value column.
    head = jnp.where(is_ab, _softplus(head_lin) + 1.0, head_lin)
    head_ref[...] = head.astype(head_ref.dtype)   # bf16 store


def allocation_model_forward(obs_parts, params, num_outputs, *, batch_tile=1024):
    """obs_parts: dict with action_mask, cash_reserve, open_positions,
    specialist_actions (all [B, *]).  Returns (concat([alpha, beta]) [B, 2*NO],
    value [B], last_fc2_output [B, 512]); outputs are bf16 (kernel writeback
    dtype) — cast downstream if f32 is required."""
    obs = jnp.concatenate(
        [obs_parts["action_mask"].astype(jnp.float32),
         obs_parts["cash_reserve"].astype(jnp.float32),
         obs_parts["open_positions"].astype(jnp.float32),
         obs_parts["specialist_actions"].astype(jnp.float32)],
        axis=-1)

    B, obs_size = obs.shape
    H = params["w1"].shape[1]
    assert 2 * num_outputs + 1 <= _LANE, "fused head must fit in 128 lanes"

    # --- pad the obs feature axis to a full lane tile, cast matmul operands ---
    K = pl.cdiv(obs_size, _LANE) * _LANE
    obs_p = jnp.pad(obs, ((0, 0), (0, K - obs_size))).astype(jnp.bfloat16)
    w1 = jnp.pad(params["w1"], ((0, K - obs_size), (0, 0))).astype(jnp.bfloat16)
    b1 = params["b1"].astype(jnp.float32)
    w2 = params["w2"].astype(jnp.bfloat16)
    b2 = params["b2"].astype(jnp.float32)

    # --- fuse alpha/beta/value heads into one lane-dense [H, 128] weight ---
    wh = jnp.concatenate([params["wa"], params["wb"], params["wv"]], axis=1)
    bh = jnp.concatenate([params["ba"], params["bb"], params["bv"]], axis=1)
    n_head = wh.shape[1]                      # 2*num_outputs + 1
    wh = jnp.pad(wh, ((0, 0), (0, _LANE - n_head))).astype(jnp.bfloat16)
    bh = jnp.pad(bh, ((0, 0), (0, _LANE - n_head))).astype(jnp.float32)

    # --- batch tiling ---
    # Target >= 2 grid steps when B allows it so dimension_semantics=("parallel",)
    # shards the batch across both v7x TensorCores; cap at `batch_tile` rows
    # (1024 keeps the double-buffered tiles + f32 temporaries well inside v7x's
    # 64 MiB VMEM while amortizing per-step overhead on v5e/v6e).
    half = pl.cdiv(pl.cdiv(B, 2), _SUBLANE) * _SUBLANE   # round_up(ceil(B/2), 8)
    TB = max(_SUBLANE, min(batch_tile, half))
    B_pad = pl.cdiv(B, TB) * TB
    if B_pad != B:
        obs_p = jnp.pad(obs_p, ((0, B_pad - B), (0, 0)))
    grid = (B_pad // TB,)

    kernel = functools.partial(_alloc_kernel, num_outputs)

    flops = 2 * B_pad * (K * H + H * H + H * _LANE)
    # softplus = exp + log1p over the full 128-lane head tile.
    transcendentals = 2 * B_pad * _LANE
    bytes_accessed = (obs_p.size * 2
                      + (w1.size + w2.size + wh.size) * 2
                      + (b1.size + b2.size + bh.size) * 4
                      + B_pad * (_LANE + H) * 2)          # bf16 outputs

    out_shape = (
        jax.ShapeDtypeStruct((B_pad, _LANE), jnp.bfloat16),   # [alpha|beta|value|pad]
        jax.ShapeDtypeStruct((B_pad, H), jnp.bfloat16),       # last_fc2_output
    )
    out_specs = (
        pl.BlockSpec((TB, _LANE), lambda i: (i, 0)),
        pl.BlockSpec((TB, H), lambda i: (i, 0)),
    )
    compiler_params = pltpu.CompilerParams(
        dimension_semantics=("parallel",),
        vmem_limit_bytes=64 * 1024 * 1024)
    cost = pl.CostEstimate(flops=flops,
                           transcendentals=transcendentals,
                           bytes_accessed=bytes_accessed)

    def _resident(shape, single_buffer):
        index_map = lambda i: (0,) * len(shape)
        if single_buffer:
            # Constant index_map: the block never changes, one buffer suffices.
            return pl.BlockSpec(shape, index_map, pipeline_mode=pl.Buffered(1))
        return pl.BlockSpec(shape, index_map)

    def _call(single_buffer_weights):
        resident = lambda s: _resident(s, single_buffer_weights)
        return pl.pallas_call(
            kernel,
            out_shape=out_shape,
            grid=grid,
            in_specs=[
                pl.BlockSpec((TB, K), lambda i: (i, 0)),        # obs tile
                resident((K, H)), resident((1, H)),             # w1, b1 (resident)
                resident((H, H)), resident((1, H)),             # w2, b2 (resident)
                resident((H, _LANE)), resident((1, _LANE)),     # fused head (resident)
            ],
            out_specs=out_specs,
            compiler_params=compiler_params,
            cost_estimate=cost,
        )(obs_p, w1, b1, w2, b2, wh, bh)

    try:
        head_out, x_last = _call(single_buffer_weights=True)
    except Exception:
        # Fallback if single-buffered (pl.Buffered(1)) resident weights are not
        # supported by this jax/Mosaic version; costs only ~0.8 MB extra VMEM.
        head_out, x_last = _call(single_buffer_weights=False)

    ab = head_out[:B, :2 * num_outputs]
    val = head_out[:B, 2 * num_outputs]
    return ab, val, x_last[:B]


def init_params(key, obs_size, hidden, num_outputs):
    """Deterministic synthetic weights, stored as [in, out]; biases as [1, out]."""
    ks = jax.random.split(key, 10)

    def lin(kw, kb, fan_in, fan_out):
        bound = 1.0 / jnp.sqrt(fan_in)
        w = jax.random.uniform(kw, (fan_in, fan_out), jnp.float32, -bound, bound)
        b = jax.random.uniform(kb, (1, fan_out), jnp.float32, -bound, bound)
        return w, b

    w1, b1 = lin(ks[0], ks[1], obs_size, hidden)
    w2, b2 = lin(ks[2], ks[3], hidden, hidden)
    wa, ba = lin(ks[4], ks[5], hidden, num_outputs)
    wb, bb = lin(ks[6], ks[7], hidden, num_outputs)
    wv, bv = lin(ks[8], ks[9], hidden, 1)
    return dict(w1=w1, b1=b1, w2=w2, b2=b2,
                wa=wa, ba=ba, wb=wb, bb=bb, wv=wv, bv=bv)


def _reference(obs_parts, params):
    """Pure-JAX reference with the same bf16 matmul / f32 epilogue numerics."""
    obs = jnp.concatenate(
        [obs_parts["action_mask"], obs_parts["cash_reserve"],
         obs_parts["open_positions"], obs_parts["specialist_actions"]],
        axis=-1).astype(jnp.float32)

    def mm(x, w):
        return jnp.dot(x.astype(jnp.bfloat16), w.astype(jnp.bfloat16),
                       preferred_element_type=jnp.float32)

    h = jnp.maximum(mm(obs, params["w1"]) + params["b1"], 0.0)
    h = jnp.maximum(mm(h, params["w2"]) + params["b2"], 0.0)
    alpha = _softplus(mm(h, params["wa"]) + params["ba"]) + 1.0
    beta = _softplus(mm(h, params["wb"]) + params["bb"]) + 1.0
    val = (mm(h, params["wv"]) + params["bv"]).squeeze(-1)
    return jnp.concatenate([alpha, beta], axis=-1), val, h


if __name__ == "__main__":
    key = jax.random.PRNGKey(0)
    B = 2
    NUM_OUTPUTS = 8          # action dimension
    HIDDEN = 512             # fixed in the module

    k_obs, k_par = jax.random.split(key)
    ko = jax.random.split(k_obs, 4)
    obs_parts = {
        "action_mask":        (jax.random.uniform(ko[0], (B, NUM_OUTPUTS)) > 0.5
                               ).astype(jnp.float32),
        "cash_reserve":       jax.random.uniform(ko[1], (B, 1), jnp.float32),
        "open_positions":     jax.random.uniform(ko[2], (B, NUM_OUTPUTS), jnp.float32),
        "specialist_actions": jax.random.uniform(ko[3], (B, NUM_OUTPUTS), jnp.float32),
    }
    obs_size = NUM_OUTPUTS + 1 + NUM_OUTPUTS + NUM_OUTPUTS  # 25

    params = init_params(k_par, obs_size, HIDDEN, NUM_OUTPUTS)

    ab, val, x_last = allocation_model_forward(obs_parts, params, NUM_OUTPUTS)
    jax.block_until_ready((ab, val, x_last))

    ab_ref, val_ref, x_ref = _reference(obs_parts, params)
    assert ab.shape == (B, 2 * NUM_OUTPUTS)
    assert val.shape == (B,)
    assert x_last.shape == (B, HIDDEN)
    # Outputs are bf16 (kernel writeback dtype); compare in f32 at 1e-2 tolerance.
    assert jnp.allclose(ab.astype(jnp.float32), ab_ref, atol=1e-2, rtol=1e-2)
    assert jnp.allclose(val.astype(jnp.float32), val_ref, atol=1e-2, rtol=1e-2)
    assert jnp.allclose(x_last.astype(jnp.float32), x_ref, atol=1e-2, rtol=1e-2)

    print("KERNEL_OK")
</pallas_src>

<mosaic_0001>
module attributes {stable_mosaic.version = 11 : i64} {
  func.func @_alloc_kernel(%arg0: i32, %arg1: memref<8x128xbf16, #tpu.memory_space<vmem>>, %arg2: memref<128x512xbf16, #tpu.memory_space<vmem>>, %arg3: memref<1x512xf32, #tpu.memory_space<vmem>>, %arg4: memref<512x512xbf16, #tpu.memory_space<vmem>>, %arg5: memref<1x512xf32, #tpu.memory_space<vmem>>, %arg6: memref<512x128xbf16, #tpu.memory_space<vmem>>, %arg7: memref<1x128xf32, #tpu.memory_space<vmem>>, %arg8: memref<8x128xbf16, #tpu.memory_space<vmem>>, %arg9: memref<8x512xbf16, #tpu.memory_space<vmem>>) attributes {dimension_semantics = [#tpu.dimension_semantics<parallel>], iteration_bounds = array<i64: 1>, scalar_prefetch = 0 : i64, scratch_operands = 0 : i64, tpu.core_type = #tpu.core_type<tc>, window_params = [{transform_indices = @transform_0, window_bounds = array<i64: 8, 128>}, {pipeline_mode = #tpu.pipeline_mode<synchronous>, transform_indices = @transform_1, window_bounds = array<i64: 128, 512>}, {pipeline_mode = #tpu.pipeline_mode<synchronous>, transform_indices = @transform_2, window_bounds = array<i64: 1, 512>}, {pipeline_mode = #tpu.pipeline_mode<synchronous>, transform_indices = @transform_3, window_bounds = array<i64: 512, 512>}, {pipeline_mode = #tpu.pipeline_mode<synchronous>, transform_indices = @transform_4, window_bounds = array<i64: 1, 512>}, {pipeline_mode = #tpu.pipeline_mode<synchronous>, transform_indices = @transform_5, window_bounds = array<i64: 512, 128>}, {pipeline_mode = #tpu.pipeline_mode<synchronous>, transform_indices = @transform_6, window_bounds = array<i64: 1, 128>}, {transform_indices = @transform_7, window_bounds = array<i64: 8, 128>}, {transform_indices = @transform_8, window_bounds = array<i64: 8, 512>}]} {
    %c0 = arith.constant 0 : index
    %c0_0 = arith.constant 0 : index
    %0 = vector.load %arg1[%c0, %c0_0] : memref<8x128xbf16, #tpu.memory_space<vmem>>, vector<8x128xbf16>
    %c0_1 = arith.constant 0 : index
    %c0_2 = arith.constant 0 : index
    %1 = vector.load %arg2[%c0_1, %c0_2] : memref<128x512xbf16, #tpu.memory_space<vmem>>, vector<128x512xbf16>
    %cst = arith.constant dense<0.000000e+00> : vector<8x512xf32>
    %2 = tpu.matmul %0, %1, %cst {dimension_numbers = #tpu.dot_dimension_numbers<[1], [0], [0], [1], [0, 0, 1, 1], [], []>} : vector<8x128xbf16>, vector<128x512xbf16>, vector<8x512xf32> -> vector<8x512xf32>
    %c0_3 = arith.constant 0 : index
    %c0_4 = arith.constant 0 : index
    %3 = vector.load %arg3[%c0_3, %c0_4] : memref<1x512xf32, #tpu.memory_space<vmem>>, vector<1x512xf32>
    %4 = vector.broadcast %3 : vector<1x512xf32> to vector<8x512xf32>
    %5 = arith.addf %2, %4 : vector<8x512xf32>
    %cst_5 = arith.constant 0.000000e+00 : f32
    %6 = vector.broadcast %cst_5 : f32 to vector<8x512xf32>
    %7 = arith.maximumf %5, %6 : vector<8x512xf32>
    %8 = arith.truncf %7 : vector<8x512xf32> to vector<8x512xbf16>
    %c0_6 = arith.constant 0 : index
    %c0_7 = arith.constant 0 : index
    %9 = vector.load %arg4[%c0_6, %c0_7] : memref<512x512xbf16, #tpu.memory_space<vmem>>, vector<512x512xbf16>
    %cst_8 = arith.constant dense<0.000000e+00> : vector<8x512xf32>
    %10 = tpu.matmul %8, %9, %cst_8 {dimension_numbers = #tpu.dot_dimension_numbers<[1], [0], [0], [1], [0, 0, 1, 1], [], []>} : vector<8x512xbf16>, vector<512x512xbf16>, vector<8x512xf32> -> vector<8x512xf32>
    %c0_9 = arith.constant 0 : index
    %c0_10 = arith.constant 0 : index
    %11 = vector.load %arg5[%c0_9, %c0_10] : memref<1x512xf32, #tpu.memory_space<vmem>>, vector<1x512xf32>
    %12 = vector.broadcast %11 : vector<1x512xf32> to vector<8x512xf32>
    %13 = arith.addf %10, %12 : vector<8x512xf32>
    %cst_11 = arith.constant 0.000000e+00 : f32
    %14 = vector.broadcast %cst_11 : f32 to vector<8x512xf32>
    %15 = arith.maximumf %13, %14 : vector<8x512xf32>
    %16 = arith.truncf %15 : vector<8x512xf32> to vector<8x512xbf16>
    %c0_12 = arith.constant 0 : index
    %c0_13 = arith.constant 0 : index
    %17 = vector.load %arg9[%c0_12, %c0_13] : memref<8x512xbf16, #tpu.memory_space<vmem>>, vector<8x512xbf16>
    tpu.vector_store %arg9[%c0_12, %c0_13], %16 {strides = array<i32>} : memref<8x512xbf16, #tpu.memory_space<vmem>>, vector<8x512xbf16>,
    %c0_14 = arith.constant 0 : index
    %c0_15 = arith.constant 0 : index
    %18 = vector.load %arg6[%c0_14, %c0_15] : memref<512x128xbf16, #tpu.memory_space<vmem>>, vector<512x128xbf16>
    %cst_16 = arith.constant dense<0.000000e+00> : vector<8x128xf32>
    %19 = tpu.matmul %16, %18, %cst_16 {dimension_numbers = #tpu.dot_dimension_numbers<[1], [0], [0], [1], [0, 0, 1, 1], [], []>} : vector<8x512xbf16>, vector<512x128xbf16>, vector<8x128xf32> -> vector<8x128xf32>
    %c0_17 = arith.constant 0 : index
    %c0_18 = arith.constant 0 : index
    %20 = vector.load %arg7[%c0_17, %c0_18] : memref<1x128xf32, #tpu.memory_space<vmem>>, vector<1x128xf32>
    %21 = vector.broadcast %20 : vector<1x128xf32> to vector<8x128xf32>
    %22 = arith.addf %19, %21 : vector<8x128xf32>
    %23 = tpu.iota {dimensions = array<i32: 1>} : vector<8x128xi32>
    %c16_i32 = arith.constant 16 : i32
    %24 = vector.broadcast %c16_i32 : i32 to vector<8x128xi32>
    %25 = arith.cmpi slt, %23, %24 : vector<8x128xi32>
    %cst_19 = arith.constant 2.000000e+01 : f32
    %26 = vector.broadcast %cst_19 : f32 to vector<8x128xf32>
    %27 = arith.cmpf ogt, %22, %26 : vector<8x128xf32>
    %cst_20 = arith.constant 2.000000e+01 : f32
    %28 = vector.broadcast %cst_20 : f32 to vector<8x128xf32>
    %29 = arith.minimumf %22, %28 : vector<8x128xf32>
    %30 = math.exp %29 : vector<8x128xf32>
    %31 = math.log1p %30 : vector<8x128xf32>
    %32 = arith.select %27, %22, %31 : vector<8x128xi1>, vector<8x128xf32>
    %cst_21 = arith.constant 1.000000e+00 : f32
    %33 = vector.broadcast %cst_21 : f32 to vector<8x128xf32>
    %34 = arith.addf %32, %33 : vector<8x128xf32>
    %35 = arith.select %25, %34, %22 : vector<8x128xi1>, vector<8x128xf32>
    %36 = arith.truncf %35 : vector<8x128xf32> to vector<8x128xbf16>
    %c0_22 = arith.constant 0 : index
    %c0_23 = arith.constant 0 : index
    %37 = vector.load %arg8[%c0_22, %c0_23] : memref<8x128xbf16, #tpu.memory_space<vmem>>, vector<8x128xbf16>
    tpu.vector_store %arg8[%c0_22, %c0_23], %36 {strides = array<i32>} : memref<8x128xbf16, #tpu.memory_space<vmem>>, vector<8x128xbf16>,
    return
  }
  func.func @transform_0(%arg0: i32) -> (i32, i32) {
    %c0_i32 = arith.constant 0 : i32
    %c0_i32_0 = arith.constant 0 : i32
    return %arg0, %c0_i32 : i32, i32
  }
  func.func @transform_1(%arg0: i32) -> (i32, i32) {
    %c0_i32 = arith.constant 0 : i32
    %c0_i32_0 = arith.constant 0 : i32
    %c0_i32_1 = arith.constant 0 : i32
    return %c0_i32, %c0_i32_0 : i32, i32
  }
  func.func @transform_2(%arg0: i32) -> (i32, i32) {
    %c0_i32 = arith.constant 0 : i32
    %c0_i32_0 = arith.constant 0 : i32
    %c0_i32_1 = arith.constant 0 : i32
    return %c0_i32, %c0_i32_0 : i32, i32
  }
  func.func @transform_3(%arg0: i32) -> (i32, i32) {
    %c0_i32 = arith.constant 0 : i32
    %c0_i32_0 = arith.constant 0 : i32
    %c0_i32_1 = arith.constant 0 : i32
    return %c0_i32, %c0_i32_0 : i32, i32
  }
  func.func @transform_4(%arg0: i32) -> (i32, i32) {
    %c0_i32 = arith.constant 0 : i32
    %c0_i32_0 = arith.constant 0 : i32
    %c0_i32_1 = arith.constant 0 : i32
    return %c0_i32, %c0_i32_0 : i32, i32
  }
  func.func @transform_5(%arg0: i32) -> (i32, i32) {
    %c0_i32 = arith.constant 0 : i32
    %c0_i32_0 = arith.constant 0 : i32
    %c0_i32_1 = arith.constant 0 : i32
    return %c0_i32, %c0_i32_0 : i32, i32
  }
  func.func @transform_6(%arg0: i32) -> (i32, i32) {
    %c0_i32 = arith.constant 0 : i32
    %c0_i32_0 = arith.constant 0 : i32
    %c0_i32_1 = arith.constant 0 : i32
    return %c0_i32, %c0_i32_0 : i32, i32
  }
  func.func @transform_7(%arg0: i32) -> (i32, i32) {
    %c0_i32 = arith.constant 0 : i32
    %c0_i32_0 = arith.constant 0 : i32
    return %arg0, %c0_i32 : i32, i32
  }
  func.func @transform_8(%arg0: i32) -> (i32, i32) {
    %c0_i32 = arith.constant 0 : i32
    %c0_i32_0 = arith.constant 0 : i32
    return %arg0, %c0_i32 : i32, i32
  }
}

module attributes {stable_mosaic.version = 11 : i64} {
  func.func @_alloc_kernel(%arg0: i32, %arg1: memref<8x128xbf16, #tpu.memory_space<vmem>>, %arg2: memref<128x512xbf16, #tpu.memory_space<vmem>>, %arg3: memref<1x512xf32, #tpu.memory_space<vmem>>, %arg4: memref<512x512xbf16, #tpu.memory_space<vmem>>, %arg5: memref<1x512xf32, #tpu.memory_space<vmem>>, %arg6: memref<512x128xbf16, #tpu.memory_space<vmem>>, %arg7: memref<1x128xf32, #tpu.memory_space<vmem>>, %arg8: memref<8x128xbf16, #tpu.memory_space<vmem>>, %arg9: memref<8x512xbf16, #tpu.memory_space<vmem>>) attributes {dimension_semantics = [#tpu.dimension_semantics<parallel>], iteration_bounds = array<i64: 1>, scalar_prefetch = 0 : i64, scratch_operands = 0 : i64, tpu.core_type = #tpu.core_type<tc>, window_params = [{transform_indices = @transform_0, window_bounds = array<i64: 8, 128>}, {pipeline_mode = #tpu.pipeline_mode<synchronous>, transform_indices = @transform_1, window_bounds = array<i64: 128, 512>}, {pipeline_mode = #tpu.pipeline_mode<synchronous>, transform_indices = @transform_2, window_bounds = array<i64: 1, 512>}, {pipeline_mode = #tpu.pipeline_mode<synchronous>, transform_indices = @transform_3, window_bounds = array<i64: 512, 512>}, {pipeline_mode = #tpu.pipeline_mode<synchronous>, transform_indices = @transform_4, window_bounds = array<i64: 1, 512>}, {pipeline_mode = #tpu.pipeline_mode<synchronous>, transform_indices = @transform_5, window_bounds = array<i64: 512, 128>}, {pipeline_mode = #tpu.pipeline_mode<synchronous>, transform_indices = @transform_6, window_bounds = array<i64: 1, 128>}, {transform_indices = @transform_7, window_bounds = array<i64: 8, 128>}, {transform_indices = @transform_8, window_bounds = array<i64: 8, 512>}]} {
    %c0 = arith.constant 0 : index
    %c0_0 = arith.constant 0 : index
    %0 = vector.load %arg1[%c0, %c0_0] : memref<8x128xbf16, #tpu.memory_space<vmem>>, vector<8x128xbf16>
    %c0_1 = arith.constant 0 : index
    %c0_2 = arith.constant 0 : index
    %1 = vector.load %arg2[%c0_1, %c0_2] : memref<128x512xbf16, #tpu.memory_space<vmem>>, vector<128x512xbf16>
    %cst = arith.constant dense<0.000000e+00> : vector<8x512xf32>
    %2 = tpu.matmul %0, %1, %cst {dimension_numbers = #tpu.dot_dimension_numbers<[1], [0], [0], [1], [0, 0, 1, 1], [], []>} : vector<8x128xbf16>, vector<128x512xbf16>, vector<8x512xf32> -> vector<8x512xf32>
    %c0_3 = arith.constant 0 : index
    %c0_4 = arith.constant 0 : index
    %3 = vector.load %arg3[%c0_3, %c0_4] : memref<1x512xf32, #tpu.memory_space<vmem>>, vector<1x512xf32>
    %4 = vector.broadcast %3 : vector<1x512xf32> to vector<8x512xf32>
    %5 = arith.addf %2, %4 : vector<8x512xf32>
    %cst_5 = arith.constant 0.000000e+00 : f32
    %6 = vector.broadcast %cst_5 : f32 to vector<8x512xf32>
    %7 = arith.maximumf %5, %6 : vector<8x512xf32>
    %8 = arith.truncf %7 : vector<8x512xf32> to vector<8x512xbf16>
    %c0_6 = arith.constant 0 : index
    %c0_7 = arith.constant 0 : index
    %9 = vector.load %arg4[%c0_6, %c0_7] : memref<512x512xbf16, #tpu.memory_space<vmem>>, vector<512x512xbf16>
    %cst_8 = arith.constant dense<0.000000e+00> : vector<8x512xf32>
    %10 = tpu.matmul %8, %9, %cst_8 {dimension_numbers = #tpu.dot_dimension_numbers<[1], [0], [0], [1], [0, 0, 1, 1], [], []>} : vector<8x512xbf16>, vector<512x512xbf16>, vector<8x512xf32> -> vector<8x512xf32>
    %c0_9 = arith.constant 0 : index
    %c0_10 = arith.constant 0 : index
    %11 = vector.load %arg5[%c0_9, %c0_10] : memref<1x512xf32, #tpu.memory_space<vmem>>, vector<1x512xf32>
    %12 = vector.broadcast %11 : vector<1x512xf32> to vector<8x512xf32>
    %13 = arith.addf %10, %12 : vector<8x512xf32>
    %cst_11 = arith.constant 0.000000e+00 : f32
    %14 = vector.broadcast %cst_11 : f32 to vector<8x512xf32>
    %15 = arith.maximumf %13, %14 : vector<8x512xf32>
    %16 = arith.truncf %15 : vector<8x512xf32> to vector<8x512xbf16>
    %c0_12 = arith.constant 0 : index
    %c0_13 = arith.constant 0 : index
    %17 = vector.load %arg9[%c0_12, %c0_13] : memref<8x512xbf16, #tpu.memory_space<vmem>>, vector<8x512xbf16>
    tpu.vector_store %arg9[%c0_12, %c0_13], %16 {strides = array<i32>} : memref<8x512xbf16, #tpu.memory_space<vmem>>, vector<8x512xbf16>,
    %c0_14 = arith.constant 0 : index
    %c0_15 = arith.constant 0 : index
    %18 = vector.load %arg6[%c0_14, %c0_15] : memref<512x128xbf16, #tpu.memory_space<vmem>>, vector<512x128xbf16>
    %cst_16 = arith.constant dense<0.000000e+00> : vector<8x128xf32>
    %19 = tpu.matmul %16, %18, %cst_16 {dimension_numbers = #tpu.dot_dimension_numbers<[1], [0], [0], [1], [0, 0, 1, 1], [], []>} : vector<8x512xbf16>, vector<512x128xbf16>, vector<8x128xf32> -> vector<8x128xf32>
    %c0_17 = arith.constant 0 : index
    %c0_18 = arith.constant 0 : index
    %20 = vector.load %arg7[%c0_17, %c0_18] : memref<1x128xf32, #tpu.memory_space<vmem>>, vector<1x128xf32>
    %21 = vector.broadcast %20 : vector<1x128xf32> to vector<8x128xf32>
    %22 = arith.addf %19, %21 : vector<8x128xf32>
    %23 = tpu.iota {dimensions = array<i32: 1>} : vector<8x128xi32>
    %c16_i32 = arith.constant 16 : i32
    %24 = vector.broadcast %c16_i32 : i32 to vector<8x128xi32>
    %25 = arith.cmpi slt, %23, %24 : vector<8x128xi32>
    %cst_19 = arith.constant 2.000000e+01 : f32
    %26 = vector.broadcast %cst_19 : f32 to vector<8x128xf32>
    %27 = arith.cmpf ogt, %22, %26 : vector<8x128xf32>
    %cst_20 = arith.constant 2.000000e+01 : f32
    %28 = vector.broadcast %cst_20 : f32 to vector<8x128xf32>
    %29 = arith.minimumf %22, %28 : vector<8x128xf32>
    %30 = math.exp %29 : vector<8x128xf32>
    %31 = math.log1p %30 : vector<8x128xf32>
    %32 = arith.select %27, %22, %31 : vector<8x128xi1>, vector<8x128xf32>
    %cst_21 = arith.constant 1.000000e+00 : f32
    %33 = vector.broadcast %cst_21 : f32 to vector<8x128xf32>
    %34 = arith.addf %32, %33 : vector<8x128xf32>
    %35 = arith.select %25, %34, %22 : vector<8x128xi1>, vector<8x128xf32>
    %36 = arith.truncf %35 : vector<8x128xf32> to vector<8x128xbf16>
    %c0_22 = arith.constant 0 : index
    %c0_23 = arith.constant 0 : index
    %37 = vector.load %arg8[%c0_22, %c0_23] : memref<8x128xbf16, #tpu.memory_space<vmem>>, vector<8x128xbf16>
    tpu.vector_store %arg8[%c0_22, %c0_23], %36 {strides = array<i32>} : memref<8x128xbf16, #tpu.memory_space<vmem>>, vector<8x128xbf16>,
    return
  }
  func.func @transform_0(%arg0: i32) -> (i32, i32) {
    %c0_i32 = arith.constant 0 : i32
    %c0_i32_0 = arith.constant 0 : i32
    return %arg0, %c0_i32 : i32, i32
  }
  func.func @transform_1(%arg0: i32) -> (i32, i32) {
    %c0_i32 = arith.constant 0 : i32
    %c0_i32_0 = arith.constant 0 : i32
    %c0_i32_1 = arith.constant 0 : i32
    return %c0_i32, %c0_i32_0 : i32, i32
  }
  func.func @transform_2(%arg0: i32) -> (i32, i32) {
    %c0_i32 = arith.constant 0 : i32
    %c0_i32_0 = arith.constant 0 : i32
    %c0_i32_1 = arith.constant 0 : i32
    return %c0_i32, %c0_i32_0 : i32, i32
  }
  func.func @transform_3(%arg0: i32) -> (i32, i32) {
    %c0_i32 = arith.constant 0 : i32
    %c0_i32_0 = arith.constant 0 : i32
    %c0_i32_1 = arith.constant 0 : i32
    return %c0_i32, %c0_i32_0 : i32, i32
  }
  func.func @transform_4(%arg0: i32) -> (i32, i32) {
    %c0_i32 = arith.constant 0 : i32
    %c0_i32_0 = arith.constant 0 : i32
    %c0_i32_1 = arith.constant 0 : i32
    return %c0_i32, %c0_i32_0 : i32, i32
  }
  func.func @transform_5(%arg0: i32) -> (i32, i32) {
    %c0_i32 = arith.constant 0 : i32
    %c0_i32_0 = arith.constant 0 : i32
    %c0_i32_1 = arith.constant 0 : i32
    return %c0_i32, %c0_i32_0 : i32, i32
  }
  func.func @transform_6(%arg0: i32) -> (i32, i32) {
    %c0_i32 = arith.constant 0 : i32
    %c0_i32_0 = arith.constant 0 : i32
    %c0_i32_1 = arith.constant 0 : i32
    return %c0_i32, %c0_i32_0 : i32, i32
  }
  func.func @transform_7(%arg0: i32) -> (i32, i32) {
    %c0_i32 = arith.constant 0 : i32
    %c0_i32_0 = arith.constant 0 : i32
    return %arg0, %c0_i32 : i32, i32
  }
  func.func @transform_8(%arg0: i32) -> (i32, i32) {
    %c0_i32 = arith.constant 0 : i32
    %c0_i32_0 = arith.constant 0 : i32
    return %arg0, %c0_i32 : i32, i32
  }
}

</mosaic_0001>

<llo_original>
// kernel: tpu_custom_call.1
$region0: #{tpu_custom_call.1}
  #allocation0 [shape = 'u32[]', space=smem, size = 0x4, offset = 0x4, fixed_abs, tag = 'smem constant byte address 0x4 - core index']
  #allocation1 [shape = 'u32[144,128]{1,0:T(1,128)}', space=vmem, size = 0x12000, scoped, tag = 'internal scratch']
  %s0 = inlined_call_operand.hbm [shape: bf16[8,128], index: 0, kind: input, shape index: {}]
  %s1 = inlined_call_operand.hbm [shape: bf16[128,512], index: 1, kind: input, shape index: {}]
  %s2 = inlined_call_operand.hbm [shape: f32[1,512], index: 2, kind: input, shape index: {}]
  %s3 = inlined_call_operand.hbm [shape: bf16[512,512], index: 3, kind: input, shape index: {}]
  %s4 = inlined_call_operand.vmem [shape: f32[1,512], index: 4, kind: input, shape index: {}]
  %s5 = inlined_call_operand.hbm [shape: bf16[512,128], index: 5, kind: input, shape index: {}]
  %s6 = inlined_call_operand.vmem [shape: f32[1,128], index: 6, kind: input, shape index: {}]
  %s7 = inlined_call_operand.hbm [shape: bf16[8,128], index: 7, kind: output, shape index: {0}]
  %s8 = inlined_call_operand.hbm [shape: bf16[8,512], index: 8, kind: output, shape index: {1}]
  %9 = xla_tuple %s7, %s8
  %s10 = sld [smem:[#allocation0]]
  $region66: #{tpu_custom_call.1} parent=0
    _
  %s12 = ssub.s32 1, %s10
  %s13 = scalar_select 0, %s12, %s10
  $region1: #{tpu_custom_call.1} parent=0
    #allocation2 [shape = 'u8[2048]{0}', space=vmem, size = 0x800, scoped, tag = 'input window, operand 0, single buffered']
    #allocation3 [shape = 's32[1]{0}', space=sflag, size = 0x4, scoped, tag = 'scoped memory for tpu_custom_call.1']
    #allocation4 [shape = 's32[1]{0}', space=sflag, size = 0x4, scoped, tag = 'scoped memory for tpu_custom_call.1']
    #allocation5 [shape = 'u8[131072]{0}', space=vmem, size = 0x20000, scoped, tag = 'input window, operand 1, single buffered']
    #allocation6 [shape = 's32[1]{0}', space=sflag, size = 0x4, scoped, tag = 'scoped memory for tpu_custom_call.1']
    #allocation7 [shape = 'u8[2048]{0}', space=vmem, size = 0x800, scoped, tag = 'input window, operand 2, single buffered']
    #allocation8 [shape = 'u8[524288]{0}', space=vmem, size = 0x80000, scoped, tag = 'input window, operand 3, single buffered']
    #allocation9 [shape = 's32[1]{0}', space=sflag, size = 0x4, scoped, tag = 'scoped memory for tpu_custom_call.1']
    #allocation10 [shape = 'u8[131072]{0}', space=vmem, size = 0x20000, scoped, tag = 'input window, operand 5, single buffered']
    #allocation11 [shape = 'u8[2048]{0}', space=vmem, size = 0x800, scoped, tag = 'output window, operand 0, single buffered']
    #allocation12 [shape = 'u8[8192]{0}', space=vmem, size = 0x2000, scoped, tag = 'output window, operand 1, single buffered']
    #allocation13 [shape = 's32[1]{0}', space=sflag, size = 0x4, scoped, tag = 'scoped memory for tpu_custom_call.1']
    %14 = vsyncpa [#allocation3], 0
    %15 = vsyncpa [#allocation6], 0
    %16 = vsyncpa [#allocation9], 0
    %17 = vsyncpa [#allocation4], 0
    %18 = vsyncpa [#allocation13], 0
    // Predicated region
    $region2: #{tpu_custom_call.1} parent=1 // pred_check
      _
    $region3: #{tpu_custom_call.1} parent=1 // pred_check_branch
      %20 = sbr.rel (0) target = $region5
    $region4: #{tpu_custom_call.1} parent=1 // pred_region
      %s22 = ssub.s32 64, 64
      %23 = vsyncadd [#allocation3], %s22
      %s25 = sshll.u32 [#allocation2], 4
      %s26 = int_to_ptr.vmem [resolvable:$true] %s25
      %28 = dma.hbm_to_vmem [thread:$0]  %s0, 64, %s26, [#allocation3]
    $region5: #{tpu_custom_call.1} parent=1 // pred_fallthru
      _
    // Predicated region
    $region6: #{tpu_custom_call.1} parent=1 // pred_check
      _
    $region7: #{tpu_custom_call.1} parent=1 // pred_check_branch
      %30 = sbr.rel (0) target = $region9
    $region8: #{tpu_custom_call.1} parent=1 // pred_region
      %s32 = ssub.s32 4096, 4096
      %33 = vsyncadd [#allocation6], %s32
      %s34 = sshll.u32 [#allocation5], 4
      %s35 = int_to_ptr.vmem [resolvable:$true] %s34
      %40 = dma.hbm_to_vmem [thread:$0]  %s1, 4096, %s35, [#allocation6], 256, 256, 16
    $region9: #{tpu_custom_call.1} parent=1 // pred_fallthru
      _
    // Predicated region
    $region10: #{tpu_custom_call.1} parent=1 // pred_check
      _
    $region11: #{tpu_custom_call.1} parent=1 // pred_check_branch
      %42 = sbr.rel (0) target = $region13
    $region12: #{tpu_custom_call.1} parent=1 // pred_region
      %s44 = ssub.s32 64, 64
      %45 = vsyncadd [#allocation6], %s44
      %s47 = sshll.u32 [#allocation7], 4
      %s48 = int_to_ptr.vmem [resolvable:$true] %s47
      %50 = dma.hbm_to_vmem [thread:$0]  %s2, 64, %s48, [#allocation6]
    $region13: #{tpu_custom_call.1} parent=1 // pred_fallthru
      _
    // Predicated region
    $region14: #{tpu_custom_call.1} parent=1 // pred_check
      _
    $region15: #{tpu_custom_call.1} parent=1 // pred_check_branch
      %52 = sbr.rel (0) target = $region17
    $region16: #{tpu_custom_call.1} parent=1 // pred_region
      %s54 = ssub.s32 16384, 16384
      %55 = vsyncadd [#allocation9], %s54
      %s56 = sshll.u32 [#allocation8], 4
      %s57 = int_to_ptr.vmem [resolvable:$true] %s56
      %62 = dma.hbm_to_vmem [thread:$0]  %s3, 16384, %s57, [#allocation9], 256, 256, 16
    $region17: #{tpu_custom_call.1} parent=1 // pred_fallthru
      _
    // Predicated region
    $region18: #{tpu_custom_call.1} parent=1 // pred_check
      _
    $region19: #{tpu_custom_call.1} parent=1 // pred_check_branch
      %64 = sbr.rel (0) target = $region21
    $region20: #{tpu_custom_call.1} parent=1 // pred_region
      _
    $region21: #{tpu_custom_call.1} parent=1 // pred_fallthru
      _
    // Predicated region
    $region22: #{tpu_custom_call.1} parent=1 // pred_check
      _
    $region23: #{tpu_custom_call.1} parent=1 // pred_check_branch
      %66 = sbr.rel (0) target = $region25
    $region24: #{tpu_custom_call.1} parent=1 // pred_region
      %s68 = ssub.s32 4096, 4096
      %69 = vsyncadd [#allocation9], %s68
      %s70 = sshll.u32 [#allocation10], 4
      %s71 = int_to_ptr.vmem [resolvable:$true] %s70
      %76 = dma.hbm_to_vmem [thread:$0]  %s5, 4096, %s71, [#allocation9], 64, 64, 4
    $region25: #{tpu_custom_call.1} parent=1 // pred_fallthru
      _
    // Predicated region
    $region26: #{tpu_custom_call.1} parent=1 // pred_check
      _
    $region27: #{tpu_custom_call.1} parent=1 // pred_check_branch
      %78 = sbr.rel (0) target = $region29
    $region28: #{tpu_custom_call.1} parent=1 // pred_region
      _
    $region29: #{tpu_custom_call.1} parent=1 // pred_fallthru
      _
    // Predicated region
    $region30: #{tpu_custom_call.1} parent=1 // pred_check
      _
    $region31: #{tpu_custom_call.1} parent=1 // pred_check_branch
      %80 = sbr.rel (0) target = $region33
    $region32: #{tpu_custom_call.1} parent=1 // pred_region
      %81 = dma.done [#allocation3], 64
    $region33: #{tpu_custom_call.1} parent=1 // pred_fallthru
      _
    // Predicated region
    $region34: #{tpu_custom_call.1} parent=1 // pred_check
      _
    $region35: #{tpu_custom_call.1} parent=1 // pred_check_branch
      %83 = sbr.rel (0) target = $region37
    $region36: #{tpu_custom_call.1} parent=1 // pred_region
      %84 = dma.done [#allocation6], 4096
    $region37: #{tpu_custom_call.1} parent=1 // pred_fallthru
      _
    // Predicated region
    $region38: #{tpu_custom_call.1} parent=1 // pred_check
      _
    $region39: #{tpu_custom_call.1} parent=1 // pred_check_branch
      %86 = sbr.rel (0) target = $region41
    $region40: #{tpu_custom_call.1} parent=1 // pred_region
      %87 = dma.done [#allocation6], 64
    $region41: #{tpu_custom_call.1} parent=1 // pred_fallthru
      _
    // Predicated region
    $region42: #{tpu_custom_call.1} parent=1 // pred_check
      _
    $region43: #{tpu_custom_call.1} parent=1 // pred_check_branch
      %89 = sbr.rel (0) target = $region45
    $region44: #{tpu_custom_call.1} parent=1 // pred_region
      %90 = dma.done [#allocation9], 16384
    $region45: #{tpu_custom_call.1} parent=1 // pred_fallthru
      _
    // Predicated region
    $region46: #{tpu_custom_call.1} parent=1 // pred_check
      _
    $region47: #{tpu_custom_call.1} parent=1 // pred_check_branch
      %92 = sbr.rel (0) target = $region49
    $region48: #{tpu_custom_call.1} parent=1 // pred_region
      %93 = dma.done [#allocation9], 4096
    $region49: #{tpu_custom_call.1} parent=1 // pred_fallthru
      _
    %v95 = vld [vmem:[#allocation2] sm:$0xf]
    %v96 = vld [vmem:[#allocation5] sm:$0xff]
    %v97 = vld [vmem:[#allocation5 + $0x8] sm:$0xff]
    %v98 = vld [vmem:[#allocation5 + $0x10] sm:$0xff]
    %v99 = vld [vmem:[#allocation5 + $0x18] sm:$0xff]
    %v100 = vld [vmem:[#allocation5 + $0x20] sm:$0xff]
    %v101 = vld [vmem:[#allocation5 + $0x28] sm:$0xff]
    %v102 = vld [vmem:[#allocation5 + $0x30] sm:$0xff]
    %v103 = vld [vmem:[#allocation5 + $0x38] sm:$0xff]
    %v104 = vld [vmem:[#allocation5 + $0x40] sm:$0xff]
    %v105 = vld [vmem:[#allocation5 + $0x48] sm:$0xff]
    %v106 = vld [vmem:[#allocation5 + $0x50] sm:$0xff]
    %v107 = vld [vmem:[#allocation5 + $0x58] sm:$0xff]
    %v108 = vld [vmem:[#allocation5 + $0x60] sm:$0xff]
    %v109 = vld [vmem:[#allocation5 + $0x68] sm:$0xff]
    %v110 = vld [vmem:[#allocation5 + $0x70] sm:$0xff]
    %v111 = vld [vmem:[#allocation5 + $0x78] sm:$0xff]
    %v112 = vld [vmem:[#allocation5 + $0x80] sm:$0xff]
    %v113 = vld [vmem:[#allocation5 + $0x88] sm:$0xff]
    %v114 = vld [vmem:[#allocation5 + $0x90] sm:$0xff]
    %v115 = vld [vmem:[#allocation5 + $0x98] sm:$0xff]
    %v116 = vld [vmem:[#allocation5 + $0xa0] sm:$0xff]
    %v117 = vld [vmem:[#allocation5 + $0xa8] sm:$0xff]
    %v118 = vld [vmem:[#allocation5 + $0xb0] sm:$0xff]
    %v119 = vld [vmem:[#allocation5 + $0xb8] sm:$0xff]
    %v120 = vld [vmem:[#allocation5 + $0xc0] sm:$0xff]
    %v121 = vld [vmem:[#allocation5 + $0xc8] sm:$0xff]
    %v122 = vld [vmem:[#allocation5 + $0xd0] sm:$0xff]
    %v123 = vld [vmem:[#allocation5 + $0xd8] sm:$0xff]
    %v124 = vld [vmem:[#allocation5 + $0xe0] sm:$0xff]
    %v125 = vld [vmem:[#allocation5 + $0xe8] sm:$0xff]
    %v126 = vld [vmem:[#allocation5 + $0xf0] sm:$0xff]
    %v127 = vld [vmem:[#allocation5 + $0xf8] sm:$0xff]
    %v128 = vld [vmem:[#allocation7] sm:$0xf]
    %v130 = vlaneseq
    %v131 = vshrl.u32 %v130, 7
    %v132 = vsub.s32 0, %v131
    %v133 = vrot.slane %v128, %v132
    %v134 = vlaneseq
    %v135 = vshrl.u32 %v134, 7
    %v136 = vsub.s32 1, %v135
    %v137 = vrot.slane %v128, %v136
    %v138 = vlaneseq
    %v139 = vshrl.u32 %v138, 7
    %v140 = vsub.s32 2, %v139
    %v141 = vrot.slane %v128, %v140
    %v142 = vlaneseq
    %v143 = vshrl.u32 %v142, 7
    %v144 = vsub.s32 3, %v143
    %v145 = vrot.slane %v128, %v144
    %v182 = vunpack.c.l.b16 %v96
    %v183 = vunpack.c.h.b16 %v96
    %v184 = vunpack.c.l.b16 %v97
    %v185 = vunpack.c.h.b16 %v97
    %v186 = vunpack.c.l.b16 %v98
    %v187 = vunpack.c.h.b16 %v98
    %v188 = vunpack.c.l.b16 %v99
    %v189 = vunpack.c.h.b16 %v99
    %v190 = vunpack.c.l.b16 %v100
    %v191 = vunpack.c.h.b16 %v100
    %v192 = vunpack.c.l.b16 %v101
    %v193 = vunpack.c.h.b16 %v101
    %v194 = vunpack.c.l.b16 %v102
    %v195 = vunpack.c.h.b16 %v102
    %v196 = vunpack.c.l.b16 %v103
    %v197 = vunpack.c.h.b16 %v103
    %v198 = vunpack.c.l.b16 %v104
    %v199 = vunpack.c.h.b16 %v104
    %v200 = vunpack.c.l.b16 %v105
    %v201 = vunpack.c.h.b16 %v105
    %v202 = vunpack.c.l.b16 %v106
    %v203 = vunpack.c.h.b16 %v106
    %v204 = vunpack.c.l.b16 %v107
    %v205 = vunpack.c.h.b16 %v107
    %v206 = vunpack.c.l.b16 %v108
    %v207 = vunpack.c.h.b16 %v108
    %v208 = vunpack.c.l.b16 %v109
    %v209 = vunpack.c.h.b16 %v109
    %v210 = vunpack.c.l.b16 %v110
    %v211 = vunpack.c.h.b16 %v110
    %v212 = vunpack.c.l.b16 %v111
    %v213 = vunpack.c.h.b16 %v111
    %v214 = vunpack.c.l.b16 %v112
    %v215 = vunpack.c.h.b16 %v112
    %v216 = vunpack.c.l.b16 %v113
    %v217 = vunpack.c.h.b16 %v113
    %v218 = vunpack.c.l.b16 %v114
    %v219 = vunpack.c.h.b16 %v114
    %v220 = vunpack.c.l.b16 %v115
    %v221 = vunpack.c.h.b16 %v115
    %v222 = vunpack.c.l.b16 %v116
    %v223 = vunpack.c.h.b16 %v116
    %v224 = vunpack.c.l.b16 %v117
    %v225 = vunpack.c.h.b16 %v117
    %v226 = vunpack.c.l.b16 %v118
    %v227 = vunpack.c.h.b16 %v118
    %v228 = vunpack.c.l.b16 %v119
    %v229 = vunpack.c.h.b16 %v119
    %v230 = vunpack.c.l.b16 %v120
    %v231 = vunpack.c.h.b16 %v120
    %v232 = vunpack.c.l.b16 %v121
    %v233 = vunpack.c.h.b16 %v121
    %v234 = vunpack.c.l.b16 %v122
    %v235 = vunpack.c.h.b16 %v122
    %v236 = vunpack.c.l.b16 %v123
    %v237 = vunpack.c.h.b16 %v123
    %v238 = vunpack.c.l.b16 %v124
    %v239 = vunpack.c.h.b16 %v124
    %v240 = vunpack.c.l.b16 %v125
    %v241 = vunpack.c.h.b16 %v125
    %v242 = vunpack.c.l.b16 %v126
    %v243 = vunpack.c.h.b16 %v126
    %v244 = vunpack.c.l.b16 %v127
    %v245 = vunpack.c.h.b16 %v127
    %v246 = vpack.c.b16 %v186, %v182
    %v247 = vpack.c.b16 %v187, %v183
    %v248 = vpack.c.b16 %v188, %v184
    %v249 = vpack.c.b16 %v189, %v185
    %v250 = vpack.c.b16 %v194, %v190
    %v251 = vpack.c.b16 %v195, %v191
    %v252 = vpack.c.b16 %v196, %v192
    %v253 = vpack.c.b16 %v197, %v193
    %v254 = vpack.c.b16 %v202, %v198
    %v255 = vpack.c.b16 %v203, %v199
    %v256 = vpack.c.b16 %v204, %v200
    %v257 = vpack.c.b16 %v205, %v201
    %v258 = vpack.c.b16 %v210, %v206
    %v259 = vpack.c.b16 %v211, %v207
    %v260 = vpack.c.b16 %v212, %v208
    %v261 = vpack.c.b16 %v213, %v209
    %v262 = vpack.c.b16 %v218, %v214
    %v263 = vpack.c.b16 %v219, %v215
    %v264 = vpack.c.b16 %v220, %v216
    %v265 = vpack.c.b16 %v221, %v217
    %v266 = vpack.c.b16 %v226, %v222
    %v267 = vpack.c.b16 %v227, %v223
    %v268 = vpack.c.b16 %v228, %v224
    %v269 = vpack.c.b16 %v229, %v225
    %v270 = vpack.c.b16 %v234, %v230
    %v271 = vpack.c.b16 %v235, %v231
    %v272 = vpack.c.b16 %v236, %v232
    %v273 = vpack.c.b16 %v237, %v233
    %v274 = vpack.c.b16 %v242, %v238
    %v275 = vpack.c.b16 %v243, %v239
    %v276 = vpack.c.b16 %v244, %v240
    %v277 = vpack.c.b16 %v245, %v241
    %310 = vmatprep.subr.bf16.mxu0 %v275
    %311 = vmatpush1.bf16.msra.mxu0 %v274
    %312 = vmatprep.subr.bf16.mxu0 %v271
    %313 = vmatpush1.bf16.msra.mxu0 %v270
    %314 = vmatprep.subr.bf16.mxu0 %v267
    %315 = vmatpush1.bf16.msra.mxu0 %v266
    %316 = vmatprep.subr.bf16.mxu0 %v263
    %317 = vmatpush1.bf16.msra.mxu0 %v262
    %318 = vmatprep.subr.bf16.mxu0 %v259
    %319 = vmatpush1.bf16.msra.mxu0 %v258
    %320 = vmatprep.subr.bf16.mxu0 %v255
    %321 = vmatpush1.bf16.msra.mxu0 %v254
    %322 = vmatprep.subr.bf16.mxu0 %v251
    %323 = vmatpush1.bf16.msra.mxu0 %v250
    %324 = vmatprep.subr.bf16.mxu0 %v247
    %325 = vmatpush1.bf16.msra.mxu0 %v246
    %326 = vmatprep.subr.bf16.mxu0 0
    %327 = vmatpush2.bf16.msra.mxu0 0
    %328 = vmatprep.subr.bf16.mxu0 0
    %329 = vmatpush2.bf16.msra.mxu0 0
    %330 = vmatprep.subr.bf16.mxu0 0
    %331 = vmatpush2.bf16.msra.mxu0 0
    %332 = vmatprep.subr.bf16.mxu0 0
    %333 = vmatpush2.bf16.msra.mxu0 0
    %334 = vmatprep.subr.bf16.mxu0 0
    %335 = vmatpush2.bf16.msra.mxu0 0
    %336 = vmatprep.subr.bf16.mxu0 0
    %337 = vmatpush2.bf16.msra.mxu0 0
    %338 = vmatprep.subr.bf16.mxu0 0
    %339 = vmatpush2.bf16.msra.mxu0 0
    %340 = vmatprep.subr.bf16.mxu0 0
    %341 = vmatpush2.bf16.msra.mxu0 0
    %342 = vmatprep.mubr.bf16.mxu0 0
    %343 = vmatmul.mubr.bf16.gmra.mxu0 %v95
    %v344 = vpop.f32.mrf.mxu0
    %v345 = vadd.f32 %v133, %v344
    %v346 = vpop.f32.mrf.mxu0
    %v347 = vadd.f32 %v137, %v346
    %v348 = vpop.f32.mrf.mxu0
    %v349 = vpop.f32.mrf.mxu0
    %350 = vdwg.mxu0
    %351 = vmatprep.subr.bf16.mxu0 %v277
    %352 = vmatpush1.bf16.msra.mxu0 %v276
    %353 = vmatprep.subr.bf16.mxu0 %v273
    %354 = vmatpush1.bf16.msra.mxu0 %v272
    %355 = vmatprep.subr.bf16.mxu0 %v269
    %356 = vmatpush1.bf16.msra.mxu0 %v268
    %357 = vmatprep.subr.bf16.mxu0 %v265
    %358 = vmatpush1.bf16.msra.mxu0 %v264
    %359 = vmatprep.subr.bf16.mxu0 %v261
    %360 = vmatpush1.bf16.msra.mxu0 %v260
    %361 = vmatprep.subr.bf16.mxu0 %v257
    %362 = vmatpush1.bf16.msra.mxu0 %v256
    %363 = vmatprep.subr.bf16.mxu0 %v253
    %364 = vmatpush1.bf16.msra.mxu0 %v252
    %365 = vmatprep.subr.bf16.mxu0 %v249
    %366 = vmatpush1.bf16.msra.mxu0 %v248
    %367 = vmatprep.subr.bf16.mxu0 0
    %368 = vmatpush2.bf16.msra.mxu0 0
    %369 = vmatprep.subr.bf16.mxu0 0
    %370 = vmatpush2.bf16.msra.mxu0 0
    %371 = vmatprep.subr.bf16.mxu0 0
    %372 = vmatpush2.bf16.msra.mxu0 0
    %373 = vmatprep.subr.bf16.mxu0 0
    %374 = vmatpush2.bf16.msra.mxu0 0
    %375 = vmatprep.subr.bf16.mxu0 0
    %376 = vmatpush2.bf16.msra.mxu0 0
    %377 = vmatprep.subr.bf16.mxu0 0
    %378 = vmatpush2.bf16.msra.mxu0 0
    %379 = vmatprep.subr.bf16.mxu0 0
    %380 = vmatpush2.bf16.msra.mxu0 0
    %381 = vmatprep.subr.bf16.mxu0 0
    %382 = vmatpush2.bf16.msra.mxu0 0
    %383 = vmatprep.mubr.bf16.mxu0 0
    %384 = vmatmul.mubr.bf16.gmra.mxu0 %v95
    %v385 = vpop.f32.mrf.mxu0
    %v386 = vadd.f32 %v141, %v385
    %v387 = vpop.f32.mrf.mxu0
    %v388 = vadd.f32 %v145, %v387
    %v389 = vpop.f32.mrf.mxu0
    %v390 = vpop.f32.mrf.mxu0
    %391 = vdwg.mxu0
    %v392 = vmax.f32 %v345, 0.0
    %v393 = vmax.f32 %v347, 0.0
    %v394 = vmax.f32 %v386, 0.0
    %v395 = vmax.f32 %v388, 0.0
    %v396 = vpack.c.bf16 %v392, %v392
    %v397 = vpack.c.bf16 %v393, %v393
    %v398 = vpack.c.bf16 %v394, %v394
    %v399 = vpack.c.bf16 %v395, %v395
    %v400 = vld [vmem:[#allocation8] sm:$0xff]
    %v401 = vld [vmem:[#allocation8 + $0x8] sm:$0xff]
    %v402 = vld [vmem:[#allocation8 + $0x10] sm:$0xff]
    %v403 = vld [vmem:[#allocation8 + $0x18] sm:$0xff]
    %v404 = vld [vmem:[#allocation8 + $0x20] sm:$0xff]
    %v405 = vld [vmem:[#allocation8 + $0x28] sm:$0xff]
    %v406 = vld [vmem:[#allocation8 + $0x30] sm:$0xff]
    %v407 = vld [vmem:[#allocation8 + $0x38] sm:$0xff]
    %v408 = vld [vmem:[#allocation8 + $0x40] sm:$0xff]
    %v409 = vld [vmem:[#allocation8 + $0x48] sm:$0xff]
    %v410 = vld [vmem:[#allocation8 + $0x50] sm:$0xff]
    %v411 = vld [vmem:[#allocation8 + $0x58] sm:$0xff]
    %v412 = vld [vmem:[#allocation8 + $0x60] sm:$0xff]
    %v413 = vld [vmem:[#allocation8 + $0x68] sm:$0xff]
    %v414 = vld [vmem:[#allocation8 + $0x70] sm:$0xff]
    %v415 = vld [vmem:[#allocation8 + $0x78] sm:$0xff]
    %v416 = vld [vmem:[#allocation8 + $0x80] sm:$0xff]
    %v417 = vld [vmem:[#allocation8 + $0x88] sm:$0xff]
    %v418 = vld [vmem:[#allocation8 + $0x90] sm:$0xff]
    %v419 = vld [vmem:[#allocation8 + $0x98] sm:$0xff]
    %v420 = vld [vmem:[#allocation8 + $0xa0] sm:$0xff]
    %v421 = vld [vmem:[#allocation8 + $0xa8] sm:$0xff]
    %v422 = vld [vmem:[#allocation8 + $0xb0] sm:$0xff]
    %v423 = vld [vmem:[#allocation8 + $0xb8] sm:$0xff]
    %v424 = vld [vmem:[#allocation8 + $0xc0] sm:$0xff]
    %v425 = vld [vmem:[#allocation8 + $0xc8] sm:$0xff]
    %v426 = vld [vmem:[#allocation8 + $0xd0] sm:$0xff]
    %v427 = vld [vmem:[#allocation8 + $0xd8] sm:$0xff]
    %v428 = vld [vmem:[#allocation8 + $0xe0] sm:$0xff]
    %v429 = vld [vmem:[#allocation8 + $0xe8] sm:$0xff]
    %v430 = vld [vmem:[#allocation8 + $0xf0] sm:$0xff]
    %v431 = vld [vmem:[#allocation8 + $0xf8] sm:$0xff]
    %v432 = vld [vmem:[#allocation8 + $0x100] sm:$0xff]
    %v433 = vld [vmem:[#allocation8 + $0x108] sm:$0xff]
    %v434 = vld [vmem:[#allocation8 + $0x110] sm:$0xff]
    %v435 = vld [vmem:[#allocation8 + $0x118] sm:$0xff]
    %v436 = vld [vmem:[#allocation8 + $0x120] sm:$0xff]
    %v437 = vld [vmem:[#allocation8 + $0x128] sm:$0xff]
    %v438 = vld [vmem:[#allocation8 + $0x130] sm:$0xff]
    %v439 = vld [vmem:[#allocation8 + $0x138] sm:$0xff]
    %v440 = vld [vmem:[#allocation8 + $0x140] sm:$0xff]
    %v441 = vld [vmem:[#allocation8 + $0x148] sm:$0xff]
    %v442 = vld [vmem:[#allocation8 + $0x150] sm:$0xff]
    %v443 = vld [vmem:[#allocation8 + $0x158] sm:$0xff]
    %v444 = vld [vmem:[#allocation8 + $0x160] sm:$0xff]
    %v445 = vld [vmem:[#allocation8 + $0x168] sm:$0xff]
    %v446 = vld [vmem:[#allocation8 + $0x170] sm:$0xff]
    %v447 = vld [vmem:[#allocation8 + $0x178] sm:$0xff]
    %v448 = vld [vmem:[#allocation8 + $0x180] sm:$0xff]
    %v449 = vld [vmem:[#allocation8 + $0x188] sm:$0xff]
    %v450 = vld [vmem:[#allocation8 + $0x190] sm:$0xff]
    %v451 = vld [vmem:[#allocation8 + $0x198] sm:$0xff]
    %v452 = vld [vmem:[#allocation8 + $0x1a0] sm:$0xff]
    %v453 = vld [vmem:[#allocation8 + $0x1a8] sm:$0xff]
    %v454 = vld [vmem:[#allocation8 + $0x1b0] sm:$0xff]
    %v455 = vld [vmem:[#allocation8 + $0x1b8] sm:$0xff]
    %v456 = vld [vmem:[#allocation8 + $0x1c0] sm:$0xff]
    %v457 = vld [vmem:[#allocation8 + $0x1c8] sm:$0xff]
    %v458 = vld [vmem:[#allocation8 + $0x1d0] sm:$0xff]
    %v459 = vld [vmem:[#allocation8 + $0x1d8] sm:$0xff]
    %v460 = vld [vmem:[#allocation8 + $0x1e0] sm:$0xff]
    %v461 = vld [vmem:[#allocation8 + $0x1e8] sm:$0xff]
    %v462 = vld [vmem:[#allocation8 + $0x1f0] sm:$0xff]
    %v463 = vld [vmem:[#allocation8 + $0x1f8] sm:$0xff]
    %v464 = vld [vmem:[#allocation8 + $0x200] sm:$0xff]
    %v465 = vld [vmem:[#allocation8 + $0x208] sm:$0xff]
    %v466 = vld [vmem:[#allocation8 + $0x210] sm:$0xff]
    %v467 = vld [vmem:[#allocation8 + $0x218] sm:$0xff]
    %v468 = vld [vmem:[#allocation8 + $0x220] sm:$0xff]
    %v469 = vld [vmem:[#allocation8 + $0x228] sm:$0xff]
    %v470 = vld [vmem:[#allocation8 + $0x230] sm:$0xff]
    %v471 = vld [vmem:[#allocation8 + $0x238] sm:$0xff]
    %v472 = vld [vmem:[#allocation8 + $0x240] sm:$0xff]
    %v473 = vld [vmem:[#allocation8 + $0x248] sm:$0xff]
    %v474 = vld [vmem:[#allocation8 + $0x250] sm:$0xff]
    %v475 = vld [vmem:[#allocation8 + $0x258] sm:$0xff]
    %v476 = vld [vmem:[#allocation8 + $0x260] sm:$0xff]
    %v477 = vld [vmem:[#allocation8 + $0x268] sm:$0xff]
    %v478 = vld [vmem:[#allocation8 + $0x270] sm:$0xff]
    %v479 = vld [vmem:[#allocation8 + $0x278] sm:$0xff]
    %v480 = vld [vmem:[#allocation8 + $0x280] sm:$0xff]
    %v481 = vld [vmem:[#allocation8 + $0x288] sm:$0xff]
    %v482 = vld [vmem:[#allocation8 + $0x290] sm:$0xff]
    %v483 = vld [vmem:[#allocation8 + $0x298] sm:$0xff]
    %v484 = vld [vmem:[#allocation8 + $0x2a0] sm:$0xff]
    %v485 = vld [vmem:[#allocation8 + $0x2a8] sm:$0xff]
    %v486 = vld [vmem:[#allocation8 + $0x2b0] sm:$0xff]
    %v487 = vld [vmem:[#allocation8 + $0x2b8] sm:$0xff]
    %v488 = vld [vmem:[#allocation8 + $0x2c0] sm:$0xff]
    %v489 = vld [vmem:[#allocation8 + $0x2c8] sm:$0xff]
    %v490 = vld [vmem:[#allocation8 + $0x2d0] sm:$0xff]
    %v491 = vld [vmem:[#allocation8 + $0x2d8] sm:$0xff]
    %v492 = vld [vmem:[#allocation8 + $0x2e0] sm:$0xff]
    %v493 = vld [vmem:[#allocation8 + $0x2e8] sm:$0xff]
    %v494 = vld [vmem:[#allocation8 + $0x2f0] sm:$0xff]
    %v495 = vld [vmem:[#allocation8 + $0x2f8] sm:$0xff]
    %v496 = vld [vmem:[#allocation8 + $0x300] sm:$0xff]
    %v497 = vld [vmem:[#allocation8 + $0x308] sm:$0xff]
    %v498 = vld [vmem:[#allocation8 + $0x310] sm:$0xff]
    %v499 = vld [vmem:[#allocation8 + $0x318] sm:$0xff]
    %v500 = vld [vmem:[#allocation8 + $0x320] sm:$0xff]
    %v501 = vld [vmem:[#allocation8 + $0x328] sm:$0xff]
    %v502 = vld [vmem:[#allocation8 + $0x330] sm:$0xff]
    %v503 = vld [vmem:[#allocation8 + $0x338] sm:$0xff]
    %v504 = vld [vmem:[#allocation8 + $0x340] sm:$0xff]
    %v505 = vld [vmem:[#allocation8 + $0x348] sm:$0xff]
    %v506 = vld [vmem:[#allocation8 + $0x350] sm:$0xff]
    %v507 = vld [vmem:[#allocation8 + $0x358] sm:$0xff]
    %v508 = vld [vmem:[#allocation8 + $0x360] sm:$0xff]
    %v509 = vld [vmem:[#allocation8 + $0x368] sm:$0xff]
    %v510 = vld [vmem:[#allocation8 + $0x370] sm:$0xff]
    %v511 = vld [vmem:[#allocation8 + $0x378] sm:$0xff]
    %v512 = vld [vmem:[#allocation8 + $0x380] sm:$0xff]
    %v513 = vld [vmem:[#allocation8 + $0x388] sm:$0xff]
    %v514 = vld [vmem:[#allocation8 + $0x390] sm:$0xff]
    %v515 = vld [vmem:[#allocation8 + $0x398] sm:$0xff]
    %v516 = vld [vmem:[#allocation8 + $0x3a0] sm:$0xff]
    %v517 = vld [vmem:[#allocation8 + $0x3a8] sm:$0xff]
    %v518 = vld [vmem:[#allocation8 + $0x3b0] sm:$0xff]
    %v519 = vld [vmem:[#allocation8 + $0x3b8] sm:$0xff]
    %v520 = vld [vmem:[#allocation8 + $0x3c0] sm:$0xff]
    %v521 = vld [vmem:[#allocation8 + $0x3c8] sm:$0xff]
    %v522 = vld [vmem:[#allocation8 + $0x3d0] sm:$0xff]
    %v523 = vld [vmem:[#allocation8 + $0x3d8] sm:$0xff]
    %v524 = vld [vmem:[#allocation8 + $0x3e0] sm:$0xff]
    %v525 = vld [vmem:[#allocation8 + $0x3e8] sm:$0xff]
    %v526 = vld [vmem:[#allocation8 + $0x3f0] sm:$0xff]
    %v527 = vld [vmem:[#allocation8 + $0x3f8] sm:$0xff]
    %v528 = vld [vmem:[%s4] sm:$0xf]
    %v530 = vlaneseq
    %v531 = vshrl.u32 %v530, 7
    %v532 = vsub.s32 0, %v531
    %v533 = vrot.slane %v528, %v532
    %v534 = vlaneseq
    %v535 = vshrl.u32 %v534, 7
    %v536 = vsub.s32 1, %v535
    %v537 = vrot.slane %v528, %v536
    %v538 = vlaneseq
    %v539 = vshrl.u32 %v538, 7
    %v540 = vsub.s32 2, %v539
    %v541 = vrot.slane %v528, %v540
    %v542 = vlaneseq
    %v543 = vshrl.u32 %v542, 7
    %v544 = vsub.s32 3, %v543
    %v545 = vrot.slane %v528, %v544
    %v678 = vunpack.c.l.b16 %v400
    %v679 = vunpack.c.h.b16 %v400
    %v680 = vunpack.c.l.b16 %v401
    %v681 = vunpack.c.h.b16 %v401
    %v682 = vunpack.c.l.b16 %v402
    %v683 = vunpack.c.h.b16 %v402
    %v684 = vunpack.c.l.b16 %v403
    %v685 = vunpack.c.h.b16 %v403
    %v686 = vunpack.c.l.b16 %v404
    %v687 = vunpack.c.h.b16 %v404
    %v688 = vunpack.c.l.b16 %v405
    %v689 = vunpack.c.h.b16 %v405
    %v690 = vunpack.c.l.b16 %v406
    %v691 = vunpack.c.h.b16 %v406
    %v692 = vunpack.c.l.b16 %v407
    %v693 = vunpack.c.h.b16 %v407
    %v694 = vunpack.c.l.b16 %v408
    %v695 = vunpack.c.h.b16 %v408
    %v696 = vunpack.c.l.b16 %v409
    %v697 = vunpack.c.h.b16 %v409
    %v698 = vunpack.c.l.b16 %v410
    %v699 = vunpack.c.h.b16 %v410
    %v700 = vunpack.c.l.b16 %v411
    %v701 = vunpack.c.h.b16 %v411
    %v702 = vunpack.c.l.b16 %v412
    %v703 = vunpack.c.h.b16 %v412
    %v704 = vunpack.c.l.b16 %v413
    %v705 = vunpack.c.h.b16 %v413
    %v706 = vunpack.c.l.b16 %v414
    %v707 = vunpack.c.h.b16 %v414
    %v708 = vunpack.c.l.b16 %v415
    %v709 = vunpack.c.h.b16 %v415
    %v710 = vunpack.c.l.b16 %v416
    %v711 = vunpack.c.h.b16 %v416
    %v712 = vunpack.c.l.b16 %v417
    %v713 = vunpack.c.h.b16 %v417
    %v714 = vunpack.c.l.b16 %v418
    %v715 = vunpack.c.h.b16 %v418
    %v716 = vunpack.c.l.b16 %v419
    %v717 = vunpack.c.h.b16 %v419
    %v718 = vunpack.c.l.b16 %v420
    %v719 = vunpack.c.h.b16 %v420
    %v720 = vunpack.c.l.b16 %v421
    %v721 = vunpack.c.h.b16 %v421
    %v722 = vunpack.c.l.b16 %v422
    %v723 = vunpack.c.h.b16 %v422
    %v724 = vunpack.c.l.b16 %v423
    %v725 = vunpack.c.h.b16 %v423
    %v726 = vunpack.c.l.b16 %v424
    %v727 = vunpack.c.h.b16 %v424
    %v728 = vunpack.c.l.b16 %v425
    %v729 = vunpack.c.h.b16 %v425
    %v730 = vunpack.c.l.b16 %v426
    %v731 = vunpack.c.h.b16 %v426
    %v732 = vunpack.c.l.b16 %v427
    %v733 = vunpack.c.h.b16 %v427
    %v734 = vunpack.c.l.b16 %v428
    %v735 = vunpack.c.h.b16 %v428
    %v736 = vunpack.c.l.b16 %v429
    %v737 = vunpack.c.h.b16 %v429
    %v738 = vunpack.c.l.b16 %v430
    %v739 = vunpack.c.h.b16 %v430
    %v740 = vunpack.c.l.b16 %v431
    %v741 = vunpack.c.h.b16 %v431
    %v742 = vunpack.c.l.b16 %v432
    %v743 = vunpack.c.h.b16 %v432
    %v744 = vunpack.c.l.b16 %v433
    %v745 = vunpack.c.h.b16 %v433
    %v746 = vunpack.c.l.b16 %v434
    %v747 = vunpack.c.h.b16 %v434
    %v748 = vunpack.c.l.b16 %v435
    %v749 = vunpack.c.h.b16 %v435
    %v750 = vunpack.c.l.b16 %v436
    %v751 = vunpack.c.h.b16 %v436
    %v752 = vunpack.c.l.b16 %v437
    %v753 = vunpack.c.h.b16 %v437
    %v754 = vunpack.c.l.b16 %v438
    %v755 = vunpack.c.h.b16 %v438
    %v756 = vunpack.c.l.b16 %v439
    %v757 = vunpack.c.h.b16 %v439
    %v758 = vunpack.c.l.b16 %v440
    %v759 = vunpack.c.h.b16 %v440
    %v760 = vunpack.c.l.b16 %v441
    %v761 = vunpack.c.h.b16 %v441
    %v762 = vunpack.c.l.b16 %v442
    %v763 = vunpack.c.h.b16 %v442
    %v764 = vunpack.c.l.b16 %v443
    %v765 = vunpack.c.h.b16 %v443
    %v766 = vunpack.c.l.b16 %v444
    %v767 = vunpack.c.h.b16 %v444
    %v768 = vunpack.c.l.b16 %v445
    %v769 = vunpack.c.h.b16 %v445
    %v770 = vunpack.c.l.b16 %v446
    %v771 = vunpack.c.h.b16 %v446
    %v772 = vunpack.c.l.b16 %v447
    %v773 = vunpack.c.h.b16 %v447
    %v774 = vunpack.c.l.b16 %v448
    %v775 = vunpack.c.h.b16 %v448
    %v776 = vunpack.c.l.b16 %v449
    %v777 = vunpack.c.h.b16 %v449
    %v778 = vunpack.c.l.b16 %v450
    %v779 = vunpack.c.h.b16 %v450
    %v780 = vunpack.c.l.b16 %v451
    %v781 = vunpack.c.h.b16 %v451
    %v782 = vunpack.c.l.b16 %v452
    %v783 = vunpack.c.h.b16 %v452
    %v784 = vunpack.c.l.b16 %v453
    %v785 = vunpack.c.h.b16 %v453
    %v786 = vunpack.c.l.b16 %v454
    %v787 = vunpack.c.h.b16 %v454
    %v788 = vunpack.c.l.b16 %v455
    %v789 = vunpack.c.h.b16 %v455
    %v790 = vunpack.c.l.b16 %v456
    %v791 = vunpack.c.h.b16 %v456
    %v792 = vunpack.c.l.b16 %v457
    %v793 = vunpack.c.h.b16 %v457
    %v794 = vunpack.c.l.b16 %v458
    %v795 = vunpack.c.h.b16 %v458
    %v796 = vunpack.c.l.b16 %v459
    %v797 = vunpack.c.h.b16 %v459
    %v798 = vunpack.c.l.b16 %v460
    %v799 = vunpack.c.h.b16 %v460
    %v800 = vunpack.c.l.b16 %v461
    %v801 = vunpack.c.h.b16 %v461
    %v802 = vunpack.c.l.b16 %v462
    %v803 = vunpack.c.h.b16 %v462
    %v804 = vunpack.c.l.b16 %v463
    %v805 = vunpack.c.h.b16 %v463
    %v806 = vunpack.c.l.b16 %v464
    %v807 = vunpack.c.h.b16 %v464
    %v808 = vunpack.c.l.b16 %v465
    %v809 = vunpack.c.h.b16 %v465
    %v810 = vunpack.c.l.b16 %v466
    %v811 = vunpack.c.h.b16 %v466
    %v812 = vunpack.c.l.b16 %v467
    %v813 = vunpack.c.h.b16 %v467
    %v814 = vunpack.c.l.b16 %v468
    %v815 = vunpack.c.h.b16 %v468
    %v816 = vunpack.c.l.b16 %v469
    %v817 = vunpack.c.h.b16 %v469
    %v818 = vunpack.c.l.b16 %v470
    %v819 = vunpack.c.h.b16 %v470
    %v820 = vunpack.c.l.b16 %v471
    %v821 = vunpack.c.h.b16 %v471
    %v822 = vunpack.c.l.b16 %v472
    %v823 = vunpack.c.h.b16 %v472
    %v824 = vunpack.c.l.b16 %v473
    %v825 = vunpack.c.h.b16 %v473
    %v826 = vunpack.c.l.b16 %v474
    %v827 = vunpack.c.h.b16 %v474
    %v828 = vunpack.c.l.b16 %v475
    %v829 = vunpack.c.h.b16 %v475
    %v830 = vunpack.c.l.b16 %v476
    %v831 = vunpack.c.h.b16 %v476
    %v832 = vunpack.c.l.b16 %v477
    %v833 = vunpack.c.h.b16 %v477
    %v834 = vunpack.c.l.b16 %v478
    %v835 = vunpack.c.h.b16 %v478
    %v836 = vunpack.c.l.b16 %v479
    %v837 = vunpack.c.h.b16 %v479
    %v838 = vunpack.c.l.b16 %v480
    %v839 = vunpack.c.h.b16 %v480
    %v840 = vunpack.c.l.b16 %v481
    %v841 = vunpack.c.h.b16 %v481
    %v842 = vunpack.c.l.b16 %v482
    %v843 = vunpack.c.h.b16 %v482
    %v844 = vunpack.c.l.b16 %v483
    %v845 = vunpack.c.h.b16 %v483
    %v846 = vunpack.c.l.b16 %v484
    %v847 = vunpack.c.h.b16 %v484
    %v848 = vunpack.c.l.b16 %v485
    %v849 = vunpack.c.h.b16 %v485
    %v850 = vunpack.c.l.b16 %v486
    %v851 = vunpack.c.h.b16 %v486
    %v852 = vunpack.c.l.b16 %v487
    %v853 = vunpack.c.h.b16 %v487
    %v854 = vunpack.c.l.b16 %v488
    %v855 = vunpack.c.h.b16 %v488
    %v856 = vunpack.c.l.b16 %v489
    %v857 = vunpack.c.h.b16 %v489
    %v858 = vunpack.c.l.b16 %v490
    %v859 = vunpack.c.h.b16 %v490
    %v860 = vunpack.c.l.b16 %v491
    %v861 = vunpack.c.h.b16 %v491
    %v862 = vunpack.c.l.b16 %v492
    %v863 = vunpack.c.h.b16 %v492
    %v864 = vunpack.c.l.b16 %v493
    %v865 = vunpack.c.h.b16 %v493
    %v866 = vunpack.c.l.b16 %v494
    %v867 = vunpack.c.h.b16 %v494
    %v868 = vunpack.c.l.b16 %v495
    %v869 = vunpack.c.h.b16 %v495
    %v870 = vunpack.c.l.b16 %v496
    %v871 = vunpack.c.h.b16 %v496
    %v872 = vunpack.c.l.b16 %v497
    %v873 = vunpack.c.h.b16 %v497
    %v874 = vunpack.c.l.b16 %v498
    %v875 = vunpack.c.h.b16 %v498
    %v876 = vunpack.c.l.b16 %v499
    %v877 = vunpack.c.h.b16 %v499
    %v878 = vunpack.c.l.b16 %v500
    %v879 = vunpack.c.h.b16 %v500
    %v880 = vunpack.c.l.b16 %v501
    %v881 = vunpack.c.h.b16 %v501
    %v882 = vunpack.c.l.b16 %v502
    %v883 = vunpack.c.h.b16 %v502
    %v884 = vunpack.c.l.b16 %v503
    %v885 = vunpack.c.h.b16 %v503
    %v886 = vunpack.c.l.b16 %v504
    %v887 = vunpack.c.h.b16 %v504
    %v888 = vunpack.c.l.b16 %v505
    %v889 = vunpack.c.h.b16 %v505
    %v890 = vunpack.c.l.b16 %v506
    %v891 = vunpack.c.h.b16 %v506
    %v892 = vunpack.c.l.b16 %v507
    %v893 = vunpack.c.h.b16 %v507
    %v894 = vunpack.c.l.b16 %v508
    %v895 = vunpack.c.h.b16 %v508
    %v896 = vunpack.c.l.b16 %v509
    %v897 = vunpack.c.h.b16 %v509
    %v898 = vunpack.c.l.b16 %v510
    %v899 = vunpack.c.h.b16 %v510
    %v900 = vunpack.c.l.b16 %v511
    %v901 = vunpack.c.h.b16 %v511
    %v902 = vunpack.c.l.b16 %v512
    %v903 = vunpack.c.h.b16 %v512
    %v904 = vunpack.c.l.b16 %v513
    %v905 = vunpack.c.h.b16 %v513
    %v906 = vunpack.c.l.b16 %v514
    %v907 = vunpack.c.h.b16 %v514
    %v908 = vunpack.c.l.b16 %v515
    %v909 = vunpack.c.h.b16 %v515
    %v910 = vunpack.c.l.b16 %v516
    %v911 = vunpack.c.h.b16 %v516
    %v912 = vunpack.c.l.b16 %v517
    %v913 = vunpack.c.h.b16 %v517
    %v914 = vunpack.c.l.b16 %v518
    %v915 = vunpack.c.h.b16 %v518
    %v916 = vunpack.c.l.b16 %v519
    %v917 = vunpack.c.h.b16 %v519
    %v918 = vunpack.c.l.b16 %v520
    %v919 = vunpack.c.h.b16 %v520
    %v920 = vunpack.c.l.b16 %v521
    %v921 = vunpack.c.h.b16 %v521
    %v922 = vunpack.c.l.b16 %v522
    %v923 = vunpack.c.h.b16 %v522
    %v924 = vunpack.c.l.b16 %v523
    %v925 = vunpack.c.h.b16 %v523
    %v926 = vunpack.c.l.b16 %v524
    %v927 = vunpack.c.h.b16 %v524
    %v928 = vunpack.c.l.b16 %v525
    %v929 = vunpack.c.h.b16 %v525
    %v930 = vunpack.c.l.b16 %v526
    %v931 = vunpack.c.h.b16 %v526
    %v932 = vunpack.c.l.b16 %v527
    %v933 = vunpack.c.h.b16 %v527
    %v934 = vpack.c.b16 %v682, %v678
    %v935 = vpack.c.b16 %v683, %v679
    %v936 = vpack.c.b16 %v684, %v680
    %v937 = vpack.c.b16 %v685, %v681
    %v938 = vpack.c.b16 %v690, %v686
    %v939 = vpack.c.b16 %v691, %v687
    %v940 = vpack.c.b16 %v692, %v688
    %v941 = vpack.c.b16 %v693, %v689
    %v942 = vpack.c.b16 %v698, %v694
    %v943 = vpack.c.b16 %v699, %v695
    %v944 = vpack.c.b16 %v700, %v696
    %v945 = vpack.c.b16 %v701, %v697
    %v946 = vpack.c.b16 %v706, %v702
    %v947 = vpack.c.b16 %v707, %v703
    %v948 = vpack.c.b16 %v708, %v704
    %v949 = vpack.c.b16 %v709, %v705
    %v950 = vpack.c.b16 %v714, %v710
    %v951 = vpack.c.b16 %v715, %v711
    %v952 = vpack.c.b16 %v716, %v712
    %v953 = vpack.c.b16 %v717, %v713
    %v954 = vpack.c.b16 %v722, %v718
    %v955 = vpack.c.b16 %v723, %v719
    %v956 = vpack.c.b16 %v724, %v720
    %v957 = vpack.c.b16 %v725, %v721
    %v958 = vpack.c.b16 %v730, %v726
    %v959 = vpack.c.b16 %v731, %v727
    %v960 = vpack.c.b16 %v732, %v728
    %v961 = vpack.c.b16 %v733, %v729
    %v962 = vpack.c.b16 %v738, %v734
    %v963 = vpack.c.b16 %v739, %v735
    %v964 = vpack.c.b16 %v740, %v736
    %v965 = vpack.c.b16 %v741, %v737
    %v966 = vpack.c.b16 %v746, %v742
    %v967 = vpack.c.b16 %v747, %v743
    %v968 = vpack.c.b16 %v748, %v744
    %v969 = vpack.c.b16 %v749, %v745
    %v970 = vpack.c.b16 %v754, %v750
    %v971 = vpack.c.b16 %v755, %v751
    %v972 = vpack.c.b16 %v756, %v752
    %v973 = vpack.c.b16 %v757, %v753
    %v974 = vpack.c.b16 %v762, %v758
    %v975 = vpack.c.b16 %v763, %v759
    %v976 = vpack.c.b16 %v764, %v760
    %v977 = vpack.c.b16 %v765, %v761
    %v978 = vpack.c.b16 %v770, %v766
    %v979 = vpack.c.b16 %v771, %v767
    %v980 = vpack.c.b16 %v772, %v768
    %v981 = vpack.c.b16 %v773, %v769
    %v982 = vpack.c.b16 %v778, %v774
    %v983 = vpack.c.b16 %v779, %v775
    %v984 = vpack.c.b16 %v780, %v776
    %v985 = vpack.c.b16 %v781, %v777
    %v986 = vpack.c.b16 %v786, %v782
    %v987 = vpack.c.b16 %v787, %v783
    %v988 = vpack.c.b16 %v788, %v784
    %v989 = vpack.c.b16 %v789, %v785
    %v990 = vpack.c.b16 %v794, %v790
    %v991 = vpack.c.b16 %v795, %v791
    %v992 = vpack.c.b16 %v796, %v792
    %v993 = vpack.c.b16 %v797, %v793
    %v994 = vpack.c.b16 %v802, %v798
    %v995 = vpack.c.b16 %v803, %v799
    %v996 = vpack.c.b16 %v804, %v800
    %v997 = vpack.c.b16 %v805, %v801
    %v998 = vpack.c.b16 %v810, %v806
    %v999 = vpack.c.b16 %v811, %v807
    %v1000 = vpack.c.b16 %v812, %v808
    %v1001 = vpack.c.b16 %v813, %v809
    %v1002 = vpack.c.b16 %v818, %v814
    %v1003 = vpack.c.b16 %v819, %v815
    %v1004 = vpack.c.b16 %v820, %v816
    %v1005 = vpack.c.b16 %v821, %v817
    %v1006 = vpack.c.b16 %v826, %v822
    %v1007 = vpack.c.b16 %v827, %v823
    %v1008 = vpack.c.b16 %v828, %v824
    %v1009 = vpack.c.b16 %v829, %v825
    %v1010 = vpack.c.b16 %v834, %v830
    %v1011 = vpack.c.b16 %v835, %v831
    %v1012 = vpack.c.b16 %v836, %v832
    %v1013 = vpack.c.b16 %v837, %v833
    %v1014 = vpack.c.b16 %v842, %v838
    %v1015 = vpack.c.b16 %v843, %v839
    %v1016 = vpack.c.b16 %v844, %v840
    %v1017 = vpack.c.b16 %v845, %v841
    %v1018 = vpack.c.b16 %v850, %v846
    %v1019 = vpack.c.b16 %v851, %v847
    %v1020 = vpack.c.b16 %v852, %v848
    %v1021 = vpack.c.b16 %v853, %v849
    %v1022 = vpack.c.b16 %v858, %v854
    %v1023 = vpack.c.b16 %v859, %v855
    %v1024 = vpack.c.b16 %v860, %v856
    %v1025 = vpack.c.b16 %v861, %v857
    %v1026 = vpack.c.b16 %v866, %v862
    %v1027 = vpack.c.b16 %v867, %v863
    %v1028 = vpack.c.b16 %v868, %v864
    %v1029 = vpack.c.b16 %v869, %v865
    %v1030 = vpack.c.b16 %v874, %v870
    %v1031 = vpack.c.b16 %v875, %v871
    %v1032 = vpack.c.b16 %v876, %v872
    %v1033 = vpack.c.b16 %v877, %v873
    %v1034 = vpack.c.b16 %v882, %v878
    %v1035 = vpack.c.b16 %v883, %v879
    %v1036 = vpack.c.b16 %v884, %v880
    %v1037 = vpack.c.b16 %v885, %v881
    %v1038 = vpack.c.b16 %v890, %v886
    %v1039 = vpack.c.b16 %v891, %v887
    %v1040 = vpack.c.b16 %v892, %v888
    %v1041 = vpack.c.b16 %v893, %v889
    %v1042 = vpack.c.b16 %v898, %v894
    %v1043 = vpack.c.b16 %v899, %v895
    %v1044 = vpack.c.b16 %v900, %v896
    %v1045 = vpack.c.b16 %v901, %v897
    %v1046 = vpack.c.b16 %v906, %v902
    %v1047 = vpack.c.b16 %v907, %v903
    %v1048 = vpack.c.b16 %v908, %v904
    %v1049 = vpack.c.b16 %v909, %v905
    %v1050 = vpack.c.b16 %v914, %v910
    %v1051 = vpack.c.b16 %v915, %v911
    %v1052 = vpack.c.b16 %v916, %v912
    %v1053 = vpack.c.b16 %v917, %v913
    %v1054 = vpack.c.b16 %v922, %v918
    %v1055 = vpack.c.b16 %v923, %v919
    %v1056 = vpack.c.b16 %v924, %v920
    %v1057 = vpack.c.b16 %v925, %v921
    %v1058 = vpack.c.b16 %v930, %v926
    %v1059 = vpack.c.b16 %v931, %v927
    %v1060 = vpack.c.b16 %v932, %v928
    %v1061 = vpack.c.b16 %v933, %v929
    %1190 = vmatprep.subr.bf16.mxu0 %v963
    %1191 = vmatpush1.bf16.msra.mxu0 %v962
    %1192 = vmatprep.subr.bf16.mxu0 %v959
    %1193 = vmatpush1.bf16.msra.mxu0 %v958
    %1194 = vmatprep.subr.bf16.mxu0 %v955
    %1195 = vmatpush1.bf16.msra.mxu0 %v954
    %1196 = vmatprep.subr.bf16.mxu0 %v951
    %1197 = vmatpush1.bf16.msra.mxu0 %v950
    %1198 = vmatprep.subr.bf16.mxu0 %v947
    %1199 = vmatpush1.bf16.msra.mxu0 %v946
    %1200 = vmatprep.subr.bf16.mxu0 %v943
    %1201 = vmatpush1.bf16.msra.mxu0 %v942
    %1202 = vmatprep.subr.bf16.mxu0 %v939
    %1203 = vmatpush1.bf16.msra.mxu0 %v938
    %1204 = vmatprep.subr.bf16.mxu0 %v935
    %1205 = vmatpush1.bf16.msra.mxu0 %v934
    %1206 = vmatprep.subr.bf16.mxu0 %v995
    %1207 = vmatpush2.bf16.msra.mxu0 %v994
    %1208 = vmatprep.subr.bf16.mxu0 %v991
    %1209 = vmatpush2.bf16.msra.mxu0 %v990
    %1210 = vmatprep.subr.bf16.mxu0 %v987
    %1211 = vmatpush2.bf16.msra.mxu0 %v986
    %1212 = vmatprep.subr.bf16.mxu0 %v983
    %1213 = vmatpush2.bf16.msra.mxu0 %v982
    %1214 = vmatprep.subr.bf16.mxu0 %v979
    %1215 = vmatpush2.bf16.msra.mxu0 %v978
    %1216 = vmatprep.subr.bf16.mxu0 %v975
    %1217 = vmatpush2.bf16.msra.mxu0 %v974
    %1218 = vmatprep.subr.bf16.mxu0 %v971
    %1219 = vmatpush2.bf16.msra.mxu0 %v970
    %1220 = vmatprep.subr.bf16.mxu0 %v967
    %1221 = vmatpush2.bf16.msra.mxu0 %v966
    %1222 = vmatprep.mubr.bf16.mxu0 %v397
    %1223 = vmatmul.mubr.bf16.gmra.mxu0 %v396
    %v1224 = vpop.f32.mrf.mxu0
    %v1225 = vadd.f32 %v533, %v1224
    %v1226 = vpop.f32.mrf.mxu0
    %v1227 = vadd.f32 %v537, %v1226
    %v1228 = vpop.f32.mrf.mxu0
    %v1229 = vpop.f32.mrf.mxu0
    %1230 = vdwg.mxu0
    %1231 = vmatprep.subr.bf16.mxu0 %v1027
    %1232 = vmatpush1.bf16.msra.mxu0 %v1026
    %1233 = vmatprep.subr.bf16.mxu0 %v1023
    %1234 = vmatpush1.bf16.msra.mxu0 %v1022
    %1235 = vmatprep.subr.bf16.mxu0 %v1019
    %1236 = vmatpush1.bf16.msra.mxu0 %v1018
    %1237 = vmatprep.subr.bf16.mxu0 %v1015
    %1238 = vmatpush1.bf16.msra.mxu0 %v1014
    %1239 = vmatprep.subr.bf16.mxu0 %v1011
    %1240 = vmatpush1.bf16.msra.mxu0 %v1010
    %1241 = vmatprep.subr.bf16.mxu0 %v1007
    %1242 = vmatpush1.bf16.msra.mxu0 %v1006
    %1243 = vmatprep.subr.bf16.mxu0 %v1003
    %1244 = vmatpush1.bf16.msra.mxu0 %v1002
    %1245 = vmatprep.subr.bf16.mxu0 %v999
    %1246 = vmatpush1.bf16.msra.mxu0 %v998
    %1247 = vmatprep.subr.bf16.mxu0 %v1059
    %1248 = vmatpush2.bf16.msra.mxu0 %v1058
    %1249 = vmatprep.subr.bf16.mxu0 %v1055
    %1250 = vmatpush2.bf16.msra.mxu0 %v1054
    %1251 = vmatprep.subr.bf16.mxu0 %v1051
    %1252 = vmatpush2.bf16.msra.mxu0 %v1050
    %1253 = vmatprep.subr.bf16.mxu0 %v1047
    %1254 = vmatpush2.bf16.msra.mxu0 %v1046
    %1255 = vmatprep.subr.bf16.mxu0 %v1043
    %1256 = vmatpush2.bf16.msra.mxu0 %v1042
    %1257 = vmatprep.subr.bf16.mxu0 %v1039
    %1258 = vmatpush2.bf16.msra.mxu0 %v1038
    %1259 = vmatprep.subr.bf16.mxu0 %v1035
    %1260 = vmatpush2.bf16.msra.mxu0 %v1034
    %1261 = vmatprep.subr.bf16.mxu0 %v1031
    %1262 = vmatpush2.bf16.msra.mxu0 %v1030
    %1263 = vmatprep.mubr.bf16.mxu0 %v399
    %1264 = vmatmul.mubr.bf16.gmra.mxu0 %v398
    %v1265 = vpop.f32.mrf.mxu0
    %v1266 = vadd.f32 %v1225, %v1265
    %v1267 = vpop.f32.mrf.mxu0
    %v1268 = vadd.f32 %v1227, %v1267
    %v1269 = vpop.f32.mrf.mxu0
    %v1270 = vpop.f32.mrf.mxu0
    %1271 = vdwg.mxu0
    %1272 = vmatprep.subr.bf16.mxu0 %v965
    %1273 = vmatpush1.bf16.msra.mxu0 %v964
    %1274 = vmatprep.subr.bf16.mxu0 %v961
    %1275 = vmatpush1.bf16.msra.mxu0 %v960
    %1276 = vmatprep.subr.bf16.mxu0 %v957
    %1277 = vmatpush1.bf16.msra.mxu0 %v956
    %1278 = vmatprep.subr.bf16.mxu0 %v953
    %1279 = vmatpush1.bf16.msra.mxu0 %v952
    %1280 = vmatprep.subr.bf16.mxu0 %v949
    %1281 = vmatpush1.bf16.msra.mxu0 %v948
    %1282 = vmatprep.subr.bf16.mxu0 %v945
    %1283 = vmatpush1.bf16.msra.mxu0 %v944
    %1284 = vmatprep.subr.bf16.mxu0 %v941
    %1285 = vmatpush1.bf16.msra.mxu0 %v940
    %1286 = vmatprep.subr.bf16.mxu0 %v937
    %1287 = vmatpush1.bf16.msra.mxu0 %v936
    %1288 = vmatprep.subr.bf16.mxu0 %v997
    %1289 = vmatpush2.bf16.msra.mxu0 %v996
    %1290 = vmatprep.subr.bf16.mxu0 %v993
    %1291 = vmatpush2.bf16.msra.mxu0 %v992
    %1292 = vmatprep.subr.bf16.mxu0 %v989
    %1293 = vmatpush2.bf16.msra.mxu0 %v988
    %1294 = vmatprep.subr.bf16.mxu0 %v985
    %1295 = vmatpush2.bf16.msra.mxu0 %v984
    %1296 = vmatprep.subr.bf16.mxu0 %v981
    %1297 = vmatpush2.bf16.msra.mxu0 %v980
    %1298 = vmatprep.subr.bf16.mxu0 %v977
    %1299 = vmatpush2.bf16.msra.mxu0 %v976
    %1300 = vmatprep.subr.bf16.mxu0 %v973
    %1301 = vmatpush2.bf16.msra.mxu0 %v972
    %1302 = vmatprep.subr.bf16.mxu0 %v969
    %1303 = vmatpush2.bf16.msra.mxu0 %v968
    %1304 = vmatprep.mubr.bf16.mxu0 %v397
    %1305 = vmatmul.mubr.bf16.gmra.mxu0 %v396
    %v1306 = vpop.f32.mrf.mxu0
    %v1307 = vadd.f32 %v541, %v1306
    %v1308 = vpop.f32.mrf.mxu0
    %v1309 = vadd.f32 %v545, %v1308
    %v1310 = vpop.f32.mrf.mxu0
    %v1311 = vpop.f32.mrf.mxu0
    %1312 = vdwg.mxu0
    %1313 = vmatprep.subr.bf16.mxu0 %v1029
    %1314 = vmatpush1.bf16.msra.mxu0 %v1028
    %1315 = vmatprep.subr.bf16.mxu0 %v1025
    %1316 = vmatpush1.bf16.msra.mxu0 %v1024
    %1317 = vmatprep.subr.bf16.mxu0 %v1021
    %1318 = vmatpush1.bf16.msra.mxu0 %v1020
    %1319 = vmatprep.subr.bf16.mxu0 %v1017
    %1320 = vmatpush1.bf16.msra.mxu0 %v1016
    %1321 = vmatprep.subr.bf16.mxu0 %v1013
    %1322 = vmatpush1.bf16.msra.mxu0 %v1012
    %1323 = vmatprep.subr.bf16.mxu0 %v1009
    %1324 = vmatpush1.bf16.msra.mxu0 %v1008
    %1325 = vmatprep.subr.bf16.mxu0 %v1005
    %1326 = vmatpush1.bf16.msra.mxu0 %v1004
    %1327 = vmatprep.subr.bf16.mxu0 %v1001
    %1328 = vmatpush1.bf16.msra.mxu0 %v1000
    %1329 = vmatprep.subr.bf16.mxu0 %v1061
    %1330 = vmatpush2.bf16.msra.mxu0 %v1060
    %1331 = vmatprep.subr.bf16.mxu0 %v1057
    %1332 = vmatpush2.bf16.msra.mxu0 %v1056
    %1333 = vmatprep.subr.bf16.mxu0 %v1053
    %1334 = vmatpush2.bf16.msra.mxu0 %v1052
    %1335 = vmatprep.subr.bf16.mxu0 %v1049
    %1336 = vmatpush2.bf16.msra.mxu0 %v1048
    %1337 = vmatprep.subr.bf16.mxu0 %v1045
    %1338 = vmatpush2.bf16.msra.mxu0 %v1044
    %1339 = vmatprep.subr.bf16.mxu0 %v1041
    %1340 = vmatpush2.bf16.msra.mxu0 %v1040
    %1341 = vmatprep.subr.bf16.mxu0 %v1037
    %1342 = vmatpush2.bf16.msra.mxu0 %v1036
    %1343 = vmatprep.subr.bf16.mxu0 %v1033
    %1344 = vmatpush2.bf16.msra.mxu0 %v1032
    %1345 = vmatprep.mubr.bf16.mxu0 %v399
    %1346 = vmatmul.mubr.bf16.gmra.mxu0 %v398
    %v1347 = vpop.f32.mrf.mxu0
    %v1348 = vadd.f32 %v1307, %v1347
    %v1349 = vpop.f32.mrf.mxu0
    %v1350 = vadd.f32 %v1309, %v1349
    %v1351 = vpop.f32.mrf.mxu0
    %v1352 = vpop.f32.mrf.mxu0
    %1353 = vdwg.mxu0
    %v1354 = vmax.f32 %v1266, 0.0
    %v1355 = vmax.f32 %v1268, 0.0
    %v1356 = vmax.f32 %v1348, 0.0
    %v1357 = vmax.f32 %v1350, 0.0
    %v1358 = vpack.c.bf16 %v1354, %v1354
    %v1359 = vpack.c.bf16 %v1355, %v1355
    %v1360 = vpack.c.bf16 %v1356, %v1356
    %v1361 = vpack.c.bf16 %v1357, %v1357
    %v1366 = vunpack.c.l.b16 %v1358
    %v1367 = vunpack.c.l.b16 %v1359
    %v1368 = vunpack.c.l.b16 %v1360
    %v1369 = vunpack.c.l.b16 %v1361
    %v1370 = vpack.c.b16 %v1367, %v1366
    %v1371 = vpack.c.b16 %v1369, %v1368
    %1374 = vst [vmem:[#allocation12] sm:$0xff] %v1370
    %1375 = vst [vmem:[#allocation12 + $0x8] sm:$0xff] %v1371
    %v1376 = vld [vmem:[#allocation10] sm:$0xf]
    %v1377 = vld [vmem:[#allocation10 + $0x4] sm:$0xf]
    %v1378 = vld [vmem:[#allocation10 + $0x8] sm:$0xf]
    %v1379 = vld [vmem:[#allocation10 + $0xc] sm:$0xf]
    %v1380 = vld [vmem:[#allocation10 + $0x10] sm:$0xf]
    %v1381 = vld [vmem:[#allocation10 + $0x14] sm:$0xf]
    %v1382 = vld [vmem:[#allocation10 + $0x18] sm:$0xf]
    %v1383 = vld [vmem:[#allocation10 + $0x1c] sm:$0xf]
    %v1384 = vld [vmem:[#allocation10 + $0x20] sm:$0xf]
    %v1385 = vld [vmem:[#allocation10 + $0x24] sm:$0xf]
    %v1386 = vld [vmem:[#allocation10 + $0x28] sm:$0xf]
    %v1387 = vld [vmem:[#allocation10 + $0x2c] sm:$0xf]
    %v1388 = vld [vmem:[#allocation10 + $0x30] sm:$0xf]
    %v1389 = vld [vmem:[#allocation10 + $0x34] sm:$0xf]
    %v1390 = vld [vmem:[#allocation10 + $0x38] sm:$0xf]
    %v1391 = vld [vmem:[#allocation10 + $0x3c] sm:$0xf]
    %v1392 = vld [vmem:[#allocation10 + $0x40] sm:$0xf]
    %v1393 = vld [vmem:[#allocation10 + $0x44] sm:$0xf]
    %v1394 = vld [vmem:[#allocation10 + $0x48] sm:$0xf]
    %v1395 = vld [vmem:[#allocation10 + $0x4c] sm:$0xf]
    %v1396 = vld [vmem:[#allocation10 + $0x50] sm:$0xf]
    %v1397 = vld [vmem:[#allocation10 + $0x54] sm:$0xf]
    %v1398 = vld [vmem:[#allocation10 + $0x58] sm:$0xf]
    %v1399 = vld [vmem:[#allocation10 + $0x5c] sm:$0xf]
    %v1400 = vld [vmem:[#allocation10 + $0x60] sm:$0xf]
    %v1401 = vld [vmem:[#allocation10 + $0x64] sm:$0xf]
    %v1402 = vld [vmem:[#allocation10 + $0x68] sm:$0xf]
    %v1403 = vld [vmem:[#allocation10 + $0x6c] sm:$0xf]
    %v1404 = vld [vmem:[#allocation10 + $0x70] sm:$0xf]
    %v1405 = vld [vmem:[#allocation10 + $0x74] sm:$0xf]
    %v1406 = vld [vmem:[#allocation10 + $0x78] sm:$0xf]
    %v1407 = vld [vmem:[#allocation10 + $0x7c] sm:$0xf]
    %v1408 = vld [vmem:[#allocation10 + $0x80] sm:$0xf]
    %v1409 = vld [vmem:[#allocation10 + $0x84] sm:$0xf]
    %v1410 = vld [vmem:[#allocation10 + $0x88] sm:$0xf]
    %v1411 = vld [vmem:[#allocation10 + $0x8c] sm:$0xf]
    %v1412 = vld [vmem:[#allocation10 + $0x90] sm:$0xf]
    %v1413 = vld [vmem:[#allocation10 + $0x94] sm:$0xf]
    %v1414 = vld [vmem:[#allocation10 + $0x98] sm:$0xf]
    %v1415 = vld [vmem:[#allocation10 + $0x9c] sm:$0xf]
    %v1416 = vld [vmem:[#allocation10 + $0xa0] sm:$0xf]
    %v1417 = vld [vmem:[#allocation10 + $0xa4] sm:$0xf]
    %v1418 = vld [vmem:[#allocation10 + $0xa8] sm:$0xf]
    %v1419 = vld [vmem:[#allocation10 + $0xac] sm:$0xf]
    %v1420 = vld [vmem:[#allocation10 + $0xb0] sm:$0xf]
    %v1421 = vld [vmem:[#allocation10 + $0xb4] sm:$0xf]
    %v1422 = vld [vmem:[#allocation10 + $0xb8] sm:$0xf]
    %v1423 = vld [vmem:[#allocation10 + $0xbc] sm:$0xf]
    %v1424 = vld [vmem:[#allocation10 + $0xc0] sm:$0xf]
    %v1425 = vld [vmem:[#allocation10 + $0xc4] sm:$0xf]
    %v1426 = vld [vmem:[#allocation10 + $0xc8] sm:$0xf]
    %v1427 = vld [vmem:[#allocation10 + $0xcc] sm:$0xf]
    %v1428 = vld [vmem:[#allocation10 + $0xd0] sm:$0xf]
    %v1429 = vld [vmem:[#allocation10 + $0xd4] sm:$0xf]
    %v1430 = vld [vmem:[#allocation10 + $0xd8] sm:$0xf]
    %v1431 = vld [vmem:[#allocation10 + $0xdc] sm:$0xf]
    %v1432 = vld [vmem:[#allocation10 + $0xe0] sm:$0xf]
    %v1433 = vld [vmem:[#allocation10 + $0xe4] sm:$0xf]
    %v1434 = vld [vmem:[#allocation10 + $0xe8] sm:$0xf]
    %v1435 = vld [vmem:[#allocation10 + $0xec] sm:$0xf]
    %v1436 = vld [vmem:[#allocation10 + $0xf0] sm:$0xf]
    %v1437 = vld [vmem:[#allocation10 + $0xf4] sm:$0xf]
    %v1438 = vld [vmem:[#allocation10 + $0xf8] sm:$0xf]
    %v1439 = vld [vmem:[#allocation10 + $0xfc] sm:$0xf]
    %v1440 = vld [vmem:[%s6] sm:$0x1]
    %v1442 = vlaneseq
    %v1443 = vshrl.u32 %v1442, 7
    %v1444 = vsub.s32 0, %v1443
    %v1445 = vrot.slane %v1440, %v1444
    %v1511 = vunpack.c.l.b16 %v1376
    %v1512 = vunpack.c.l.b16 %v1377
    %v1513 = vunpack.c.l.b16 %v1378
    %v1514 = vunpack.c.l.b16 %v1379
    %v1515 = vunpack.c.l.b16 %v1380
    %v1516 = vunpack.c.l.b16 %v1381
    %v1517 = vunpack.c.l.b16 %v1382
    %v1518 = vunpack.c.l.b16 %v1383
    %v1519 = vunpack.c.l.b16 %v1384
    %v1520 = vunpack.c.l.b16 %v1385
    %v1521 = vunpack.c.l.b16 %v1386
    %v1522 = vunpack.c.l.b16 %v1387
    %v1523 = vunpack.c.l.b16 %v1388
    %v1524 = vunpack.c.l.b16 %v1389
    %v1525 = vunpack.c.l.b16 %v1390
    %v1526 = vunpack.c.l.b16 %v1391
    %v1527 = vunpack.c.l.b16 %v1392
    %v1528 = vunpack.c.l.b16 %v1393
    %v1529 = vunpack.c.l.b16 %v1394
    %v1530 = vunpack.c.l.b16 %v1395
    %v1531 = vunpack.c.l.b16 %v1396
    %v1532 = vunpack.c.l.b16 %v1397
    %v1533 = vunpack.c.l.b16 %v1398
    %v1534 = vunpack.c.l.b16 %v1399
    %v1535 = vunpack.c.l.b16 %v1400
    %v1536 = vunpack.c.l.b16 %v1401
    %v1537 = vunpack.c.l.b16 %v1402
    %v1538 = vunpack.c.l.b16 %v1403
    %v1539 = vunpack.c.l.b16 %v1404
    %v1540 = vunpack.c.l.b16 %v1405
    %v1541 = vunpack.c.l.b16 %v1406
    %v1542 = vunpack.c.l.b16 %v1407
    %v1543 = vunpack.c.l.b16 %v1408
    %v1544 = vunpack.c.l.b16 %v1409
    %v1545 = vunpack.c.l.b16 %v1410
    %v1546 = vunpack.c.l.b16 %v1411
    %v1547 = vunpack.c.l.b16 %v1412
    %v1548 = vunpack.c.l.b16 %v1413
    %v1549 = vunpack.c.l.b16 %v1414
    %v1550 = vunpack.c.l.b16 %v1415
    %v1551 = vunpack.c.l.b16 %v1416
    %v1552 = vunpack.c.l.b16 %v1417
    %v1553 = vunpack.c.l.b16 %v1418
    %v1554 = vunpack.c.l.b16 %v1419
    %v1555 = vunpack.c.l.b16 %v1420
    %v1556 = vunpack.c.l.b16 %v1421
    %v1557 = vunpack.c.l.b16 %v1422
    %v1558 = vunpack.c.l.b16 %v1423
    %v1559 = vunpack.c.l.b16 %v1424
    %v1560 = vunpack.c.l.b16 %v1425
    %v1561 = vunpack.c.l.b16 %v1426
    %v1562 = vunpack.c.l.b16 %v1427
    %v1563 = vunpack.c.l.b16 %v1428
    %v1564 = vunpack.c.l.b16 %v1429
    %v1565 = vunpack.c.l.b16 %v1430
    %v1566 = vunpack.c.l.b16 %v1431
    %v1567 = vunpack.c.l.b16 %v1432
    %v1568 = vunpack.c.l.b16 %v1433
    %v1569 = vunpack.c.l.b16 %v1434
    %v1570 = vunpack.c.l.b16 %v1435
    %v1571 = vunpack.c.l.b16 %v1436
    %v1572 = vunpack.c.l.b16 %v1437
    %v1573 = vunpack.c.l.b16 %v1438
    %v1574 = vunpack.c.l.b16 %v1439
    %v1575 = vpack.c.b16 %v1512, %v1511
    %v1576 = vpack.c.b16 %v1514, %v1513
    %v1577 = vpack.c.b16 %v1516, %v1515
    %v1578 = vpack.c.b16 %v1518, %v1517
    %v1579 = vpack.c.b16 %v1520, %v1519
    %v1580 = vpack.c.b16 %v1522, %v1521
    %v1581 = vpack.c.b16 %v1524, %v1523
    %v1582 = vpack.c.b16 %v1526, %v1525
    %v1583 = vpack.c.b16 %v1528, %v1527
    %v1584 = vpack.c.b16 %v1530, %v1529
    %v1585 = vpack.c.b16 %v1532, %v1531
    %v1586 = vpack.c.b16 %v1534, %v1533
    %v1587 = vpack.c.b16 %v1536, %v1535
    %v1588 = vpack.c.b16 %v1538, %v1537
    %v1589 = vpack.c.b16 %v1540, %v1539
    %v1590 = vpack.c.b16 %v1542, %v1541
    %v1591 = vpack.c.b16 %v1544, %v1543
    %v1592 = vpack.c.b16 %v1546, %v1545
    %v1593 = vpack.c.b16 %v1548, %v1547
    %v1594 = vpack.c.b16 %v1550, %v1549
    %v1595 = vpack.c.b16 %v1552, %v1551
    %v1596 = vpack.c.b16 %v1554, %v1553
    %v1597 = vpack.c.b16 %v1556, %v1555
    %v1598 = vpack.c.b16 %v1558, %v1557
    %v1599 = vpack.c.b16 %v1560, %v1559
    %v1600 = vpack.c.b16 %v1562, %v1561
    %v1601 = vpack.c.b16 %v1564, %v1563
    %v1602 = vpack.c.b16 %v1566, %v1565
    %v1603 = vpack.c.b16 %v1568, %v1567
    %v1604 = vpack.c.b16 %v1570, %v1569
    %v1605 = vpack.c.b16 %v1572, %v1571
    %v1606 = vpack.c.b16 %v1574, %v1573
    %1639 = vmatprep.subr.bf16.mxu0 0
    %1640 = vmatpush1.bf16.msra.mxu0 %v1582
    %1641 = vmatprep.subr.bf16.mxu0 0
    %1642 = vmatpush1.bf16.msra.mxu0 %v1581
    %1643 = vmatprep.subr.bf16.mxu0 0
    %1644 = vmatpush1.bf16.msra.mxu0 %v1580
    %1645 = vmatprep.subr.bf16.mxu0 0
    %1646 = vmatpush1.bf16.msra.mxu0 %v1579
    %1647 = vmatprep.subr.bf16.mxu0 0
    %1648 = vmatpush1.bf16.msra.mxu0 %v1578
    %1649 = vmatprep.subr.bf16.mxu0 0
    %1650 = vmatpush1.bf16.msra.mxu0 %v1577
    %1651 = vmatprep.subr.bf16.mxu0 0
    %1652 = vmatpush1.bf16.msra.mxu0 %v1576
    %1653 = vmatprep.subr.bf16.mxu0 0
    %1654 = vmatpush1.bf16.msra.mxu0 %v1575
    %1655 = vmatprep.subr.bf16.mxu0 0
    %1656 = vmatpush2.bf16.msra.mxu0 %v1590
    %1657 = vmatprep.subr.bf16.mxu0 0
    %1658 = vmatpush2.bf16.msra.mxu0 %v1589
    %1659 = vmatprep.subr.bf16.mxu0 0
    %1660 = vmatpush2.bf16.msra.mxu0 %v1588
    %1661 = vmatprep.subr.bf16.mxu0 0
    %1662 = vmatpush2.bf16.msra.mxu0 %v1587
    %1663 = vmatprep.subr.bf16.mxu0 0
    %1664 = vmatpush2.bf16.msra.mxu0 %v1586
    %1665 = vmatprep.subr.bf16.mxu0 0
    %1666 = vmatpush2.bf16.msra.mxu0 %v1585
    %1667 = vmatprep.subr.bf16.mxu0 0
    %1668 = vmatpush2.bf16.msra.mxu0 %v1584
    %1669 = vmatprep.subr.bf16.mxu0 0
    %1670 = vmatpush2.bf16.msra.mxu0 %v1583
    %1671 = vmatprep.mubr.bf16.mxu0 %v1359
    %1672 = vmatmul.mubr.bf16.gmra.mxu0 %v1358
    %v1673 = vpop.f32.mrf.mxu0
    %v1674 = vadd.f32 %v1445, %v1673
    %v1675 = vpop.f32.mrf.mxu0
    %v1676 = vpop.f32.mrf.mxu0
    %v1677 = vpop.f32.mrf.mxu0
    %1678 = vdwg.mxu0
    %1679 = vmatprep.subr.bf16.mxu0 0
    %1680 = vmatpush1.bf16.msra.mxu0 %v1598
    %1681 = vmatprep.subr.bf16.mxu0 0
    %1682 = vmatpush1.bf16.msra.mxu0 %v1597
    %1683 = vmatprep.subr.bf16.mxu0 0
    %1684 = vmatpush1.bf16.msra.mxu0 %v1596
    %1685 = vmatprep.subr.bf16.mxu0 0
    %1686 = vmatpush1.bf16.msra.mxu0 %v1595
    %1687 = vmatprep.subr.bf16.mxu0 0
    %1688 = vmatpush1.bf16.msra.mxu0 %v1594
    %1689 = vmatprep.subr.bf16.mxu0 0
    %1690 = vmatpush1.bf16.msra.mxu0 %v1593
    %1691 = vmatprep.subr.bf16.mxu0 0
    %1692 = vmatpush1.bf16.msra.mxu0 %v1592
    %1693 = vmatprep.subr.bf16.mxu0 0
    %1694 = vmatpush1.bf16.msra.mxu0 %v1591
    %1695 = vmatprep.subr.bf16.mxu0 0
    %1696 = vmatpush2.bf16.msra.mxu0 %v1606
    %1697 = vmatprep.subr.bf16.mxu0 0
    %1698 = vmatpush2.bf16.msra.mxu0 %v1605
    %1699 = vmatprep.subr.bf16.mxu0 0
    %1700 = vmatpush2.bf16.msra.mxu0 %v1604
    %1701 = vmatprep.subr.bf16.mxu0 0
    %1702 = vmatpush2.bf16.msra.mxu0 %v1603
    %1703 = vmatprep.subr.bf16.mxu0 0
    %1704 = vmatpush2.bf16.msra.mxu0 %v1602
    %1705 = vmatprep.subr.bf16.mxu0 0
    %1706 = vmatpush2.bf16.msra.mxu0 %v1601
    %1707 = vmatprep.subr.bf16.mxu0 0
    %1708 = vmatpush2.bf16.msra.mxu0 %v1600
    %1709 = vmatprep.subr.bf16.mxu0 0
    %1710 = vmatpush2.bf16.msra.mxu0 %v1599
    %1711 = vmatprep.mubr.bf16.mxu0 %v1361
    %1712 = vmatmul.mubr.bf16.gmra.mxu0 %v1360
    %v1713 = vpop.f32.mrf.mxu0
    %v1714 = vadd.f32 %v1674, %v1713
    %v1715 = vpop.f32.mrf.mxu0
    %v1716 = vpop.f32.mrf.mxu0
    %v1717 = vpop.f32.mrf.mxu0
    %1718 = vdwg.mxu0
    %v1719 = vlaneseq
    %v1720 = vand.u32 %v1719, 127
    %vm1721 = vcmp.lt.s32.totalorder %v1720, 16
    %vm1722 = vcmp.gt.f32.partialorder %v1714, 20.0
    %v1723 = vmin.f32 %v1714, 20.0
    %v1724 = vmul.f32 %v1723, 1.442695
    %v1725 = vpow.pop %v1724
    %v1726 = vadd.f32 %v1725, 1.0
    %v1727 = vlog2.pop %v1726
    %v1728 = vmul.f32 %v1727, 0.6931472
    %v1729 = vmul.f32 -0.5, %v1725
    %v1730 = vadd.f32 %v1729, 1.0
    %v1731 = vmul.f32 %v1730, %v1725
    %v1732 = vand.u32 2147483647, %v1725
    %vm1733 = vcmp.lt.f32.partialorder %v1732, 0.0004427343
    %v1734 = vsel %vm1733, %v1731, %v1728
    %v1735 = vsel %vm1722, %v1714, %v1734
    %v1736 = vadd.f32 %v1735, 1.0
    %v1737 = vsel %vm1721, %v1736, %v1714
    %v1738 = vpack.c.bf16 %v1737, %v1737
    %1739 = vst [vmem:[#allocation11] sm:$0xf] %v1738
    // Predicated region
    $region50: #{tpu_custom_call.1} parent=1 // pred_check
      _
    $region51: #{tpu_custom_call.1} parent=1 // pred_check_branch
      %1741 = sbr.rel (0) target = $region53
    $region52: #{tpu_custom_call.1} parent=1 // pred_region
      %s1743 = ssub.s32 64, 64
      %1744 = vsyncadd [#allocation4], %s1743
      %s1746 = sshll.u32 [#allocation11], 4
      %s1747 = int_to_ptr.vmem [resolvable:$true] %s1746
      %1749 = dma.vmem_to_hbm [thread:$0]  %s1747, 64, %s7, [#allocation4]
    $region53: #{tpu_custom_call.1} parent=1 // pred_fallthru
      _
    // Predicated region
    $region54: #{tpu_custom_call.1} parent=1 // pred_check
      _
    $region55: #{tpu_custom_call.1} parent=1 // pred_check_branch
      %1751 = sbr.rel (0) target = $region57
    $region56: #{tpu_custom_call.1} parent=1 // pred_region
      %s1753 = ssub.s32 256, 256
      %1754 = vsyncadd [#allocation13], %s1753
      %s1756 = sshll.u32 [#allocation12], 4
      %s1757 = int_to_ptr.vmem [resolvable:$true] %s1756
      %1759 = dma.vmem_to_hbm [thread:$0]  %s1757, 256, %s8, [#allocation13]
    $region57: #{tpu_custom_call.1} parent=1 // pred_fallthru
      _
    // Predicated region
    $region58: #{tpu_custom_call.1} parent=1 // pred_check
      _
    $region59: #{tpu_custom_call.1} parent=1 // pred_check_branch
      %1761 = sbr.rel (0) target = $region61
    $region60: #{tpu_custom_call.1} parent=1 // pred_region
      %1762 = dma.done [#allocation4], 64
    $region61: #{tpu_custom_call.1} parent=1 // pred_fallthru
      _
    // Predicated region
    $region62: #{tpu_custom_call.1} parent=1 // pred_check
      _
    $region63: #{tpu_custom_call.1} parent=1 // pred_check_branch
      %1764 = sbr.rel (0) target = $region65
    $region64: #{tpu_custom_call.1} parent=1 // pred_region
      %1765 = dma.done [#allocation13], 256
    $region65: #{tpu_custom_call.1} parent=1 // pred_fallthru
      _
    %1766 = vsyncpa [#allocation3], 1
    %1767 = vsyncpa [#allocation6], 1
    %1768 = vsyncpa [#allocation9], 1
    %1769 = vsyncpa [#allocation4], 1
    %1770 = vsyncpa [#allocation13], 1

// kernel: tpu_custom_call.1
$region0: #{tpu_custom_call.1}
  #allocation0 [shape = 'u32[]', space=smem, size = 0x4, offset = 0x4, fixed_abs, tag = 'smem constant byte address 0x4 - core index']
  #allocation1 [shape = 'u32[144,128]{1,0:T(1,128)}', space=vmem, size = 0x12000, scoped, tag = 'internal scratch']
  %s0 = inlined_call_operand.hbm [shape: bf16[8,128], index: 0, kind: input, shape index: {}]
  %s1 = inlined_call_operand.hbm [shape: bf16[128,512], index: 1, kind: input, shape index: {}]
  %s2 = inlined_call_operand.hbm [shape: f32[1,512], index: 2, kind: input, shape index: {}]
  %s3 = inlined_call_operand.hbm [shape: bf16[512,512], index: 3, kind: input, shape index: {}]
  %s4 = inlined_call_operand.vmem [shape: f32[1,512], index: 4, kind: input, shape index: {}]
  %s5 = inlined_call_operand.hbm [shape: bf16[512,128], index: 5, kind: input, shape index: {}]
  %s6 = inlined_call_operand.vmem [shape: f32[1,128], index: 6, kind: input, shape index: {}]
  %s7 = inlined_call_operand.hbm [shape: bf16[8,128], index: 7, kind: output, shape index: {0}]
  %s8 = inlined_call_operand.hbm [shape: bf16[8,512], index: 8, kind: output, shape index: {1}]
  %9 = xla_tuple %s7, %s8
  %s10 = sld [smem:[#allocation0]]
  $region66: #{tpu_custom_call.1} parent=0
    _
  %s12 = ssub.s32 1, %s10
  %s13 = scalar_select 0, %s12, %s10
  $region1: #{tpu_custom_call.1} parent=0
    #allocation2 [shape = 'u8[2048]{0}', space=vmem, size = 0x800, scoped, tag = 'input window, operand 0, single buffered']
    #allocation3 [shape = 's32[1]{0}', space=sflag, size = 0x4, scoped, tag = 'scoped memory for tpu_custom_call.1']
    #allocation4 [shape = 's32[1]{0}', space=sflag, size = 0x4, scoped, tag = 'scoped memory for tpu_custom_call.1']
    #allocation5 [shape = 'u8[131072]{0}', space=vmem, size = 0x20000, scoped, tag = 'input window, operand 1, single buffered']
    #allocation6 [shape = 's32[1]{0}', space=sflag, size = 0x4, scoped, tag = 'scoped memory for tpu_custom_call.1']
    #allocation7 [shape = 'u8[2048]{0}', space=vmem, size = 0x800, scoped, tag = 'input window, operand 2, single buffered']
    #allocation8 [shape = 'u8[524288]{0}', space=vmem, size = 0x80000, scoped, tag = 'input window, operand 3, single buffered']
    #allocation9 [shape = 's32[1]{0}', space=sflag, size = 0x4, scoped, tag = 'scoped memory for tpu_custom_call.1']
    #allocation10 [shape = 'u8[131072]{0}', space=vmem, size = 0x20000, scoped, tag = 'input window, operand 5, single buffered']
    #allocation11 [shape = 'u8[2048]{0}', space=vmem, size = 0x800, scoped, tag = 'output window, operand 0, single buffered']
    #allocation12 [shape = 'u8[8192]{0}', space=vmem, size = 0x2000, scoped, tag = 'output window, operand 1, single buffered']
    #allocation13 [shape = 's32[1]{0}', space=sflag, size = 0x4, scoped, tag = 'scoped memory for tpu_custom_call.1']
    %14 = vsyncpa [#allocation3], 0
    %15 = vsyncpa [#allocation6], 0
    %16 = vsyncpa [#allocation9], 0
    %17 = vsyncpa [#allocation4], 0
    %18 = vsyncpa [#allocation13], 0
    // Predicated region
    $region2: #{tpu_custom_call.1} parent=1 // pred_check
      _
    $region3: #{tpu_custom_call.1} parent=1 // pred_check_branch
      %20 = sbr.rel (0) target = $region5
    $region4: #{tpu_custom_call.1} parent=1 // pred_region
      %s22 = ssub.s32 64, 64
      %23 = vsyncadd [#allocation3], %s22
      %s25 = sshll.u32 [#allocation2], 4
      %s26 = int_to_ptr.vmem [resolvable:$true] %s25
      %28 = dma.hbm_to_vmem [thread:$0]  %s0, 64, %s26, [#allocation3]
    $region5: #{tpu_custom_call.1} parent=1 // pred_fallthru
      _
    // Predicated region
    $region6: #{tpu_custom_call.1} parent=1 // pred_check
      _
    $region7: #{tpu_custom_call.1} parent=1 // pred_check_branch
      %30 = sbr.rel (0) target = $region9
    $region8: #{tpu_custom_call.1} parent=1 // pred_region
      %s32 = ssub.s32 4096, 4096
      %33 = vsyncadd [#allocation6], %s32
      %s34 = sshll.u32 [#allocation5], 4
      %s35 = int_to_ptr.vmem [resolvable:$true] %s34
      %40 = dma.hbm_to_vmem [thread:$0]  %s1, 4096, %s35, [#allocation6], 256, 256, 16
    $region9: #{tpu_custom_call.1} parent=1 // pred_fallthru
      _
    // Predicated region
    $region10: #{tpu_custom_call.1} parent=1 // pred_check
      _
    $region11: #{tpu_custom_call.1} parent=1 // pred_check_branch
      %42 = sbr.rel (0) target = $region13
    $region12: #{tpu_custom_call.1} parent=1 // pred_region
      %s44 = ssub.s32 64, 64
      %45 = vsyncadd [#allocation6], %s44
      %s47 = sshll.u32 [#allocation7], 4
      %s48 = int_to_ptr.vmem [resolvable:$true] %s47
      %50 = dma.hbm_to_vmem [thread:$0]  %s2, 64, %s48, [#allocation6]
    $region13: #{tpu_custom_call.1} parent=1 // pred_fallthru
      _
    // Predicated region
    $region14: #{tpu_custom_call.1} parent=1 // pred_check
      _
    $region15: #{tpu_custom_call.1} parent=1 // pred_check_branch
      %52 = sbr.rel (0) target = $region17
    $region16: #{tpu_custom_call.1} parent=1 // pred_region
      %s54 = ssub.s32 16384, 16384
      %55 = vsyncadd [#allocation9], %s54
      %s56 = sshll.u32 [#allocation8], 4
      %s57 = int_to_ptr.vmem [resolvable:$true] %s56
      %62 = dma.hbm_to_vmem [thread:$0]  %s3, 16384, %s57, [#allocation9], 256, 256, 16
    $region17: #{tpu_custom_call.1} parent=1 // pred_fallthru
      _
    // Predicated region
    $region18: #{tpu_custom_call.1} parent=1 // pred_check
      _
    $region19: #{tpu_custom_call.1} parent=1 // pred_check_branch
      %64 = sbr.rel (0) target = $region21
    $region20: #{tpu_custom_call.1} parent=1 // pred_region
      _
    $region21: #{tpu_custom_call.1} parent=1 // pred_fallthru
      _
    // Predicated region
    $region22: #{tpu_custom_call.1} parent=1 // pred_check
      _
    $region23: #{tpu_custom_call.1} parent=1 // pred_check_branch
      %66 = sbr.rel (0) target = $region25
    $region24: #{tpu_custom_call.1} parent=1 // pred_region
      %s68 = ssub.s32 4096, 4096
      %69 = vsyncadd [#allocation9], %s68
      %s70 = sshll.u32 [#allocation10], 4
      %s71 = int_to_ptr.vmem [resolvable:$true] %s70
      %76 = dma.hbm_to_vmem [thread:$0]  %s5, 4096, %s71, [#allocation9], 64, 64, 4
    $region25: #{tpu_custom_call.1} parent=1 // pred_fallthru
      _
    // Predicated region
    $region26: #{tpu_custom_call.1} parent=1 // pred_check
      _
    $region27: #{tpu_custom_call.1} parent=1 // pred_check_branch
      %78 = sbr.rel (0) target = $region29
    $region28: #{tpu_custom_call.1} parent=1 // pred_region
      _
    $region29: #{tpu_custom_call.1} parent=1 // pred_fallthru
      _
    // Predicated region
    $region30: #{tpu_custom_call.1} parent=1 // pred_check
      _
    $region31: #{tpu_custom_call.1} parent=1 // pred_check_branch
      %80 = sbr.rel (0) target = $region33
    $region32: #{tpu_custom_call.1} parent=1 // pred_region
      %81 = dma.done [#allocation3], 64
    $region33: #{tpu_custom_call.1} parent=1 // pred_fallthru
      _
    // Predicated region
    $region34: #{tpu_custom_call.1} parent=1 // pred_check
      _
    $region35: #{tpu_custom_call.1} parent=1 // pred_check_branch
      %83 = sbr.rel (0) target = $region37
    $region36: #{tpu_custom_call.1} parent=1 // pred_region
      %84 = dma.done [#allocation6], 4096
    $region37: #{tpu_custom_call.1} parent=1 // pred_fallthru
      _
    // Predicated region
    $region38: #{tpu_custom_call.1} parent=1 // pred_check
      _
    $region39: #{tpu_custom_call.1} parent=1 // pred_check_branch
      %86 = sbr.rel (0) target = $region41
    $region40: #{tpu_custom_call.1} parent=1 // pred_region
      %87 = dma.done [#allocation6], 64
    $region41: #{tpu_custom_call.1} parent=1 // pred_fallthru
      _
    // Predicated region
    $region42: #{tpu_custom_call.1} parent=1 // pred_check
      _
    $region43: #{tpu_custom_call.1} parent=1 // pred_check_branch
      %89 = sbr.rel (0) target = $region45
    $region44: #{tpu_custom_call.1} parent=1 // pred_region
      %90 = dma.done [#allocation9], 16384
    $region45: #{tpu_custom_call.1} parent=1 // pred_fallthru
      _
    // Predicated region
    $region46: #{tpu_custom_call.1} parent=1 // pred_check
      _
    $region47: #{tpu_custom_call.1} parent=1 // pred_check_branch
      %92 = sbr.rel (0) target = $region49
    $region48: #{tpu_custom_call.1} parent=1 // pred_region
      %93 = dma.done [#allocation9], 4096
    $region49: #{tpu_custom_call.1} parent=1 // pred_fallthru
      _
    %v95 = vld [vmem:[#allocation2] sm:$0xf]
    %v96 = vld [vmem:[#allocation5] sm:$0xff]
    %v97 = vld [vmem:[#allocation5 + $0x8] sm:$0xff]
    %v98 = vld [vmem:[#allocation5 + $0x10] sm:$0xff]
    %v99 = vld [vmem:[#allocation5 + $0x18] sm:$0xff]
    %v100 = vld [vmem:[#allocation5 + $0x20] sm:$0xff]
    %v101 = vld [vmem:[#allocation5 + $0x28] sm:$0xff]
    %v102 = vld [vmem:[#allocation5 + $0x30] sm:$0xff]
    %v103 = vld [vmem:[#allocation5 + $0x38] sm:$0xff]
    %v104 = vld [vmem:[#allocation5 + $0x40] sm:$0xff]
    %v105 = vld [vmem:[#allocation5 + $0x48] sm:$0xff]
    %v106 = vld [vmem:[#allocation5 + $0x50] sm:$0xff]
    %v107 = vld [vmem:[#allocation5 + $0x58] sm:$0xff]
    %v108 = vld [vmem:[#allocation5 + $0x60] sm:$0xff]
    %v109 = vld [vmem:[#allocation5 + $0x68] sm:$0xff]
    %v110 = vld [vmem:[#allocation5 + $0x70] sm:$0xff]
    %v111 = vld [vmem:[#allocation5 + $0x78] sm:$0xff]
    %v112 = vld [vmem:[#allocation5 + $0x80] sm:$0xff]
    %v113 = vld [vmem:[#allocation5 + $0x88] sm:$0xff]
    %v114 = vld [vmem:[#allocation5 + $0x90] sm:$0xff]
    %v115 = vld [vmem:[#allocation5 + $0x98] sm:$0xff]
    %v116 = vld [vmem:[#allocation5 + $0xa0] sm:$0xff]
    %v117 = vld [vmem:[#allocation5 + $0xa8] sm:$0xff]
    %v118 = vld [vmem:[#allocation5 + $0xb0] sm:$0xff]
    %v119 = vld [vmem:[#allocation5 + $0xb8] sm:$0xff]
    %v120 = vld [vmem:[#allocation5 + $0xc0] sm:$0xff]
    %v121 = vld [vmem:[#allocation5 + $0xc8] sm:$0xff]
    %v122 = vld [vmem:[#allocation5 + $0xd0] sm:$0xff]
    %v123 = vld [vmem:[#allocation5 + $0xd8] sm:$0xff]
    %v124 = vld [vmem:[#allocation5 + $0xe0] sm:$0xff]
    %v125 = vld [vmem:[#allocation5 + $0xe8] sm:$0xff]
    %v126 = vld [vmem:[#allocation5 + $0xf0] sm:$0xff]
    %v127 = vld [vmem:[#allocation5 + $0xf8] sm:$0xff]
    %v128 = vld [vmem:[#allocation7] sm:$0xf]
    %v130 = vlaneseq
    %v131 = vshrl.u32 %v130, 7
    %v132 = vsub.s32 0, %v131
    %v133 = vrot.slane %v128, %v132
    %v134 = vlaneseq
    %v135 = vshrl.u32 %v134, 7
    %v136 = vsub.s32 1, %v135
    %v137 = vrot.slane %v128, %v136
    %v138 = vlaneseq
    %v139 = vshrl.u32 %v138, 7
    %v140 = vsub.s32 2, %v139
    %v141 = vrot.slane %v128, %v140
    %v142 = vlaneseq
    %v143 = vshrl.u32 %v142, 7
    %v144 = vsub.s32 3, %v143
    %v145 = vrot.slane %v128, %v144
    %v182 = vunpack.c.l.b16 %v96
    %v183 = vunpack.c.h.b16 %v96
    %v184 = vunpack.c.l.b16 %v97
    %v185 = vunpack.c.h.b16 %v97
    %v186 = vunpack.c.l.b16 %v98
    %v187 = vunpack.c.h.b16 %v98
    %v188 = vunpack.c.l.b16 %v99
    %v189 = vunpack.c.h.b16 %v99
    %v190 = vunpack.c.l.b16 %v100
    %v191 = vunpack.c.h.b16 %v100
    %v192 = vunpack.c.l.b16 %v101
    %v193 = vunpack.c.h.b16 %v101
    %v194 = vunpack.c.l.b16 %v102
    %v195 = vunpack.c.h.b16 %v102
    %v196 = vunpack.c.l.b16 %v103
    %v197 = vunpack.c.h.b16 %v103
    %v198 = vunpack.c.l.b16 %v104
    %v199 = vunpack.c.h.b16 %v104
    %v200 = vunpack.c.l.b16 %v105
    %v201 = vunpack.c.h.b16 %v105
    %v202 = vunpack.c.l.b16 %v106
    %v203 = vunpack.c.h.b16 %v106
    %v204 = vunpack.c.l.b16 %v107
    %v205 = vunpack.c.h.b16 %v107
    %v206 = vunpack.c.l.b16 %v108
    %v207 = vunpack.c.h.b16 %v108
    %v208 = vunpack.c.l.b16 %v109
    %v209 = vunpack.c.h.b16 %v109
    %v210 = vunpack.c.l.b16 %v110
    %v211 = vunpack.c.h.b16 %v110
    %v212 = vunpack.c.l.b16 %v111
    %v213 = vunpack.c.h.b16 %v111
    %v214 = vunpack.c.l.b16 %v112
    %v215 = vunpack.c.h.b16 %v112
    %v216 = vunpack.c.l.b16 %v113
    %v217 = vunpack.c.h.b16 %v113
    %v218 = vunpack.c.l.b16 %v114
    %v219 = vunpack.c.h.b16 %v114
    %v220 = vunpack.c.l.b16 %v115
    %v221 = vunpack.c.h.b16 %v115
    %v222 = vunpack.c.l.b16 %v116
    %v223 = vunpack.c.h.b16 %v116
    %v224 = vunpack.c.l.b16 %v117
    %v225 = vunpack.c.h.b16 %v117
    %v226 = vunpack.c.l.b16 %v118
    %v227 = vunpack.c.h.b16 %v118
    %v228 = vunpack.c.l.b16 %v119
    %v229 = vunpack.c.h.b16 %v119
    %v230 = vunpack.c.l.b16 %v120
    %v231 = vunpack.c.h.b16 %v120
    %v232 = vunpack.c.l.b16 %v121
    %v233 = vunpack.c.h.b16 %v121
    %v234 = vunpack.c.l.b16 %v122
    %v235 = vunpack.c.h.b16 %v122
    %v236 = vunpack.c.l.b16 %v123
    %v237 = vunpack.c.h.b16 %v123
    %v238 = vunpack.c.l.b16 %v124
    %v239 = vunpack.c.h.b16 %v124
    %v240 = vunpack.c.l.b16 %v125
    %v241 = vunpack.c.h.b16 %v125
    %v242 = vunpack.c.l.b16 %v126
    %v243 = vunpack.c.h.b16 %v126
    %v244 = vunpack.c.l.b16 %v127
    %v245 = vunpack.c.h.b16 %v127
    %v246 = vpack.c.b16 %v186, %v182
    %v247 = vpack.c.b16 %v187, %v183
    %v248 = vpack.c.b16 %v188, %v184
    %v249 = vpack.c.b16 %v189, %v185
    %v250 = vpack.c.b16 %v194, %v190
    %v251 = vpack.c.b16 %v195, %v191
    %v252 = vpack.c.b16 %v196, %v192
    %v253 = vpack.c.b16 %v197, %v193
    %v254 = vpack.c.b16 %v202, %v198
    %v255 = vpack.c.b16 %v203, %v199
    %v256 = vpack.c.b16 %v204, %v200
    %v257 = vpack.c.b16 %v205, %v201
    %v258 = vpack.c.b16 %v210, %v206
    %v259 = vpack.c.b16 %v211, %v207
    %v260 = vpack.c.b16 %v212, %v208
    %v261 = vpack.c.b16 %v213, %v209
    %v262 = vpack.c.b16 %v218, %v214
    %v263 = vpack.c.b16 %v219, %v215
    %v264 = vpack.c.b16 %v220, %v216
    %v265 = vpack.c.b16 %v221, %v217
    %v266 = vpack.c.b16 %v226, %v222
    %v267 = vpack.c.b16 %v227, %v223
    %v268 = vpack.c.b16 %v228, %v224
    %v269 = vpack.c.b16 %v229, %v225
    %v270 = vpack.c.b16 %v234, %v230
    %v271 = vpack.c.b16 %v235, %v231
    %v272 = vpack.c.b16 %v236, %v232
    %v273 = vpack.c.b16 %v237, %v233
    %v274 = vpack.c.b16 %v242, %v238
    %v275 = vpack.c.b16 %v243, %v239
    %v276 = vpack.c.b16 %v244, %v240
    %v277 = vpack.c.b16 %v245, %v241
    %310 = vmatprep.subr.bf16.mxu0 %v275
    %311 = vmatpush1.bf16.msra.mxu0 %v274
    %312 = vmatprep.subr.bf16.mxu0 %v271
    %313 = vmatpush1.bf16.msra.mxu0 %v270
    %314 = vmatprep.subr.bf16.mxu0 %v267
    %315 = vmatpush1.bf16.msra.mxu0 %v266
    %316 = vmatprep.subr.bf16.mxu0 %v263
    %317 = vmatpush1.bf16.msra.mxu0 %v262
    %318 = vmatprep.subr.bf16.mxu0 %v259
    %319 = vmatpush1.bf16.msra.mxu0 %v258
    %320 = vmatprep.subr.bf16.mxu0 %v255
    %321 = vmatpush1.bf16.msra.mxu0 %v254
    %322 = vmatprep.subr.bf16.mxu0 %v251
    %323 = vmatpush1.bf16.msra.mxu0 %v250
    %324 = vmatprep.subr.bf16.mxu0 %v247
    %325 = vmatpush1.bf16.msra.mxu0 %v246
    %326 = vmatprep.subr.bf16.mxu0 0
    %327 = vmatpush2.bf16.msra.mxu0 0
    %328 = vmatprep.subr.bf16.mxu0 0
    %329 = vmatpush2.bf16.msra.mxu0 0
    %330 = vmatprep.subr.bf16.mxu0 0
    %331 = vmatpush2.bf16.msra.mxu0 0
    %332 = vmatprep.subr.bf16.mxu0 0
    %333 = vmatpush2.bf16.msra.mxu0 0
    %334 = vmatprep.subr.bf16.mxu0 0
    %335 = vmatpush2.bf16.msra.mxu0 0
    %336 = vmatprep.subr.bf16.mxu0 0
    %337 = vmatpush2.bf16.msra.mxu0 0
    %338 = vmatprep.subr.bf16.mxu0 0
    %339 = vmatpush2.bf16.msra.mxu0 0
    %340 = vmatprep.subr.bf16.mxu0 0
    %341 = vmatpush2.bf16.msra.mxu0 0
    %342 = vmatprep.mubr.bf16.mxu0 0
    %343 = vmatmul.mubr.bf16.gmra.mxu0 %v95
    %v344 = vpop.f32.mrf.mxu0
    %v345 = vadd.f32 %v133, %v344
    %v346 = vpop.f32.mrf.mxu0
    %v347 = vadd.f32 %v137, %v346
    %v348 = vpop.f32.mrf.mxu0
    %v349 = vpop.f32.mrf.mxu0
    %350 = vdwg.mxu0
    %351 = vmatprep.subr.bf16.mxu0 %v277
    %352 = vmatpush1.bf16.msra.mxu0 %v276
    %353 = vmatprep.subr.bf16.mxu0 %v273
    %354 = vmatpush1.bf16.msra.mxu0 %v272
    %355 = vmatprep.subr.bf16.mxu0 %v269
    %356 = vmatpush1.bf16.msra.mxu0 %v268
    %357 = vmatprep.subr.bf16.mxu0 %v265
    %358 = vmatpush1.bf16.msra.mxu0 %v264
    %359 = vmatprep.subr.bf16.mxu0 %v261
    %360 = vmatpush1.bf16.msra.mxu0 %v260
    %361 = vmatprep.subr.bf16.mxu0 %v257
    %362 = vmatpush1.bf16.msra.mxu0 %v256
    %363 = vmatprep.subr.bf16.mxu0 %v253
    %364 = vmatpush1.bf16.msra.mxu0 %v252
    %365 = vmatprep.subr.bf16.mxu0 %v249
    %366 = vmatpush1.bf16.msra.mxu0 %v248
    %367 = vmatprep.subr.bf16.mxu0 0
    %368 = vmatpush2.bf16.msra.mxu0 0
    %369 = vmatprep.subr.bf16.mxu0 0
    %370 = vmatpush2.bf16.msra.mxu0 0
    %371 = vmatprep.subr.bf16.mxu0 0
    %372 = vmatpush2.bf16.msra.mxu0 0
    %373 = vmatprep.subr.bf16.mxu0 0
    %374 = vmatpush2.bf16.msra.mxu0 0
    %375 = vmatprep.subr.bf16.mxu0 0
    %376 = vmatpush2.bf16.msra.mxu0 0
    %377 = vmatprep.subr.bf16.mxu0 0
    %378 = vmatpush2.bf16.msra.mxu0 0
    %379 = vmatprep.subr.bf16.mxu0 0
    %380 = vmatpush2.bf16.msra.mxu0 0
    %381 = vmatprep.subr.bf16.mxu0 0
    %382 = vmatpush2.bf16.msra.mxu0 0
    %383 = vmatprep.mubr.bf16.mxu0 0
    %384 = vmatmul.mubr.bf16.gmra.mxu0 %v95
    %v385 = vpop.f32.mrf.mxu0
    %v386 = vadd.f32 %v141, %v385
    %v387 = vpop.f32.mrf.mxu0
    %v388 = vadd.f32 %v145, %v387
    %v389 = vpop.f32.mrf.mxu0
    %v390 = vpop.f32.mrf.mxu0
    %391 = vdwg.mxu0
    %v392 = vmax.f32 %v345, 0.0
    %v393 = vmax.f32 %v347, 0.0
    %v394 = vmax.f32 %v386, 0.0
    %v395 = vmax.f32 %v388, 0.0
    %v396 = vpack.c.bf16 %v392, %v392
    %v397 = vpack.c.bf16 %v393, %v393
    %v398 = vpack.c.bf16 %v394, %v394
    %v399 = vpack.c.bf16 %v395, %v395
    %v400 = vld [vmem:[#allocation8] sm:$0xff]
    %v401 = vld [vmem:[#allocation8 + $0x8] sm:$0xff]
    %v402 = vld [vmem:[#allocation8 + $0x10] sm:$0xff]
    %v403 = vld [vmem:[#allocation8 + $0x18] sm:$0xff]
    %v404 = vld [vmem:[#allocation8 + $0x20] sm:$0xff]
    %v405 = vld [vmem:[#allocation8 + $0x28] sm:$0xff]
    %v406 = vld [vmem:[#allocation8 + $0x30] sm:$0xff]
    %v407 = vld [vmem:[#allocation8 + $0x38] sm:$0xff]
    %v408 = vld [vmem:[#allocation8 + $0x40] sm:$0xff]
    %v409 = vld [vmem:[#allocation8 + $0x48] sm:$0xff]
    %v410 = vld [vmem:[#allocation8 + $0x50] sm:$0xff]
    %v411 = vld [vmem:[#allocation8 + $0x58] sm:$0xff]
    %v412 = vld [vmem:[#allocation8 + $0x60] sm:$0xff]
    %v413 = vld [vmem:[#allocation8 + $0x68] sm:$0xff]
    %v414 = vld [vmem:[#allocation8 + $0x70] sm:$0xff]
    %v415 = vld [vmem:[#allocation8 + $0x78] sm:$0xff]
    %v416 = vld [vmem:[#allocation8 + $0x80] sm:$0xff]
    %v417 = vld [vmem:[#allocation8 + $0x88] sm:$0xff]
    %v418 = vld [vmem:[#allocation8 + $0x90] sm:$0xff]
    %v419 = vld [vmem:[#allocation8 + $0x98] sm:$0xff]
    %v420 = vld [vmem:[#allocation8 + $0xa0] sm:$0xff]
    %v421 = vld [vmem:[#allocation8 + $0xa8] sm:$0xff]
    %v422 = vld [vmem:[#allocation8 + $0xb0] sm:$0xff]
    %v423 = vld [vmem:[#allocation8 + $0xb8] sm:$0xff]
    %v424 = vld [vmem:[#allocation8 + $0xc0] sm:$0xff]
    %v425 = vld [vmem:[#allocation8 + $0xc8] sm:$0xff]
    %v426 = vld [vmem:[#allocation8 + $0xd0] sm:$0xff]
    %v427 = vld [vmem:[#allocation8 + $0xd8] sm:$0xff]
    %v428 = vld [vmem:[#allocation8 + $0xe0] sm:$0xff]
    %v429 = vld [vmem:[#allocation8 + $0xe8] sm:$0xff]
    %v430 = vld [vmem:[#allocation8 + $0xf0] sm:$0xff]
    %v431 = vld [vmem:[#allocation8 + $0xf8] sm:$0xff]
    %v432 = vld [vmem:[#allocation8 + $0x100] sm:$0xff]
    %v433 = vld [vmem:[#allocation8 + $0x108] sm:$0xff]
    %v434 = vld [vmem:[#allocation8 + $0x110] sm:$0xff]
    %v435 = vld [vmem:[#allocation8 + $0x118] sm:$0xff]
    %v436 = vld [vmem:[#allocation8 + $0x120] sm:$0xff]
    %v437 = vld [vmem:[#allocation8 + $0x128] sm:$0xff]
    %v438 = vld [vmem:[#allocation8 + $0x130] sm:$0xff]
    %v439 = vld [vmem:[#allocation8 + $0x138] sm:$0xff]
    %v440 = vld [vmem:[#allocation8 + $0x140] sm:$0xff]
    %v441 = vld [vmem:[#allocation8 + $0x148] sm:$0xff]
    %v442 = vld [vmem:[#allocation8 + $0x150] sm:$0xff]
    %v443 = vld [vmem:[#allocation8 + $0x158] sm:$0xff]
    %v444 = vld [vmem:[#allocation8 + $0x160] sm:$0xff]
    %v445 = vld [vmem:[#allocation8 + $0x168] sm:$0xff]
    %v446 = vld [vmem:[#allocation8 + $0x170] sm:$0xff]
    %v447 = vld [vmem:[#allocation8 + $0x178] sm:$0xff]
    %v448 = vld [vmem:[#allocation8 + $0x180] sm:$0xff]
    %v449 = vld [vmem:[#allocation8 + $0x188] sm:$0xff]
    %v450 = vld [vmem:[#allocation8 + $0x190] sm:$0xff]
    %v451 = vld [vmem:[#allocation8 + $0x198] sm:$0xff]
    %v452 = vld [vmem:[#allocation8 + $0x1a0] sm:$0xff]
    %v453 = vld [vmem:[#allocation8 + $0x1a8] sm:$0xff]
    %v454 = vld [vmem:[#allocation8 + $0x1b0] sm:$0xff]
    %v455 = vld [vmem:[#allocation8 + $0x1b8] sm:$0xff]
    %v456 = vld [vmem:[#allocation8 + $0x1c0] sm:$0xff]
    %v457 = vld [vmem:[#allocation8 + $0x1c8] sm:$0xff]
    %v458 = vld [vmem:[#allocation8 + $0x1d0] sm:$0xff]
    %v459 = vld [vmem:[#allocation8 + $0x1d8] sm:$0xff]
    %v460 = vld [vmem:[#allocation8 + $0x1e0] sm:$0xff]
    %v461 = vld [vmem:[#allocation8 + $0x1e8] sm:$0xff]
    %v462 = vld [vmem:[#allocation8 + $0x1f0] sm:$0xff]
    %v463 = vld [vmem:[#allocation8 + $0x1f8] sm:$0xff]
    %v464 = vld [vmem:[#allocation8 + $0x200] sm:$0xff]
    %v465 = vld [vmem:[#allocation8 + $0x208] sm:$0xff]
    %v466 = vld [vmem:[#allocation8 + $0x210] sm:$0xff]
    %v467 = vld [vmem:[#allocation8 + $0x218] sm:$0xff]
    %v468 = vld [vmem:[#allocation8 + $0x220] sm:$0xff]
    %v469 = vld [vmem:[#allocation8 + $0x228] sm:$0xff]
    %v470 = vld [vmem:[#allocation8 + $0x230] sm:$0xff]
    %v471 = vld [vmem:[#allocation8 + $0x238] sm:$0xff]
    %v472 = vld [vmem:[#allocation8 + $0x240] sm:$0xff]
    %v473 = vld [vmem:[#allocation8 + $0x248] sm:$0xff]
    %v474 = vld [vmem:[#allocation8 + $0x250] sm:$0xff]
    %v475 = vld [vmem:[#allocation8 + $0x258] sm:$0xff]
    %v476 = vld [vmem:[#allocation8 + $0x260] sm:$0xff]
    %v477 = vld [vmem:[#allocation8 + $0x268] sm:$0xff]
    %v478 = vld [vmem:[#allocation8 + $0x270] sm:$0xff]
    %v479 = vld [vmem:[#allocation8 + $0x278] sm:$0xff]
    %v480 = vld [vmem:[#allocation8 + $0x280] sm:$0xff]
    %v481 = vld [vmem:[#allocation8 + $0x288] sm:$0xff]
    %v482 = vld [vmem:[#allocation8 + $0x290] sm:$0xff]
    %v483 = vld [vmem:[#allocation8 + $0x298] sm:$0xff]
    %v484 = vld [vmem:[#allocation8 + $0x2a0] sm:$0xff]
    %v485 = vld [vmem:[#allocation8 + $0x2a8] sm:$0xff]
    %v486 = vld [vmem:[#allocation8 + $0x2b0] sm:$0xff]
    %v487 = vld [vmem:[#allocation8 + $0x2b8] sm:$0xff]
    %v488 = vld [vmem:[#allocation8 + $0x2c0] sm:$0xff]
    %v489 = vld [vmem:[#allocation8 + $0x2c8] sm:$0xff]
    %v490 = vld [vmem:[#allocation8 + $0x2d0] sm:$0xff]
    %v491 = vld [vmem:[#allocation8 + $0x2d8] sm:$0xff]
    %v492 = vld [vmem:[#allocation8 + $0x2e0] sm:$0xff]
    %v493 = vld [vmem:[#allocation8 + $0x2e8] sm:$0xff]
    %v494 = vld [vmem:[#allocation8 + $0x2f0] sm:$0xff]
    %v495 = vld [vmem:[#allocation8 + $0x2f8] sm:$0xff]
    %v496 = vld [vmem:[#allocation8 + $0x300] sm:$0xff]
    %v497 = vld [vmem:[#allocation8 + $0x308] sm:$0xff]
    %v498 = vld [vmem:[#allocation8 + $0x310] sm:$0xff]
    %v499 = vld [vmem:[#allocation8 + $0x318] sm:$0xff]
    %v500 = vld [vmem:[#allocation8 + $0x320] sm:$0xff]
    %v501 = vld [vmem:[#allocation8 + $0x328] sm:$0xff]
    %v502 = vld [vmem:[#allocation8 + $0x330] sm:$0xff]
    %v503 = vld [vmem:[#allocation8 + $0x338] sm:$0xff]
    %v504 = vld [vmem:[#allocation8 + $0x340] sm:$0xff]
    %v505 = vld [vmem:[#allocation8 + $0x348] sm:$0xff]
    %v506 = vld [vmem:[#allocation8 + $0x350] sm:$0xff]
    %v507 = vld [vmem:[#allocation8 + $0x358] sm:$0xff]
    %v508 = vld [vmem:[#allocation8 + $0x360] sm:$0xff]
    %v509 = vld [vmem:[#allocation8 + $0x368] sm:$0xff]
    %v510 = vld [vmem:[#allocation8 + $0x370] sm:$0xff]
    %v511 = vld [vmem:[#allocation8 + $0x378] sm:$0xff]
    %v512 = vld [vmem:[#allocation8 + $0x380] sm:$0xff]
    %v513 = vld [vmem:[#allocation8 + $0x388] sm:$0xff]
    %v514 = vld [vmem:[#allocation8 + $0x390] sm:$0xff]
    %v515 = vld [vmem:[#allocation8 + $0x398] sm:$0xff]
    %v516 = vld [vmem:[#allocation8 + $0x3a0] sm:$0xff]
    %v517 = vld [vmem:[#allocation8 + $0x3a8] sm:$0xff]
    %v518 = vld [vmem:[#allocation8 + $0x3b0] sm:$0xff]
    %v519 = vld [vmem:[#allocation8 + $0x3b8] sm:$0xff]
    %v520 = vld [vmem:[#allocation8 + $0x3c0] sm:$0xff]
    %v521 = vld [vmem:[#allocation8 + $0x3c8] sm:$0xff]
    %v522 = vld [vmem:[#allocation8 + $0x3d0] sm:$0xff]
    %v523 = vld [vmem:[#allocation8 + $0x3d8] sm:$0xff]
    %v524 = vld [vmem:[#allocation8 + $0x3e0] sm:$0xff]
    %v525 = vld [vmem:[#allocation8 + $0x3e8] sm:$0xff]
    %v526 = vld [vmem:[#allocation8 + $0x3f0] sm:$0xff]
    %v527 = vld [vmem:[#allocation8 + $0x3f8] sm:$0xff]
    %v528 = vld [vmem:[%s4] sm:$0xf]
    %v530 = vlaneseq
    %v531 = vshrl.u32 %v530, 7
    %v532 = vsub.s32 0, %v531
    %v533 = vrot.slane %v528, %v532
    %v534 = vlaneseq
    %v535 = vshrl.u32 %v534, 7
    %v536 = vsub.s32 1, %v535
    %v537 = vrot.slane %v528, %v536
    %v538 = vlaneseq
    %v539 = vshrl.u32 %v538, 7
    %v540 = vsub.s32 2, %v539
    %v541 = vrot.slane %v528, %v540
    %v542 = vlaneseq
    %v543 = vshrl.u32 %v542, 7
    %v544 = vsub.s32 3, %v543
    %v545 = vrot.slane %v528, %v544
    %v678 = vunpack.c.l.b16 %v400
    %v679 = vunpack.c.h.b16 %v400
    %v680 = vunpack.c.l.b16 %v401
    %v681 = vunpack.c.h.b16 %v401
    %v682 = vunpack.c.l.b16 %v402
    %v683 = vunpack.c.h.b16 %v402
    %v684 = vunpack.c.l.b16 %v403
    %v685 = vunpack.c.h.b16 %v403
    %v686 = vunpack.c.l.b16 %v404
    %v687 = vunpack.c.h.b16 %v404
    %v688 = vunpack.c.l.b16 %v405
    %v689 = vunpack.c.h.b16 %v405
    %v690 = vunpack.c.l.b16 %v406
    %v691 = vunpack.c.h.b16 %v406
    %v692 = vunpack.c.l.b16 %v407
    %v693 = vunpack.c.h.b16 %v407
    %v694 = vunpack.c.l.b16 %v408
    %v695 = vunpack.c.h.b16 %v408
    %v696 = vunpack.c.l.b16 %v409
    %v697 = vunpack.c.h.b16 %v409
    %v698 = vunpack.c.l.b16 %v410
    %v699 = vunpack.c.h.b16 %v410
    %v700 = vunpack.c.l.b16 %v411
    %v701 = vunpack.c.h.b16 %v411
    %v702 = vunpack.c.l.b16 %v412
    %v703 = vunpack.c.h.b16 %v412
    %v704 = vunpack.c.l.b16 %v413
    %v705 = vunpack.c.h.b16 %v413
    %v706 = vunpack.c.l.b16 %v414
    %v707 = vunpack.c.h.b16 %v414
    %v708 = vunpack.c.l.b16 %v415
    %v709 = vunpack.c.h.b16 %v415
    %v710 = vunpack.c.l.b16 %v416
    %v711 = vunpack.c.h.b16 %v416
    %v712 = vunpack.c.l.b16 %v417
    %v713 = vunpack.c.h.b16 %v417
    %v714 = vunpack.c.l.b16 %v418
    %v715 = vunpack.c.h.b16 %v418
    %v716 = vunpack.c.l.b16 %v419
    %v717 = vunpack.c.h.b16 %v419
    %v718 = vunpack.c.l.b16 %v420
    %v719 = vunpack.c.h.b16 %v420
    %v720 = vunpack.c.l.b16 %v421
    %v721 = vunpack.c.h.b16 %v421
    %v722 = vunpack.c.l.b16 %v422
    %v723 = vunpack.c.h.b16 %v422
    %v724 = vunpack.c.l.b16 %v423
    %v725 = vunpack.c.h.b16 %v423
    %v726 = vunpack.c.l.b16 %v424
    %v727 = vunpack.c.h.b16 %v424
    %v728 = vunpack.c.l.b16 %v425
    %v729 = vunpack.c.h.b16 %v425
    %v730 = vunpack.c.l.b16 %v426
    %v731 = vunpack.c.h.b16 %v426
    %v732 = vunpack.c.l.b16 %v427
    %v733 = vunpack.c.h.b16 %v427
    %v734 = vunpack.c.l.b16 %v428
    %v735 = vunpack.c.h.b16 %v428
    %v736 = vunpack.c.l.b16 %v429
    %v737 = vunpack.c.h.b16 %v429
    %v738 = vunpack.c.l.b16 %v430
    %v739 = vunpack.c.h.b16 %v430
    %v740 = vunpack.c.l.b16 %v431
    %v741 = vunpack.c.h.b16 %v431
    %v742 = vunpack.c.l.b16 %v432
    %v743 = vunpack.c.h.b16 %v432
    %v744 = vunpack.c.l.b16 %v433
    %v745 = vunpack.c.h.b16 %v433
    %v746 = vunpack.c.l.b16 %v434
    %v747 = vunpack.c.h.b16 %v434
    %v748 = vunpack.c.l.b16 %v435
    %v749 = vunpack.c.h.b16 %v435
    %v750 = vunpack.c.l.b16 %v436
    %v751 = vunpack.c.h.b16 %v436
    %v752 = vunpack.c.l.b16 %v437
    %v753 = vunpack.c.h.b16 %v437
    %v754 = vunpack.c.l.b16 %v438
    %v755 = vunpack.c.h.b16 %v438
    %v756 = vunpack.c.l.b16 %v439
    %v757 = vunpack.c.h.b16 %v439
    %v758 = vunpack.c.l.b16 %v440
    %v759 = vunpack.c.h.b16 %v440
    %v760 = vunpack.c.l.b16 %v441
    %v761 = vunpack.c.h.b16 %v441
    %v762 = vunpack.c.l.b16 %v442
    %v763 = vunpack.c.h.b16 %v442
    %v764 = vunpack.c.l.b16 %v443
    %v765 = vunpack.c.h.b16 %v443
    %v766 = vunpack.c.l.b16 %v444
    %v767 = vunpack.c.h.b16 %v444
    %v768 = vunpack.c.l.b16 %v445
    %v769 = vunpack.c.h.b16 %v445
    %v770 = vunpack.c.l.b16 %v446
    %v771 = vunpack.c.h.b16 %v446
    %v772 = vunpack.c.l.b16 %v447
    %v773 = vunpack.c.h.b16 %v447
    %v774 = vunpack.c.l.b16 %v448
    %v775 = vunpack.c.h.b16 %v448
    %v776 = vunpack.c.l.b16 %v449
    %v777 = vunpack.c.h.b16 %v449
    %v778 = vunpack.c.l.b16 %v450
    %v779 = vunpack.c.h.b16 %v450
    %v780 = vunpack.c.l.b16 %v451
    %v781 = vunpack.c.h.b16 %v451
    %v782 = vunpack.c.l.b16 %v452
    %v783 = vunpack.c.h.b16 %v452
    %v784 = vunpack.c.l.b16 %v453
    %v785 = vunpack.c.h.b16 %v453
    %v786 = vunpack.c.l.b16 %v454
    %v787 = vunpack.c.h.b16 %v454
    %v788 = vunpack.c.l.b16 %v455
    %v789 = vunpack.c.h.b16 %v455
    %v790 = vunpack.c.l.b16 %v456
    %v791 = vunpack.c.h.b16 %v456
    %v792 = vunpack.c.l.b16 %v457
    %v793 = vunpack.c.h.b16 %v457
    %v794 = vunpack.c.l.b16 %v458
    %v795 = vunpack.c.h.b16 %v458
    %v796 = vunpack.c.l.b16 %v459
    %v797 = vunpack.c.h.b16 %v459
    %v798 = vunpack.c.l.b16 %v460
    %v799 = vunpack.c.h.b16 %v460
    %v800 = vunpack.c.l.b16 %v461
    %v801 = vunpack.c.h.b16 %v461
    %v802 = vunpack.c.l.b16 %v462
    %v803 = vunpack.c.h.b16 %v462
    %v804 = vunpack.c.l.b16 %v463
    %v805 = vunpack.c.h.b16 %v463
    %v806 = vunpack.c.l.b16 %v464
    %v807 = vunpack.c.h.b16 %v464
    %v808 = vunpack.c.l.b16 %v465
    %v809 = vunpack.c.h.b16 %v465
    %v810 = vunpack.c.l.b16 %v466
    %v811 = vunpack.c.h.b16 %v466
    %v812 = vunpack.c.l.b16 %v467
    %v813 = vunpack.c.h.b16 %v467
    %v814 = vunpack.c.l.b16 %v468
    %v815 = vunpack.c.h.b16 %v468
    %v816 = vunpack.c.l.b16 %v469
    %v817 = vunpack.c.h.b16 %v469
    %v818 = vunpack.c.l.b16 %v470
    %v819 = vunpack.c.h.b16 %v470
    %v820 = vunpack.c.l.b16 %v471
    %v821 = vunpack.c.h.b16 %v471
    %v822 = vunpack.c.l.b16 %v472
    %v823 = vunpack.c.h.b16 %v472
    %v824 = vunpack.c.l.b16 %v473
    %v825 = vunpack.c.h.b16 %v473
    %v826 = vunpack.c.l.b16 %v474
    %v827 = vunpack.c.h.b16 %v474
    %v828 = vunpack.c.l.b16 %v475
    %v829 = vunpack.c.h.b16 %v475
    %v830 = vunpack.c.l.b16 %v476
    %v831 = vunpack.c.h.b16 %v476
    %v832 = vunpack.c.l.b16 %v477
    %v833 = vunpack.c.h.b16 %v477
    %v834 = vunpack.c.l.b16 %v478
    %v835 = vunpack.c.h.b16 %v478
    %v836 = vunpack.c.l.b16 %v479
    %v837 = vunpack.c.h.b16 %v479
    %v838 = vunpack.c.l.b16 %v480
    %v839 = vunpack.c.h.b16 %v480
    %v840 = vunpack.c.l.b16 %v481
    %v841 = vunpack.c.h.b16 %v481
    %v842 = vunpack.c.l.b16 %v482
    %v843 = vunpack.c.h.b16 %v482
    %v844 = vunpack.c.l.b16 %v483
    %v845 = vunpack.c.h.b16 %v483
    %v846 = vunpack.c.l.b16 %v484
    %v847 = vunpack.c.h.b16 %v484
    %v848 = vunpack.c.l.b16 %v485
    %v849 = vunpack.c.h.b16 %v485
    %v850 = vunpack.c.l.b16 %v486
    %v851 = vunpack.c.h.b16 %v486
    %v852 = vunpack.c.l.b16 %v487
    %v853 = vunpack.c.h.b16 %v487
    %v854 = vunpack.c.l.b16 %v488
    %v855 = vunpack.c.h.b16 %v488
    %v856 = vunpack.c.l.b16 %v489
    %v857 = vunpack.c.h.b16 %v489
    %v858 = vunpack.c.l.b16 %v490
    %v859 = vunpack.c.h.b16 %v490
    %v860 = vunpack.c.l.b16 %v491
    %v861 = vunpack.c.h.b16 %v491
    %v862 = vunpack.c.l.b16 %v492
    %v863 = vunpack.c.h.b16 %v492
    %v864 = vunpack.c.l.b16 %v493
    %v865 = vunpack.c.h.b16 %v493
    %v866 = vunpack.c.l.b16 %v494
    %v867 = vunpack.c.h.b16 %v494
    %v868 = vunpack.c.l.b16 %v495
    %v869 = vunpack.c.h.b16 %v495
    %v870 = vunpack.c.l.b16 %v496
    %v871 = vunpack.c.h.b16 %v496
    %v872 = vunpack.c.l.b16 %v497
    %v873 = vunpack.c.h.b16 %v497
    %v874 = vunpack.c.l.b16 %v498
    %v875 = vunpack.c.h.b16 %v498
    %v876 = vunpack.c.l.b16 %v499
    %v877 = vunpack.c.h.b16 %v499
    %v878 = vunpack.c.l.b16 %v500
    %v879 = vunpack.c.h.b16 %v500
    %v880 = vunpack.c.l.b16 %v501
    %v881 = vunpack.c.h.b16 %v501
    %v882 = vunpack.c.l.b16 %v502
    %v883 = vunpack.c.h.b16 %v502
    %v884 = vunpack.c.l.b16 %v503
    %v885 = vunpack.c.h.b16 %v503
    %v886 = vunpack.c.l.b16 %v504
    %v887 = vunpack.c.h.b16 %v504
    %v888 = vunpack.c.l.b16 %v505
    %v889 = vunpack.c.h.b16 %v505
    %v890 = vunpack.c.l.b16 %v506
    %v891 = vunpack.c.h.b16 %v506
    %v892 = vunpack.c.l.b16 %v507
    %v893 = vunpack.c.h.b16 %v507
    %v894 = vunpack.c.l.b16 %v508
    %v895 = vunpack.c.h.b16 %v508
    %v896 = vunpack.c.l.b16 %v509
    %v897 = vunpack.c.h.b16 %v509
    %v898 = vunpack.c.l.b16 %v510
    %v899 = vunpack.c.h.b16 %v510
    %v900 = vunpack.c.l.b16 %v511
    %v901 = vunpack.c.h.b16 %v511
    %v902 = vunpack.c.l.b16 %v512
    %v903 = vunpack.c.h.b16 %v512
    %v904 = vunpack.c.l.b16 %v513
    %v905 = vunpack.c.h.b16 %v513
    %v906 = vunpack.c.l.b16 %v514
    %v907 = vunpack.c.h.b16 %v514
    %v908 = vunpack.c.l.b16 %v515
    %v909 = vunpack.c.h.b16 %v515
    %v910 = vunpack.c.l.b16 %v516
    %v911 = vunpack.c.h.b16 %v516
    %v912 = vunpack.c.l.b16 %v517
    %v913 = vunpack.c.h.b16 %v517
    %v914 = vunpack.c.l.b16 %v518
    %v915 = vunpack.c.h.b16 %v518
    %v916 = vunpack.c.l.b16 %v519
    %v917 = vunpack.c.h.b16 %v519
    %v918 = vunpack.c.l.b16 %v520
    %v919 = vunpack.c.h.b16 %v520
    %v920 = vunpack.c.l.b16 %v521
    %v921 = vunpack.c.h.b16 %v521
    %v922 = vunpack.c.l.b16 %v522
    %v923 = vunpack.c.h.b16 %v522
    %v924 = vunpack.c.l.b16 %v523
    %v925 = vunpack.c.h.b16 %v523
    %v926 = vunpack.c.l.b16 %v524
    %v927 = vunpack.c.h.b16 %v524
    %v928 = vunpack.c.l.b16 %v525
    %v929 = vunpack.c.h.b16 %v525
    %v930 = vunpack.c.l.b16 %v526
    %v931 = vunpack.c.h.b16 %v526
    %v932 = vunpack.c.l.b16 %v527
    %v933 = vunpack.c.h.b16 %v527
    %v934 = vpack.c.b16 %v682, %v678
    %v935 = vpack.c.b16 %v683, %v679
    %v936 = vpack.c.b16 %v684, %v680
    %v937 = vpack.c.b16 %v685, %v681
    %v938 = vpack.c.b16 %v690, %v686
    %v939 = vpack.c.b16 %v691, %v687
    %v940 = vpack.c.b16 %v692, %v688
    %v941 = vpack.c.b16 %v693, %v689
    %v942 = vpack.c.b16 %v698, %v694
    %v943 = vpack.c.b16 %v699, %v695
    %v944 = vpack.c.b16 %v700, %v696
    %v945 = vpack.c.b16 %v701, %v697
    %v946 = vpack.c.b16 %v706, %v702
    %v947 = vpack.c.b16 %v707, %v703
    %v948 = vpack.c.b16 %v708, %v704
    %v949 = vpack.c.b16 %v709, %v705
    %v950 = vpack.c.b16 %v714, %v710
    %v951 = vpack.c.b16 %v715, %v711
    %v952 = vpack.c.b16 %v716, %v712
    %v953 = vpack.c.b16 %v717, %v713
    %v954 = vpack.c.b16 %v722, %v718
    %v955 = vpack.c.b16 %v723, %v719
    %v956 = vpack.c.b16 %v724, %v720
    %v957 = vpack.c.b16 %v725, %v721
    %v958 = vpack.c.b16 %v730, %v726
    %v959 = vpack.c.b16 %v731, %v727
    %v960 = vpack.c.b16 %v732, %v728
    %v961 = vpack.c.b16 %v733, %v729
    %v962 = vpack.c.b16 %v738, %v734
    %v963 = vpack.c.b16 %v739, %v735
    %v964 = vpack.c.b16 %v740, %v736
    %v965 = vpack.c.b16 %v741, %v737
    %v966 = vpack.c.b16 %v746, %v742
    %v967 = vpack.c.b16 %v747, %v743
    %v968 = vpack.c.b16 %v748, %v744
    %v969 = vpack.c.b16 %v749, %v745
    %v970 = vpack.c.b16 %v754, %v750
    %v971 = vpack.c.b16 %v755, %v751
    %v972 = vpack.c.b16 %v756, %v752
    %v973 = vpack.c.b16 %v757, %v753
    %v974 = vpack.c.b16 %v762, %v758
    %v975 = vpack.c.b16 %v763, %v759
    %v976 = vpack.c.b16 %v764, %v760
    %v977 = vpack.c.b16 %v765, %v761
    %v978 = vpack.c.b16 %v770, %v766
    %v979 = vpack.c.b16 %v771, %v767
    %v980 = vpack.c.b16 %v772, %v768
    %v981 = vpack.c.b16 %v773, %v769
    %v982 = vpack.c.b16 %v778, %v774
    %v983 = vpack.c.b16 %v779, %v775
    %v984 = vpack.c.b16 %v780, %v776
    %v985 = vpack.c.b16 %v781, %v777
    %v986 = vpack.c.b16 %v786, %v782
    %v987 = vpack.c.b16 %v787, %v783
    %v988 = vpack.c.b16 %v788, %v784
    %v989 = vpack.c.b16 %v789, %v785
    %v990 = vpack.c.b16 %v794, %v790
    %v991 = vpack.c.b16 %v795, %v791
    %v992 = vpack.c.b16 %v796, %v792
    %v993 = vpack.c.b16 %v797, %v793
    %v994 = vpack.c.b16 %v802, %v798
    %v995 = vpack.c.b16 %v803, %v799
    %v996 = vpack.c.b16 %v804, %v800
    %v997 = vpack.c.b16 %v805, %v801
    %v998 = vpack.c.b16 %v810, %v806
    %v999 = vpack.c.b16 %v811, %v807
    %v1000 = vpack.c.b16 %v812, %v808
    %v1001 = vpack.c.b16 %v813, %v809
    %v1002 = vpack.c.b16 %v818, %v814
    %v1003 = vpack.c.b16 %v819, %v815
    %v1004 = vpack.c.b16 %v820, %v816
    %v1005 = vpack.c.b16 %v821, %v817
    %v1006 = vpack.c.b16 %v826, %v822
    %v1007 = vpack.c.b16 %v827, %v823
    %v1008 = vpack.c.b16 %v828, %v824
    %v1009 = vpack.c.b16 %v829, %v825
    %v1010 = vpack.c.b16 %v834, %v830
    %v1011 = vpack.c.b16 %v835, %v831
    %v1012 = vpack.c.b16 %v836, %v832
    %v1013 = vpack.c.b16 %v837, %v833
    %v1014 = vpack.c.b16 %v842, %v838
    %v1015 = vpack.c.b16 %v843, %v839
    %v1016 = vpack.c.b16 %v844, %v840
    %v1017 = vpack.c.b16 %v845, %v841
    %v1018 = vpack.c.b16 %v850, %v846
    %v1019 = vpack.c.b16 %v851, %v847
    %v1020 = vpack.c.b16 %v852, %v848
    %v1021 = vpack.c.b16 %v853, %v849
    %v1022 = vpack.c.b16 %v858, %v854
    %v1023 = vpack.c.b16 %v859, %v855
    %v1024 = vpack.c.b16 %v860, %v856
    %v1025 = vpack.c.b16 %v861, %v857
    %v1026 = vpack.c.b16 %v866, %v862
    %v1027 = vpack.c.b16 %v867, %v863
    %v1028 = vpack.c.b16 %v868, %v864
    %v1029 = vpack.c.b16 %v869, %v865
    %v1030 = vpack.c.b16 %v874, %v870
    %v1031 = vpack.c.b16 %v875, %v871
    %v1032 = vpack.c.b16 %v876, %v872
    %v1033 = vpack.c.b16 %v877, %v873
    %v1034 = vpack.c.b16 %v882, %v878
    %v1035 = vpack.c.b16 %v883, %v879
    %v1036 = vpack.c.b16 %v884, %v880
    %v1037 = vpack.c.b16 %v885, %v881
    %v1038 = vpack.c.b16 %v890, %v886
    %v1039 = vpack.c.b16 %v891, %v887
    %v1040 = vpack.c.b16 %v892, %v888
    %v1041 = vpack.c.b16 %v893, %v889
    %v1042 = vpack.c.b16 %v898, %v894
    %v1043 = vpack.c.b16 %v899, %v895
    %v1044 = vpack.c.b16 %v900, %v896
    %v1045 = vpack.c.b16 %v901, %v897
    %v1046 = vpack.c.b16 %v906, %v902
    %v1047 = vpack.c.b16 %v907, %v903
    %v1048 = vpack.c.b16 %v908, %v904
    %v1049 = vpack.c.b16 %v909, %v905
    %v1050 = vpack.c.b16 %v914, %v910
    %v1051 = vpack.c.b16 %v915, %v911
    %v1052 = vpack.c.b16 %v916, %v912
    %v1053 = vpack.c.b16 %v917, %v913
    %v1054 = vpack.c.b16 %v922, %v918
    %v1055 = vpack.c.b16 %v923, %v919
    %v1056 = vpack.c.b16 %v924, %v920
    %v1057 = vpack.c.b16 %v925, %v921
    %v1058 = vpack.c.b16 %v930, %v926
    %v1059 = vpack.c.b16 %v931, %v927
    %v1060 = vpack.c.b16 %v932, %v928
    %v1061 = vpack.c.b16 %v933, %v929
    %1190 = vmatprep.subr.bf16.mxu0 %v963
    %1191 = vmatpush1.bf16.msra.mxu0 %v962
    %1192 = vmatprep.subr.bf16.mxu0 %v959
    %1193 = vmatpush1.bf16.msra.mxu0 %v958
    %1194 = vmatprep.subr.bf16.mxu0 %v955
    %1195 = vmatpush1.bf16.msra.mxu0 %v954
    %1196 = vmatprep.subr.bf16.mxu0 %v951
    %1197 = vmatpush1.bf16.msra.mxu0 %v950
    %1198 = vmatprep.subr.bf16.mxu0 %v947
    %1199 = vmatpush1.bf16.msra.mxu0 %v946
    %1200 = vmatprep.subr.bf16.mxu0 %v943
    %1201 = vmatpush1.bf16.msra.mxu0 %v942
    %1202 = vmatprep.subr.bf16.mxu0 %v939
    %1203 = vmatpush1.bf16.msra.mxu0 %v938
    %1204 = vmatprep.subr.bf16.mxu0 %v935
    %1205 = vmatpush1.bf16.msra.mxu0 %v934
    %1206 = vmatprep.subr.bf16.mxu0 %v995
    %1207 = vmatpush2.bf16.msra.mxu0 %v994
    %1208 = vmatprep.subr.bf16.mxu0 %v991
    %1209 = vmatpush2.bf16.msra.mxu0 %v990
    %1210 = vmatprep.subr.bf16.mxu0 %v987
    %1211 = vmatpush2.bf16.msra.mxu0 %v986
    %1212 = vmatprep.subr.bf16.mxu0 %v983
    %1213 = vmatpush2.bf16.msra.mxu0 %v982
    %1214 = vmatprep.subr.bf16.mxu0 %v979
    %1215 = vmatpush2.bf16.msra.mxu0 %v978
    %1216 = vmatprep.subr.bf16.mxu0 %v975
    %1217 = vmatpush2.bf16.msra.mxu0 %v974
    %1218 = vmatprep.subr.bf16.mxu0 %v971
    %1219 = vmatpush2.bf16.msra.mxu0 %v970
    %1220 = vmatprep.subr.bf16.mxu0 %v967
    %1221 = vmatpush2.bf16.msra.mxu0 %v966
    %1222 = vmatprep.mubr.bf16.mxu0 %v397
    %1223 = vmatmul.mubr.bf16.gmra.mxu0 %v396
    %v1224 = vpop.f32.mrf.mxu0
    %v1225 = vadd.f32 %v533, %v1224
    %v1226 = vpop.f32.mrf.mxu0
    %v1227 = vadd.f32 %v537, %v1226
    %v1228 = vpop.f32.mrf.mxu0
    %v1229 = vpop.f32.mrf.mxu0
    %1230 = vdwg.mxu0
    %1231 = vmatprep.subr.bf16.mxu0 %v1027
    %1232 = vmatpush1.bf16.msra.mxu0 %v1026
    %1233 = vmatprep.subr.bf16.mxu0 %v1023
    %1234 = vmatpush1.bf16.msra.mxu0 %v1022
    %1235 = vmatprep.subr.bf16.mxu0 %v1019
    %1236 = vmatpush1.bf16.msra.mxu0 %v1018
    %1237 = vmatprep.subr.bf16.mxu0 %v1015
    %1238 = vmatpush1.bf16.msra.mxu0 %v1014
    %1239 = vmatprep.subr.bf16.mxu0 %v1011
    %1240 = vmatpush1.bf16.msra.mxu0 %v1010
    %1241 = vmatprep.subr.bf16.mxu0 %v1007
    %1242 = vmatpush1.bf16.msra.mxu0 %v1006
    %1243 = vmatprep.subr.bf16.mxu0 %v1003
    %1244 = vmatpush1.bf16.msra.mxu0 %v1002
    %1245 = vmatprep.subr.bf16.mxu0 %v999
    %1246 = vmatpush1.bf16.msra.mxu0 %v998
    %1247 = vmatprep.subr.bf16.mxu0 %v1059
    %1248 = vmatpush2.bf16.msra.mxu0 %v1058
    %1249 = vmatprep.subr.bf16.mxu0 %v1055
    %1250 = vmatpush2.bf16.msra.mxu0 %v1054
    %1251 = vmatprep.subr.bf16.mxu0 %v1051
    %1252 = vmatpush2.bf16.msra.mxu0 %v1050
    %1253 = vmatprep.subr.bf16.mxu0 %v1047
    %1254 = vmatpush2.bf16.msra.mxu0 %v1046
    %1255 = vmatprep.subr.bf16.mxu0 %v1043
    %1256 = vmatpush2.bf16.msra.mxu0 %v1042
    %1257 = vmatprep.subr.bf16.mxu0 %v1039
    %1258 = vmatpush2.bf16.msra.mxu0 %v1038
    %1259 = vmatprep.subr.bf16.mxu0 %v1035
    %1260 = vmatpush2.bf16.msra.mxu0 %v1034
    %1261 = vmatprep.subr.bf16.mxu0 %v1031
    %1262 = vmatpush2.bf16.msra.mxu0 %v1030
    %1263 = vmatprep.mubr.bf16.mxu0 %v399
    %1264 = vmatmul.mubr.bf16.gmra.mxu0 %v398
    %v1265 = vpop.f32.mrf.mxu0
    %v1266 = vadd.f32 %v1225, %v1265
    %v1267 = vpop.f32.mrf.mxu0
    %v1268 = vadd.f32 %v1227, %v1267
    %v1269 = vpop.f32.mrf.mxu0
    %v1270 = vpop.f32.mrf.mxu0
    %1271 = vdwg.mxu0
    %1272 = vmatprep.subr.bf16.mxu0 %v965
    %1273 = vmatpush1.bf16.msra.mxu0 %v964
    %1274 = vmatprep.subr.bf16.mxu0 %v961
    %1275 = vmatpush1.bf16.msra.mxu0 %v960
    %1276 = vmatprep.subr.bf16.mxu0 %v957
    %1277 = vmatpush1.bf16.msra.mxu0 %v956
    %1278 = vmatprep.subr.bf16.mxu0 %v953
    %1279 = vmatpush1.bf16.msra.mxu0 %v952
    %1280 = vmatprep.subr.bf16.mxu0 %v949
    %1281 = vmatpush1.bf16.msra.mxu0 %v948
    %1282 = vmatprep.subr.bf16.mxu0 %v945
    %1283 = vmatpush1.bf16.msra.mxu0 %v944
    %1284 = vmatprep.subr.bf16.mxu0 %v941
    %1285 = vmatpush1.bf16.msra.mxu0 %v940
    %1286 = vmatprep.subr.bf16.mxu0 %v937
    %1287 = vmatpush1.bf16.msra.mxu0 %v936
    %1288 = vmatprep.subr.bf16.mxu0 %v997
    %1289 = vmatpush2.bf16.msra.mxu0 %v996
    %1290 = vmatprep.subr.bf16.mxu0 %v993
    %1291 = vmatpush2.bf16.msra.mxu0 %v992
    %1292 = vmatprep.subr.bf16.mxu0 %v989
    %1293 = vmatpush2.bf16.msra.mxu0 %v988
    %1294 = vmatprep.subr.bf16.mxu0 %v985
    %1295 = vmatpush2.bf16.msra.mxu0 %v984
    %1296 = vmatprep.subr.bf16.mxu0 %v981
    %1297 = vmatpush2.bf16.msra.mxu0 %v980
    %1298 = vmatprep.subr.bf16.mxu0 %v977
    %1299 = vmatpush2.bf16.msra.mxu0 %v976
    %1300 = vmatprep.subr.bf16.mxu0 %v973
    %1301 = vmatpush2.bf16.msra.mxu0 %v972
    %1302 = vmatprep.subr.bf16.mxu0 %v969
    %1303 = vmatpush2.bf16.msra.mxu0 %v968
    %1304 = vmatprep.mubr.bf16.mxu0 %v397
    %1305 = vmatmul.mubr.bf16.gmra.mxu0 %v396
    %v1306 = vpop.f32.mrf.mxu0
    %v1307 = vadd.f32 %v541, %v1306
    %v1308 = vpop.f32.mrf.mxu0
    %v1309 = vadd.f32 %v545, %v1308
    %v1310 = vpop.f32.mrf.mxu0
    %v1311 = vpop.f32.mrf.mxu0
    %1312 = vdwg.mxu0
    %1313 = vmatprep.subr.bf16.mxu0 %v1029
    %1314 = vmatpush1.bf16.msra.mxu0 %v1028
    %1315 = vmatprep.subr.bf16.mxu0 %v1025
    %1316 = vmatpush1.bf16.msra.mxu0 %v1024
    %1317 = vmatprep.subr.bf16.mxu0 %v1021
    %1318 = vmatpush1.bf16.msra.mxu0 %v1020
    %1319 = vmatprep.subr.bf16.mxu0 %v1017
    %1320 = vmatpush1.bf16.msra.mxu0 %v1016
    %1321 = vmatprep.subr.bf16.mxu0 %v1013
    %1322 = vmatpush1.bf16.msra.mxu0 %v1012
    %1323 = vmatprep.subr.bf16.mxu0 %v1009
    %1324 = vmatpush1.bf16.msra.mxu0 %v1008
    %1325 = vmatprep.subr.bf16.mxu0 %v1005
    %1326 = vmatpush1.bf16.msra.mxu0 %v1004
    %1327 = vmatprep.subr.bf16.mxu0 %v1001
    %1328 = vmatpush1.bf16.msra.mxu0 %v1000
    %1329 = vmatprep.subr.bf16.mxu0 %v1061
    %1330 = vmatpush2.bf16.msra.mxu0 %v1060
    %1331 = vmatprep.subr.bf16.mxu0 %v1057
    %1332 = vmatpush2.bf16.msra.mxu0 %v1056
    %1333 = vmatprep.subr.bf16.mxu0 %v1053
    %1334 = vmatpush2.bf16.msra.mxu0 %v1052
    %1335 = vmatprep.subr.bf16.mxu0 %v1049
    %1336 = vmatpush2.bf16.msra.mxu0 %v1048
    %1337 = vmatprep.subr.bf16.mxu0 %v1045
    %1338 = vmatpush2.bf16.msra.mxu0 %v1044
    %1339 = vmatprep.subr.bf16.mxu0 %v1041
    %1340 = vmatpush2.bf16.msra.mxu0 %v1040
    %1341 = vmatprep.subr.bf16.mxu0 %v1037
    %1342 = vmatpush2.bf16.msra.mxu0 %v1036
    %1343 = vmatprep.subr.bf16.mxu0 %v1033
    %1344 = vmatpush2.bf16.msra.mxu0 %v1032
    %1345 = vmatprep.mubr.bf16.mxu0 %v399
    %1346 = vmatmul.mubr.bf16.gmra.mxu0 %v398
    %v1347 = vpop.f32.mrf.mxu0
    %v1348 = vadd.f32 %v1307, %v1347
    %v1349 = vpop.f32.mrf.mxu0
    %v1350 = vadd.f32 %v1309, %v1349
    %v1351 = vpop.f32.mrf.mxu0
    %v1352 = vpop.f32.mrf.mxu0
    %1353 = vdwg.mxu0
    %v1354 = vmax.f32 %v1266, 0.0
    %v1355 = vmax.f32 %v1268, 0.0
    %v1356 = vmax.f32 %v1348, 0.0
    %v1357 = vmax.f32 %v1350, 0.0
    %v1358 = vpack.c.bf16 %v1354, %v1354
    %v1359 = vpack.c.bf16 %v1355, %v1355
    %v1360 = vpack.c.bf16 %v1356, %v1356
    %v1361 = vpack.c.bf16 %v1357, %v1357
    %v1366 = vunpack.c.l.b16 %v1358
    %v1367 = vunpack.c.l.b16 %v1359
    %v1368 = vunpack.c.l.b16 %v1360
    %v1369 = vunpack.c.l.b16 %v1361
    %v1370 = vpack.c.b16 %v1367, %v1366
    %v1371 = vpack.c.b16 %v1369, %v1368
    %1374 = vst [vmem:[#allocation12] sm:$0xff] %v1370
    %1375 = vst [vmem:[#allocation12 + $0x8] sm:$0xff] %v1371
    %v1376 = vld [vmem:[#allocation10] sm:$0xf]
    %v1377 = vld [vmem:[#allocation10 + $0x4] sm:$0xf]
    %v1378 = vld [vmem:[#allocation10 + $0x8] sm:$0xf]
    %v1379 = vld [vmem:[#allocation10 + $0xc] sm:$0xf]
    %v1380 = vld [vmem:[#allocation10 + $0x10] sm:$0xf]
    %v1381 = vld [vmem:[#allocation10 + $0x14] sm:$0xf]
    %v1382 = vld [vmem:[#allocation10 + $0x18] sm:$0xf]
    %v1383 = vld [vmem:[#allocation10 + $0x1c] sm:$0xf]
    %v1384 = vld [vmem:[#allocation10 + $0x20] sm:$0xf]
    %v1385 = vld [vmem:[#allocation10 + $0x24] sm:$0xf]
    %v1386 = vld [vmem:[#allocation10 + $0x28] sm:$0xf]
    %v1387 = vld [vmem:[#allocation10 + $0x2c] sm:$0xf]
    %v1388 = vld [vmem:[#allocation10 + $0x30] sm:$0xf]
    %v1389 = vld [vmem:[#allocation10 + $0x34] sm:$0xf]
    %v1390 = vld [vmem:[#allocation10 + $0x38] sm:$0xf]
    %v1391 = vld [vmem:[#allocation10 + $0x3c] sm:$0xf]
    %v1392 = vld [vmem:[#allocation10 + $0x40] sm:$0xf]
    %v1393 = vld [vmem:[#allocation10 + $0x44] sm:$0xf]
    %v1394 = vld [vmem:[#allocation10 + $0x48] sm:$0xf]
    %v1395 = vld [vmem:[#allocation10 + $0x4c] sm:$0xf]
    %v1396 = vld [vmem:[#allocation10 + $0x50] sm:$0xf]
    %v1397 = vld [vmem:[#allocation10 + $0x54] sm:$0xf]
    %v1398 = vld [vmem:[#allocation10 + $0x58] sm:$0xf]
    %v1399 = vld [vmem:[#allocation10 + $0x5c] sm:$0xf]
    %v1400 = vld [vmem:[#allocation10 + $0x60] sm:$0xf]
    %v1401 = vld [vmem:[#allocation10 + $0x64] sm:$0xf]
    %v1402 = vld [vmem:[#allocation10 + $0x68] sm:$0xf]
    %v1403 = vld [vmem:[#allocation10 + $0x6c] sm:$0xf]
    %v1404 = vld [vmem:[#allocation10 + $0x70] sm:$0xf]
    %v1405 = vld [vmem:[#allocation10 + $0x74] sm:$0xf]
    %v1406 = vld [vmem:[#allocation10 + $0x78] sm:$0xf]
    %v1407 = vld [vmem:[#allocation10 + $0x7c] sm:$0xf]
    %v1408 = vld [vmem:[#allocation10 + $0x80] sm:$0xf]
    %v1409 = vld [vmem:[#allocation10 + $0x84] sm:$0xf]
    %v1410 = vld [vmem:[#allocation10 + $0x88] sm:$0xf]
    %v1411 = vld [vmem:[#allocation10 + $0x8c] sm:$0xf]
    %v1412 = vld [vmem:[#allocation10 + $0x90] sm:$0xf]
    %v1413 = vld [vmem:[#allocation10 + $0x94] sm:$0xf]
    %v1414 = vld [vmem:[#allocation10 + $0x98] sm:$0xf]
    %v1415 = vld [vmem:[#allocation10 + $0x9c] sm:$0xf]
    %v1416 = vld [vmem:[#allocation10 + $0xa0] sm:$0xf]
    %v1417 = vld [vmem:[#allocation10 + $0xa4] sm:$0xf]
    %v1418 = vld [vmem:[#allocation10 + $0xa8] sm:$0xf]
    %v1419 = vld [vmem:[#allocation10 + $0xac] sm:$0xf]
    %v1420 = vld [vmem:[#allocation10 + $0xb0] sm:$0xf]
    %v1421 = vld [vmem:[#allocation10 + $0xb4] sm:$0xf]
    %v1422 = vld [vmem:[#allocation10 + $0xb8] sm:$0xf]
    %v1423 = vld [vmem:[#allocation10 + $0xbc] sm:$0xf]
    %v1424 = vld [vmem:[#allocation10 + $0xc0] sm:$0xf]
    %v1425 = vld [vmem:[#allocation10 + $0xc4] sm:$0xf]
    %v1426 = vld [vmem:[#allocation10 + $0xc8] sm:$0xf]
    %v1427 = vld [vmem:[#allocation10 + $0xcc] sm:$0xf]
    %v1428 = vld [vmem:[#allocation10 + $0xd0] sm:$0xf]
    %v1429 = vld [vmem:[#allocation10 + $0xd4] sm:$0xf]
    %v1430 = vld [vmem:[#allocation10 + $0xd8] sm:$0xf]
    %v1431 = vld [vmem:[#allocation10 + $0xdc] sm:$0xf]
    %v1432 = vld [vmem:[#allocation10 + $0xe0] sm:$0xf]
    %v1433 = vld [vmem:[#allocation10 + $0xe4] sm:$0xf]
    %v1434 = vld [vmem:[#allocation10 + $0xe8] sm:$0xf]
    %v1435 = vld [vmem:[#allocation10 + $0xec] sm:$0xf]
    %v1436 = vld [vmem:[#allocation10 + $0xf0] sm:$0xf]
    %v1437 = vld [vmem:[#allocation10 + $0xf4] sm:$0xf]
    %v1438 = vld [vmem:[#allocation10 + $0xf8] sm:$0xf]
    %v1439 = vld [vmem:[#allocation10 + $0xfc] sm:$0xf]
    %v1440 = vld [vmem:[%s6] sm:$0x1]
    %v1442 = vlaneseq
    %v1443 = vshrl.u32 %v1442, 7
    %v1444 = vsub.s32 0, %v1443
    %v1445 = vrot.slane %v1440, %v1444
    %v1511 = vunpack.c.l.b16 %v1376
    %v1512 = vunpack.c.l.b16 %v1377
    %v1513 = vunpack.c.l.b16 %v1378
    %v1514 = vunpack.c.l.b16 %v1379
    %v1515 = vunpack.c.l.b16 %v1380
    %v1516 = vunpack.c.l.b16 %v1381
    %v1517 = vunpack.c.l.b16 %v1382
    %v1518 = vunpack.c.l.b16 %v1383
    %v1519 = vunpack.c.l.b16 %v1384
    %v1520 = vunpack.c.l.b16 %v1385
    %v1521 = vunpack.c.l.b16 %v1386
    %v1522 = vunpack.c.l.b16 %v1387
    %v1523 = vunpack.c.l.b16 %v1388
    %v1524 = vunpack.c.l.b16 %v1389
    %v1525 = vunpack.c.l.b16 %v1390
    %v1526 = vunpack.c.l.b16 %v1391
    %v1527 = vunpack.c.l.b16 %v1392
    %v1528 = vunpack.c.l.b16 %v1393
    %v1529 = vunpack.c.l.b16 %v1394
    %v1530 = vunpack.c.l.b16 %v1395
    %v1531 = vunpack.c.l.b16 %v1396
    %v1532 = vunpack.c.l.b16 %v1397
    %v1533 = vunpack.c.l.b16 %v1398
    %v1534 = vunpack.c.l.b16 %v1399
    %v1535 = vunpack.c.l.b16 %v1400
    %v1536 = vunpack.c.l.b16 %v1401
    %v1537 = vunpack.c.l.b16 %v1402
    %v1538 = vunpack.c.l.b16 %v1403
    %v1539 = vunpack.c.l.b16 %v1404
    %v1540 = vunpack.c.l.b16 %v1405
    %v1541 = vunpack.c.l.b16 %v1406
    %v1542 = vunpack.c.l.b16 %v1407
    %v1543 = vunpack.c.l.b16 %v1408
    %v1544 = vunpack.c.l.b16 %v1409
    %v1545 = vunpack.c.l.b16 %v1410
    %v1546 = vunpack.c.l.b16 %v1411
    %v1547 = vunpack.c.l.b16 %v1412
    %v1548 = vunpack.c.l.b16 %v1413
    %v1549 = vunpack.c.l.b16 %v1414
    %v1550 = vunpack.c.l.b16 %v1415
    %v1551 = vunpack.c.l.b16 %v1416
    %v1552 = vunpack.c.l.b16 %v1417
    %v1553 = vunpack.c.l.b16 %v1418
    %v1554 = vunpack.c.l.b16 %v1419
    %v1555 = vunpack.c.l.b16 %v1420
    %v1556 = vunpack.c.l.b16 %v1421
    %v1557 = vunpack.c.l.b16 %v1422
    %v1558 = vunpack.c.l.b16 %v1423
    %v1559 = vunpack.c.l.b16 %v1424
    %v1560 = vunpack.c.l.b16 %v1425
    %v1561 = vunpack.c.l.b16 %v1426
    %v1562 = vunpack.c.l.b16 %v1427
    %v1563 = vunpack.c.l.b16 %v1428
    %v1564 = vunpack.c.l.b16 %v1429
    %v1565 = vunpack.c.l.b16 %v1430
    %v1566 = vunpack.c.l.b16 %v1431
    %v1567 = vunpack.c.l.b16 %v1432
    %v1568 = vunpack.c.l.b16 %v1433
    %v1569 = vunpack.c.l.b16 %v1434
    %v1570 = vunpack.c.l.b16 %v1435
    %v1571 = vunpack.c.l.b16 %v1436
    %v1572 = vunpack.c.l.b16 %v1437
    %v1573 = vunpack.c.l.b16 %v1438
    %v1574 = vunpack.c.l.b16 %v1439
    %v1575 = vpack.c.b16 %v1512, %v1511
    %v1576 = vpack.c.b16 %v1514, %v1513
    %v1577 = vpack.c.b16 %v1516, %v1515
    %v1578 = vpack.c.b16 %v1518, %v1517
    %v1579 = vpack.c.b16 %v1520, %v1519
    %v1580 = vpack.c.b16 %v1522, %v1521
    %v1581 = vpack.c.b16 %v1524, %v1523
    %v1582 = vpack.c.b16 %v1526, %v1525
    %v1583 = vpack.c.b16 %v1528, %v1527
    %v1584 = vpack.c.b16 %v1530, %v1529
    %v1585 = vpack.c.b16 %v1532, %v1531
    %v1586 = vpack.c.b16 %v1534, %v1533
    %v1587 = vpack.c.b16 %v1536, %v1535
    %v1588 = vpack.c.b16 %v1538, %v1537
    %v1589 = vpack.c.b16 %v1540, %v1539
    %v1590 = vpack.c.b16 %v1542, %v1541
    %v1591 = vpack.c.b16 %v1544, %v1543
    %v1592 = vpack.c.b16 %v1546, %v1545
    %v1593 = vpack.c.b16 %v1548, %v1547
    %v1594 = vpack.c.b16 %v1550, %v1549
    %v1595 = vpack.c.b16 %v1552, %v1551
    %v1596 = vpack.c.b16 %v1554, %v1553
    %v1597 = vpack.c.b16 %v1556, %v1555
    %v1598 = vpack.c.b16 %v1558, %v1557
    %v1599 = vpack.c.b16 %v1560, %v1559
    %v1600 = vpack.c.b16 %v1562, %v1561
    %v1601 = vpack.c.b16 %v1564, %v1563
    %v1602 = vpack.c.b16 %v1566, %v1565
    %v1603 = vpack.c.b16 %v1568, %v1567
    %v1604 = vpack.c.b16 %v1570, %v1569
    %v1605 = vpack.c.b16 %v1572, %v1571
    %v1606 = vpack.c.b16 %v1574, %v1573
    %1639 = vmatprep.subr.bf16.mxu0 0
    %1640 = vmatpush1.bf16.msra.mxu0 %v1582
    %1641 = vmatprep.subr.bf16.mxu0 0
    %1642 = vmatpush1.bf16.msra.mxu0 %v1581
    %1643 = vmatprep.subr.bf16.mxu0 0
    %1644 = vmatpush1.bf16.msra.mxu0 %v1580
    %1645 = vmatprep.subr.bf16.mxu0 0
    %1646 = vmatpush1.bf16.msra.mxu0 %v1579
    %1647 = vmatprep.subr.bf16.mxu0 0
    %1648 = vmatpush1.bf16.msra.mxu0 %v1578
    %1649 = vmatprep.subr.bf16.mxu0 0
    %1650 = vmatpush1.bf16.msra.mxu0 %v1577
    %1651 = vmatprep.subr.bf16.mxu0 0
    %1652 = vmatpush1.bf16.msra.mxu0 %v1576
    %1653 = vmatprep.subr.bf16.mxu0 0
    %1654 = vmatpush1.bf16.msra.mxu0 %v1575
    %1655 = vmatprep.subr.bf16.mxu0 0
    %1656 = vmatpush2.bf16.msra.mxu0 %v1590
    %1657 = vmatprep.subr.bf16.mxu0 0
    %1658 = vmatpush2.bf16.msra.mxu0 %v1589
    %1659 = vmatprep.subr.bf16.mxu0 0
    %1660 = vmatpush2.bf16.msra.mxu0 %v1588
    %1661 = vmatprep.subr.bf16.mxu0 0
    %1662 = vmatpush2.bf16.msra.mxu0 %v1587
    %1663 = vmatprep.subr.bf16.mxu0 0
    %1664 = vmatpush2.bf16.msra.mxu0 %v1586
    %1665 = vmatprep.subr.bf16.mxu0 0
    %1666 = vmatpush2.bf16.msra.mxu0 %v1585
    %1667 = vmatprep.subr.bf16.mxu0 0
    %1668 = vmatpush2.bf16.msra.mxu0 %v1584
    %1669 = vmatprep.subr.bf16.mxu0 0
    %1670 = vmatpush2.bf16.msra.mxu0 %v1583
    %1671 = vmatprep.mubr.bf16.mxu0 %v1359
    %1672 = vmatmul.mubr.bf16.gmra.mxu0 %v1358
    %v1673 = vpop.f32.mrf.mxu0
    %v1674 = vadd.f32 %v1445, %v1673
    %v1675 = vpop.f32.mrf.mxu0
    %v1676 = vpop.f32.mrf.mxu0
    %v1677 = vpop.f32.mrf.mxu0
    %1678 = vdwg.mxu0
    %1679 = vmatprep.subr.bf16.mxu0 0
    %1680 = vmatpush1.bf16.msra.mxu0 %v1598
    %1681 = vmatprep.subr.bf16.mxu0 0
    %1682 = vmatpush1.bf16.msra.mxu0 %v1597
    %1683 = vmatprep.subr.bf16.mxu0 0
    %1684 = vmatpush1.bf16.msra.mxu0 %v1596
    %1685 = vmatprep.subr.bf16.mxu0 0
    %1686 = vmatpush1.bf16.msra.mxu0 %v1595
    %1687 = vmatprep.subr.bf16.mxu0 0
    %1688 = vmatpush1.bf16.msra.mxu0 %v1594
    %1689 = vmatprep.subr.bf16.mxu0 0
    %1690 = vmatpush1.bf16.msra.mxu0 %v1593
    %1691 = vmatprep.subr.bf16.mxu0 0
    %1692 = vmatpush1.bf16.msra.mxu0 %v1592
    %1693 = vmatprep.subr.bf16.mxu0 0
    %1694 = vmatpush1.bf16.msra.mxu0 %v1591
    %1695 = vmatprep.subr.bf16.mxu0 0
    %1696 = vmatpush2.bf16.msra.mxu0 %v1606
    %1697 = vmatprep.subr.bf16.mxu0 0
    %1698 = vmatpush2.bf16.msra.mxu0 %v1605
    %1699 = vmatprep.subr.bf16.mxu0 0
    %1700 = vmatpush2.bf16.msra.mxu0 %v1604
    %1701 = vmatprep.subr.bf16.mxu0 0
    %1702 = vmatpush2.bf16.msra.mxu0 %v1603
    %1703 = vmatprep.subr.bf16.mxu0 0
    %1704 = vmatpush2.bf16.msra.mxu0 %v1602
    %1705 = vmatprep.subr.bf16.mxu0 0
    %1706 = vmatpush2.bf16.msra.mxu0 %v1601
    %1707 = vmatprep.subr.bf16.mxu0 0
    %1708 = vmatpush2.bf16.msra.mxu0 %v1600
    %1709 = vmatprep.subr.bf16.mxu0 0
    %1710 = vmatpush2.bf16.msra.mxu0 %v1599
    %1711 = vmatprep.mubr.bf16.mxu0 %v1361
    %1712 = vmatmul.mubr.bf16.gmra.mxu0 %v1360
    %v1713 = vpop.f32.mrf.mxu0
    %v1714 = vadd.f32 %v1674, %v1713
    %v1715 = vpop.f32.mrf.mxu0
    %v1716 = vpop.f32.mrf.mxu0
    %v1717 = vpop.f32.mrf.mxu0
    %1718 = vdwg.mxu0
    %v1719 = vlaneseq
    %v1720 = vand.u32 %v1719, 127
    %vm1721 = vcmp.lt.s32.totalorder %v1720, 16
    %vm1722 = vcmp.gt.f32.partialorder %v1714, 20.0
    %v1723 = vmin.f32 %v1714, 20.0
    %v1724 = vmul.f32 %v1723, 1.442695
    %v1725 = vpow.pop %v1724
    %v1726 = vadd.f32 %v1725, 1.0
    %v1727 = vlog2.pop %v1726
    %v1728 = vmul.f32 %v1727, 0.6931472
    %v1729 = vmul.f32 -0.5, %v1725
    %v1730 = vadd.f32 %v1729, 1.0
    %v1731 = vmul.f32 %v1730, %v1725
    %v1732 = vand.u32 2147483647, %v1725
    %vm1733 = vcmp.lt.f32.partialorder %v1732, 0.0004427343
    %v1734 = vsel %vm1733, %v1731, %v1728
    %v1735 = vsel %vm1722, %v1714, %v1734
    %v1736 = vadd.f32 %v1735, 1.0
    %v1737 = vsel %vm1721, %v1736, %v1714
    %v1738 = vpack.c.bf16 %v1737, %v1737
    %1739 = vst [vmem:[#allocation11] sm:$0xf] %v1738
    // Predicated region
    $region50: #{tpu_custom_call.1} parent=1 // pred_check
      _
    $region51: #{tpu_custom_call.1} parent=1 // pred_check_branch
      %1741 = sbr.rel (0) target = $region53
    $region52: #{tpu_custom_call.1} parent=1 // pred_region
      %s1743 = ssub.s32 64, 64
      %1744 = vsyncadd [#allocation4], %s1743
      %s1746 = sshll.u32 [#allocation11], 4
      %s1747 = int_to_ptr.vmem [resolvable:$true] %s1746
      %1749 = dma.vmem_to_hbm [thread:$0]  %s1747, 64, %s7, [#allocation4]
    $region53: #{tpu_custom_call.1} parent=1 // pred_fallthru
      _
    // Predicated region
    $region54: #{tpu_custom_call.1} parent=1 // pred_check
      _
    $region55: #{tpu_custom_call.1} parent=1 // pred_check_branch
      %1751 = sbr.rel (0) target = $region57
    $region56: #{tpu_custom_call.1} parent=1 // pred_region
      %s1753 = ssub.s32 256, 256
      %1754 = vsyncadd [#allocation13], %s1753
      %s1756 = sshll.u32 [#allocation12], 4
      %s1757 = int_to_ptr.vmem [resolvable:$true] %s1756
      %1759 = dma.vmem_to_hbm [thread:$0]  %s1757, 256, %s8, [#allocation13]
    $region57: #{tpu_custom_call.1} parent=1 // pred_fallthru
      _
    // Predicated region
    $region58: #{tpu_custom_call.1} parent=1 // pred_check
      _
    $region59: #{tpu_custom_call.1} parent=1 // pred_check_branch
      %1761 = sbr.rel (0) target = $region61
    $region60: #{tpu_custom_call.1} parent=1 // pred_region
      %1762 = dma.done [#allocation4], 64
    $region61: #{tpu_custom_call.1} parent=1 // pred_fallthru
      _
    // Predicated region
    $region62: #{tpu_custom_call.1} parent=1 // pred_check
      _
    $region63: #{tpu_custom_call.1} parent=1 // pred_check_branch
      %1764 = sbr.rel (0) target = $region65
    $region64: #{tpu_custom_call.1} parent=1 // pred_region
      %1765 = dma.done [#allocation13], 256
    $region65: #{tpu_custom_call.1} parent=1 // pred_fallthru
      _
    %1766 = vsyncpa [#allocation3], 1
    %1767 = vsyncpa [#allocation6], 1
    %1768 = vsyncpa [#allocation9], 1
    %1769 = vsyncpa [#allocation4], 1
    %1770 = vsyncpa [#allocation13], 1

</llo_original>
